<compile_context>
chip_gen: v5e
topology: v5e:2x2
jax: 0.10.0
libtpu: 0.0.40
codegen_flags: <defaults>
</compile_context>

<pallas_src>
import functools
import math

import numpy as np
import jax
import jax.numpy as jnp
from jax.experimental import pallas as pl
from jax.experimental.pallas import tpu as pltpu

# ----- small, module-consistent hyper-parameters -----
BATCH = 2
T_TRG = 8        # decoder sequence length
T_SRC = 10       # encoder sequence length
EMB = 48         # embedding_size
HID = 64         # hidden_size
HEADS = 4        # num_heads
KD = 64          # total_key_depth
VD = 64          # total_value_depth
FILTER = 128     # filter_size
LAYERS = 2       # num_layers
MAX_LEN = 1000   # max_length (timing-signal buffer length)
OUT_PAD = 128    # lane-dense output width
NEG_INF = -1.0e18

assert KD == VD and KD % HEADS == 0


# ---------------------------------------------------------------------------
# Buffers / parameters (deterministic, synthetic)
# ---------------------------------------------------------------------------
def _gen_timing_signal(length, channels, min_timescale=1.0, max_timescale=1.0e4):
    position = np.arange(length, dtype=np.float64)
    num_timescales = channels // 2
    log_timescale_increment = (math.log(float(max_timescale) / float(min_timescale)) /
                               (float(num_timescales) - 1))
    inv_timescales = min_timescale * np.exp(
        np.arange(num_timescales, dtype=np.float64) * -log_timescale_increment)
    scaled_time = position[:, None] * inv_timescales[None, :]
    signal = np.concatenate([np.sin(scaled_time), np.cos(scaled_time)], axis=1)
    signal = np.pad(signal, [[0, 0], [0, channels % (num_timescales * 2)]],
                    'constant', constant_values=0.0)
    return signal.reshape([1, length, channels]).astype(np.float32)


def init_params(key):
    ks = jax.random.split(key, 8)
    s = 0.08
    bf = jnp.bfloat16
    p = {}
    p['wemb'] = (s * jax.random.normal(ks[0], (EMB, HID), jnp.float32)).astype(bf)
    # fused self-attention QKV weight: [Wq | Wk | Wv]
    p['swqkv'] = (s * jax.random.normal(ks[1], (LAYERS, HID, 3 * KD), jnp.float32)).astype(bf)
    p['swo'] = (s * jax.random.normal(ks[2], (LAYERS, VD, HID), jnp.float32)).astype(bf)
    p['cwq'] = (s * jax.random.normal(ks[3], (LAYERS, HID, KD), jnp.float32)).astype(bf)
    # fused cross-attention K/V weight: [Wk | Wv]
    p['cwkv'] = (s * jax.random.normal(ks[4], (LAYERS, HID, KD + VD), jnp.float32)).astype(bf)
    p['cwo'] = (s * jax.random.normal(ks[5], (LAYERS, VD, HID), jnp.float32)).astype(bf)
    # causal Conv1d(k=3) weights, kept as 3 taps for accumulated MXU pushes
    p['c1w'] = (s * jax.random.normal(ks[6], (LAYERS, 3, HID, FILTER), jnp.float32)).astype(bf)
    p['c1b'] = 0.01 * jnp.ones((LAYERS, FILTER), jnp.float32)
    p['c2w'] = (s * jax.random.normal(ks[7], (LAYERS, 3, FILTER, HID), jnp.float32)).astype(bf)
    p['c2b'] = 0.01 * jnp.ones((LAYERS, HID), jnp.float32)
    for i in (1, 2, 3):
        p[f'ln{i}g'] = jnp.ones((LAYERS, HID), jnp.float32)
        p[f'ln{i}b'] = jnp.zeros((LAYERS, HID), jnp.float32)
    p['lnfg'] = jnp.ones((1, HID), jnp.float32)
    p['lnfb'] = jnp.zeros((1, HID), jnp.float32)
    p['timing'] = jnp.asarray(_gen_timing_signal(MAX_LEN, HID)[0])  # (MAX_LEN, HID)
    return p


# ---------------------------------------------------------------------------
# The Pallas kernel: whole decoder stack (all layers, batch folded) in one call
# ---------------------------------------------------------------------------
def _decoder_kernel(x_ref, enc_ref, masks_ref, cvec_ref,
                    wemb_ref, swqkv_ref, swo_ref, cwq_ref, cwkv_ref, cwo_ref,
                    c1w_ref, c2w_ref,
                    y_ref, attn_ref,
                    *, num_layers, num_heads, t_seq):
    f32, bf = jnp.float32, jnp.bfloat16
    rows = x_ref.shape[0]          # B*T (batch folded on sublanes)
    skv = enc_ref.shape[0]         # B*S
    hid = wemb_ref.shape[1]
    kd = cwq_ref.shape[2]
    vd = cwo_ref.shape[1]
    filt = c1w_ref.shape[3]
    nh = num_heads
    dk = kd // nh
    srows = nh * rows              # head-stacked row count
    scale = float(dk) ** -0.5

    def idiv(v, d):
        return jnp.right_shift(v, int(math.log2(d))) if (d & (d - 1)) == 0 else v // d

    def imod(v, d):
        return jnp.bitwise_and(v, d - 1) if (d & (d - 1)) == 0 else jax.lax.rem(v, d)

    # ---- constants built in-kernel (no operands, no DMA) ----
    pos = jax.lax.broadcasted_iota(jnp.int32, (rows, 1), 0)
    seq_pos = imod(pos, t_seq)                         # position inside its sequence
    keep1 = (seq_pos >= 1).astype(f32)                 # zero rows whose x_{t-1} crosses a boundary
    keep2 = (seq_pos >= 2).astype(f32)
    ri = jax.lax.broadcasted_iota(jnp.int32, (srows, kd), 0)
    ci = jax.lax.broadcasted_iota(jnp.int32, (srows, kd), 1)
    headmask = (idiv(ri, rows) == idiv(ci, dk)).astype(f32)   # (H*rows, kd) block selector

    # additive attention masks (0 keep / -1e18 drop), tiled across heads on sublanes
    m_all = masks_ref[...]
    smask_s = jnp.concatenate([m_all[:, 0:rows]] * nh, axis=0)            # (H*rows, B*T)
    cmask_s = jnp.concatenate([m_all[:, rows:rows + skv]] * nh, axis=0)   # (H*rows, B*S)

    enc_bf = enc_ref[...].astype(bf)
    cbase = rows                   # first constant row after the timing block

    # ---- helpers ----
    def layer_norm(v, gi, bi):
        g = cvec_ref[gi:gi + 1, 0:hid]
        b = cvec_ref[bi:bi + 1, 0:hid]
        mean = jnp.mean(v, axis=-1, keepdims=True)
        d = v - mean
        var = jnp.sum(d * d, axis=-1, keepdims=True) * (1.0 / (hid - 1))
        inv = pl.reciprocal(jnp.sqrt(var) + 1e-6, approx=True)     # EUP slot
        return g * (d * inv) + b

    def mha(q, k_bf, v_bf, mask_s, wo, need_attn):
        """Head-stacked MHA: q (rows,kd) f32 pre-scaled; k/v (Skv, kd/vd) bf16."""
        q_s = jnp.concatenate([q] * nh, axis=0) * headmask               # (H*rows, kd)
        lg = jax.lax.dot_general(q_s.astype(bf), k_bf,
                                 (((1,), (1,)), ((), ())),
                                 preferred_element_type=f32)              # (H*rows, Skv)
        lg = lg + mask_s                                                  # masked_fill semantics
        mx = jnp.max(lg, axis=-1, keepdims=True)
        e = jnp.exp(lg - mx)
        p = e * pl.reciprocal(jnp.sum(e, axis=-1, keepdims=True), approx=True)
        ctx_s = jnp.dot(p.astype(bf), v_bf, preferred_element_type=f32)   # (H*rows, vd)
        ctx_s = ctx_s * headmask                                          # keep head-h lane block
        ctx = ctx_s[0:rows]
        for h in range(1, nh):                                            # aligned 16-row adds
            ctx = ctx + ctx_s[h * rows:(h + 1) * rows]
        out = jnp.dot(ctx.astype(bf), wo, preferred_element_type=f32)
        attn = None
        if need_attn:                                                     # head-avg masked logits
            a = lg[0:rows]
            for h in range(1, nh):
                a = a + lg[h * rows:(h + 1) * rows]
            attn = a * (1.0 / nh)
        return out, attn

    def conv3(v, w_ref, lyr, bias_row, cout):
        """Causal Conv1d(k=3): sublane rolls + 3 accumulated MXU taps."""
        x1 = pltpu.roll(v, shift=1, axis=0) * keep1                       # x_{t-1}
        x2 = pltpu.roll(v, shift=2, axis=0) * keep2                       # x_{t-2}
        y = jnp.dot(x2.astype(bf), w_ref[lyr, 0], preferred_element_type=f32)
        y = y + jnp.dot(x1.astype(bf), w_ref[lyr, 1], preferred_element_type=f32)
        y = y + jnp.dot(v.astype(bf), w_ref[lyr, 2], preferred_element_type=f32)
        return y + cvec_ref[bias_row:bias_row + 1, 0:cout]

    # ---- forward ----
    # input_dropout(p=0) == identity; embedding projection (no bias) + timing signal
    x = jnp.dot(x_ref[...].astype(bf), wemb_ref[...], preferred_element_type=f32)
    x = x + cvec_ref[0:rows, 0:hid]

    attn = None
    for l in range(num_layers):
        o = cbase + 8 * l
        # --- masked multi-head self attention (pre-LN, residual, layer_dropout=0) ---
        xn = layer_norm(x, o + 0, o + 1).astype(bf)
        qkv = jnp.dot(xn, swqkv_ref[l], preferred_element_type=f32)       # one fused QKV dot
        q = qkv[:, 0:kd] * scale
        k_bf = qkv[:, kd:2 * kd].astype(bf)
        v_bf = qkv[:, 2 * kd:2 * kd + vd].astype(bf)
        y, _ = mha(q, k_bf, v_bf, smask_s, swo_ref[l], need_attn=False)
        x = x + y
        # --- encoder-decoder attention (attn_dist only needed from the last layer) ---
        xn = layer_norm(x, o + 2, o + 3).astype(bf)
        q = jnp.dot(xn, cwq_ref[l], preferred_element_type=f32) * scale
        kv = jnp.dot(enc_bf, cwkv_ref[l], preferred_element_type=f32)     # one fused K/V dot
        k_bf = kv[:, 0:kd].astype(bf)
        v_bf = kv[:, kd:kd + vd].astype(bf)
        y, a = mha(q, k_bf, v_bf, cmask_s, cwo_ref[l],
                   need_attn=(l == num_layers - 1))
        if a is not None:
            attn = a
        x = x + y
        # --- position-wise FFN: causal conv(k=3) -> ReLU -> causal conv(k=3) ---
        # TODO(synk): some EmoDT/MoEL forks also apply ReLU after the second conv;
        # the standard conv-ReLU-conv form is used here.
        xn = layer_norm(x, o + 4, o + 5)
        h = conv3(xn, c1w_ref, l, o + 6, filt)
        h = jnp.maximum(h, 0.0)                                           # relu_dropout = 0
        y = conv3(h, c2w_ref, l, o + 7, hid)
        x = x + y

    fbase = cbase + 8 * num_layers
    yout = layer_norm(x, fbase, fbase + 1)

    # lane-dense (128-wide) stores; the wrapper slices off the zero padding
    y_ref[...] = jnp.concatenate(
        [yout, jnp.zeros((rows, y_ref.shape[1] - hid), f32)], axis=-1)
    attn_ref[...] = jnp.concatenate(
        [attn, jnp.zeros((rows, attn_ref.shape[1] - skv), f32)], axis=-1)


# ---------------------------------------------------------------------------
# Wrapper (glue): mask / constant-slab construction, pallas_call, un-padding
# ---------------------------------------------------------------------------
def _build_additive_masks(mask_src, mask_trg):
    """Block-diagonal additive masks (0 keep / -1e18 drop) for the batch-folded layout."""
    b, _, s = mask_src.shape
    t = mask_trg.shape[-1]
    subseq = jnp.triu(jnp.ones((t, t), jnp.float32), k=1)
    dec_masked = ((mask_trg.astype(jnp.float32) + subseq[None]) > 0).astype(jnp.float32)  # (B,T,T)
    eye_b = jnp.eye(b, dtype=jnp.float32)
    self_allowed = (1.0 - dec_masked)[:, :, None, :] * eye_b[:, None, :, None]   # (B,T,B,T)
    self_add = (1.0 - self_allowed).reshape(b * t, b * t) * NEG_INF
    src_allowed = 1.0 - mask_src.astype(jnp.float32)[:, 0, :]                    # (B,S)
    cross_allowed = eye_b[:, None, :, None] * src_allowed[None, None, :, :]      # (B,1,B,S)
    cross_allowed = jnp.broadcast_to(cross_allowed, (b, t, b, s))
    cross_add = (1.0 - cross_allowed).reshape(b * t, b * s) * NEG_INF
    return self_add, cross_add


def _pack_consts(params, b, t):
    """Pack timing signal, LN gammas/betas, conv biases into one (R,128) f32 slab."""
    hid = params['wemb'].shape[1]

    def row128(v):
        v = v.astype(jnp.float32)
        return jnp.pad(v[None, :], ((0, 0), (0, 128 - v.shape[0])))

    timing = jnp.tile(params['timing'][:t], (b, 1))                 # (B*T, HID)
    rows = [jnp.pad(timing, ((0, 0), (0, 128 - hid)))]
    for l in range(LAYERS):
        rows += [row128(params['ln1g'][l]), row128(params['ln1b'][l]),
                 row128(params['ln2g'][l]), row128(params['ln2b'][l]),
                 row128(params['ln3g'][l]), row128(params['ln3b'][l]),
                 row128(params['c1b'][l]), row128(params['c2b'][l])]
    rows += [row128(params['lnfg'][0]), row128(params['lnfb'][0])]
    return jnp.concatenate(rows, axis=0)                            # (B*T + 8*LAYERS + 2, 128)


def decoder_forward(params, inputs, encoder_output, mask_src, mask_trg):
    b, t, e = inputs.shape
    s = encoder_output.shape[1]
    h = params['wemb'].shape[1]
    rows, skv = b * t, b * s

    x_flat = inputs.reshape(rows, e)
    enc_flat = encoder_output.reshape(skv, h)
    self_add, cross_add = _build_additive_masks(mask_src, mask_trg)
    masks = jnp.concatenate([self_add, cross_add], axis=1)          # (B*T, B*T + B*S)
    cvec = _pack_consts(params, b, t)

    operands = (x_flat, enc_flat, masks, cvec,
                params['wemb'], params['swqkv'], params['swo'],
                params['cwq'], params['cwkv'], params['cwo'],
                params['c1w'], params['c2w'])

    # No grid: everything (< 1 MiB) fits in VMEM as one full block per operand.
    vmem_spec = pl.BlockSpec(memory_space=pltpu.MemorySpace.VMEM)
    kernel = functools.partial(_decoder_kernel, num_layers=LAYERS,
                               num_heads=HEADS, t_seq=t)
    y_slab, attn_slab = pl.pallas_call(
        kernel,
        out_shape=(jax.ShapeDtypeStruct((rows, OUT_PAD), jnp.float32),
                   jax.ShapeDtypeStruct((rows, OUT_PAD), jnp.float32)),
        in_specs=[vmem_spec] * len(operands),
        out_specs=(vmem_spec, vmem_spec),
    )(*operands)

    y = y_slab[:, :h].reshape(b, t, h)
    attn_full = attn_slab[:, :skv].reshape(b, t, b, s)
    attn = attn_full[jnp.arange(b), :, jnp.arange(b), :]            # (B, T, S)
    return y, attn


# ---------------------------------------------------------------------------
# Pure-JAX f32 reference (for correctness check)
# ---------------------------------------------------------------------------
def _ref_layer_norm(x, g, b, eps=1e-6):
    mean = jnp.mean(x, axis=-1, keepdims=True)
    d = x - mean
    var = jnp.sum(d * d, axis=-1, keepdims=True) * (1.0 / (x.shape[-1] - 1))
    return g * d / (jnp.sqrt(var) + eps) + b


def _ref_masks(mask_src, mask_trg):
    t = mask_trg.shape[-1]
    subseq = jnp.triu(jnp.ones((t, t), jnp.float32), k=1)
    dec_mask = ((mask_trg.astype(jnp.float32) + subseq[None]) > 0).astype(jnp.float32)
    src_mask = mask_src.astype(jnp.float32)
    return dec_mask, src_mask


def _ref_mha(xq, xkv, mask, wq, wk, wv, wo, nh):
    bsz, tq, _ = xq.shape
    tk = xkv.shape[1]
    kd, vd = wq.shape[-1], wv.shape[-1]
    dk, dv = kd // nh, vd // nh
    q = (xq @ wq).reshape(bsz, tq, nh, dk).transpose(0, 2, 1, 3) * (float(dk) ** -0.5)
    k = (xkv @ wk).reshape(bsz, tk, nh, dk).transpose(0, 2, 1, 3)
    v = (xkv @ wv).reshape(bsz, tk, nh, dv).transpose(0, 2, 1, 3)
    lg = jnp.einsum('bhqd,bhkd->bhqk', q, k)
    lg = jnp.where(mask[:, None] > 0, NEG_INF, lg)
    attn = jnp.sum(lg, axis=1) / nh
    w = jax.nn.softmax(lg, axis=-1)
    ctx = jnp.einsum('bhqk,bhkd->bhqd', w, v).transpose(0, 2, 1, 3).reshape(bsz, tq, vd)
    return ctx @ wo, attn


def _ref_conv(x, w3, bias):
    bsz, t, _ = x.shape
    xp = jnp.pad(x, ((0, 0), (2, 0), (0, 0)))
    y = sum(jnp.einsum('btc,cf->btf', xp[:, j:j + t], w3[j]) for j in range(3))
    return y + bias


def reference_forward(params, inputs, encoder_output, mask_src, mask_trg):
    f32 = jnp.float32
    dec_mask, src_mask = _ref_masks(mask_src, mask_trg)
    t = inputs.shape[1]
    x = inputs @ params['wemb'].astype(f32)
    x = x + params['timing'][:t][None]
    attn = None
    for l in range(LAYERS):
        wqkv = params['swqkv'][l].astype(f32)
        xn = _ref_layer_norm(x, params['ln1g'][l], params['ln1b'][l])
        y, _ = _ref_mha(xn, xn, dec_mask,
                        wqkv[:, :KD], wqkv[:, KD:2 * KD], wqkv[:, 2 * KD:],
                        params['swo'][l].astype(f32), HEADS)
        x = x + y
        wkv = params['cwkv'][l].astype(f32)
        xn = _ref_layer_norm(x, params['ln2g'][l], params['ln2b'][l])
        y, attn = _ref_mha(xn, encoder_output, src_mask,
                           params['cwq'][l].astype(f32), wkv[:, :KD], wkv[:, KD:],
                           params['cwo'][l].astype(f32), HEADS)
        x = x + y
        xn = _ref_layer_norm(x, params['ln3g'][l], params['ln3b'][l])
        hmid = jnp.maximum(_ref_conv(xn, params['c1w'][l].astype(f32), params['c1b'][l]), 0.0)
        y = _ref_conv(hmid, params['c2w'][l].astype(f32), params['c2b'][l])
        x = x + y
    yout = _ref_layer_norm(x, params['lnfg'][0], params['lnfb'][0])
    return yout, attn


# ---------------------------------------------------------------------------
if __name__ == "__main__":
    root = jax.random.PRNGKey(0)
    kp, kx, ke = jax.random.split(root, 3)
    params = init_params(kp)

    inputs = jax.random.normal(kx, (BATCH, T_TRG, EMB), jnp.float32)
    encoder_output = jax.random.normal(ke, (BATCH, T_SRC, HID), jnp.float32)

    # padding masks (True == padded position), shapes [B, 1, T]
    src_lens = jnp.array([T_SRC, T_SRC - 3])
    trg_lens = jnp.array([T_TRG, T_TRG - 2])
    mask_src = (jnp.arange(T_SRC)[None, None, :] >= src_lens[:, None, None])
    mask_trg = (jnp.arange(T_TRG)[None, None, :] >= trg_lens[:, None, None])

    y, attn = decoder_forward(params, inputs, encoder_output, mask_src, mask_trg)
    (y, attn) = jax.block_until_ready((y, attn))

    y_ref, attn_ref = reference_forward(params, inputs, encoder_output, mask_src, mask_trg)
    np.testing.assert_allclose(np.asarray(y), np.asarray(y_ref), rtol=5e-2, atol=5e-2)
    np.testing.assert_allclose(np.asarray(attn), np.asarray(attn_ref), rtol=5e-2, atol=5e-2)

    print("KERNEL_OK")
</pallas_src>

<mosaic_0001>
module attributes {stable_mosaic.version = 11 : i64} {
  func.func @_decoder_kernel(%arg0: memref<16x48xf32, #tpu.memory_space<vmem>>, %arg1: memref<20x64xf32, #tpu.memory_space<vmem>>, %arg2: memref<16x36xf32, #tpu.memory_space<vmem>>, %arg3: memref<34x128xf32, #tpu.memory_space<vmem>>, %arg4: memref<48x64xbf16, #tpu.memory_space<vmem>>, %arg5: memref<2x64x192xbf16, #tpu.memory_space<vmem>>, %arg6: memref<2x64x64xbf16, #tpu.memory_space<vmem>>, %arg7: memref<2x64x64xbf16, #tpu.memory_space<vmem>>, %arg8: memref<2x64x128xbf16, #tpu.memory_space<vmem>>, %arg9: memref<2x64x64xbf16, #tpu.memory_space<vmem>>, %arg10: memref<2x3x64x128xbf16, #tpu.memory_space<vmem>>, %arg11: memref<2x3x128x64xbf16, #tpu.memory_space<vmem>>, %arg12: memref<16x128xf32, #tpu.memory_space<vmem>>, %arg13: memref<16x128xf32, #tpu.memory_space<vmem>>) attributes {dimension_semantics = [], scalar_prefetch = 0 : i64, scratch_operands = 0 : i64, tpu.core_type = #tpu.core_type<tc>} {
    %0 = tpu.iota {dimensions = array<i32: 0>} : vector<16x1xi32>
    %c7_i32 = arith.constant 7 : i32
    %1 = vector.broadcast %c7_i32 : i32 to vector<16x1xi32>
    %2 = arith.andi %0, %1 : vector<16x1xi32>
    %c1_i32 = arith.constant 1 : i32
    %3 = vector.broadcast %c1_i32 : i32 to vector<16x1xi32>
    %4 = arith.cmpi sge, %2, %3 : vector<16x1xi32>
    %5 = arith.extui %4 : vector<16x1xi1> to vector<16x1xi32>
    %6 = arith.sitofp %5 : vector<16x1xi32> to vector<16x1xf32>
    %c2_i32 = arith.constant 2 : i32
    %7 = vector.broadcast %c2_i32 : i32 to vector<16x1xi32>
    %8 = arith.cmpi sge, %2, %7 : vector<16x1xi32>
    %9 = arith.extui %8 : vector<16x1xi1> to vector<16x1xi32>
    %10 = arith.sitofp %9 : vector<16x1xi32> to vector<16x1xf32>
    %11 = tpu.iota {dimensions = array<i32: 0>} : vector<64x64xi32>
    %12 = tpu.iota {dimensions = array<i32: 1>} : vector<64x64xi32>
    %c4_i32 = arith.constant 4 : i32
    %13 = vector.broadcast %c4_i32 : i32 to vector<64x64xi32>
    %14 = arith.shrsi %11, %13 : vector<64x64xi32>
    %c4_i32_0 = arith.constant 4 : i32
    %15 = vector.broadcast %c4_i32_0 : i32 to vector<64x64xi32>
    %16 = arith.shrsi %12, %15 : vector<64x64xi32>
    %17 = arith.cmpi eq, %14, %16 : vector<64x64xi32>
    %18 = arith.extui %17 : vector<64x64xi1> to vector<64x64xi32>
    %19 = arith.sitofp %18 : vector<64x64xi32> to vector<64x64xf32>
    %c0 = arith.constant 0 : index
    %c0_1 = arith.constant 0 : index
    %20 = vector.load %arg2[%c0, %c0_1] : memref<16x36xf32, #tpu.memory_space<vmem>>, vector<16x36xf32>
    %21 = vector.extract_strided_slice %20 {offsets = [0, 0], sizes = [16, 16], strides = [1, 1]} : vector<16x36xf32> to vector<16x16xf32>
    %22 = tpu.concatenate %21, %21, %21, %21 in 0 : vector<16x16xf32>, vector<16x16xf32>, vector<16x16xf32>, vector<16x16xf32> -> vector<64x16xf32>
    %23 = vector.extract_strided_slice %20 {offsets = [0, 16], sizes = [16, 20], strides = [1, 1]} : vector<16x36xf32> to vector<16x20xf32>
    %24 = tpu.concatenate %23, %23, %23, %23 in 0 : vector<16x20xf32>, vector<16x20xf32>, vector<16x20xf32>, vector<16x20xf32> -> vector<64x20xf32>
    %c0_2 = arith.constant 0 : index
    %c0_3 = arith.constant 0 : index
    %25 = vector.load %arg1[%c0_2, %c0_3] : memref<20x64xf32, #tpu.memory_space<vmem>>, vector<20x64xf32>
    %26 = arith.truncf %25 : vector<20x64xf32> to vector<20x64xbf16>
    %c0_4 = arith.constant 0 : index
    %c0_5 = arith.constant 0 : index
    %27 = vector.load %arg0[%c0_4, %c0_5] : memref<16x48xf32, #tpu.memory_space<vmem>>, vector<16x48xf32>
    %28 = arith.truncf %27 : vector<16x48xf32> to vector<16x48xbf16>
    %c0_6 = arith.constant 0 : index
    %c0_7 = arith.constant 0 : index
    %29 = vector.load %arg4[%c0_6, %c0_7] : memref<48x64xbf16, #tpu.memory_space<vmem>>, vector<48x64xbf16>
    %cst = arith.constant dense<0.000000e+00> : vector<16x64xf32>
    %30 = tpu.matmul %28, %29, %cst {dimension_numbers = #tpu.dot_dimension_numbers<[1], [0], [0], [1], [0, 0, 1, 1], [], []>} : vector<16x48xbf16>, vector<48x64xbf16>, vector<16x64xf32> -> vector<16x64xf32>
    %c0_8 = arith.constant 0 : index
    %c0_9 = arith.constant 0 : index
    %31 = vector.load %arg3[%c0_8, %c0_9] : memref<34x128xf32, #tpu.memory_space<vmem>>, vector<16x64xf32>
    %32 = arith.addf %30, %31 : vector<16x64xf32>
    %c16 = arith.constant 16 : index
    %c0_10 = arith.constant 0 : index
    %33 = vector.load %arg3[%c16, %c0_10] : memref<34x128xf32, #tpu.memory_space<vmem>>, vector<1x64xf32>
    %c17 = arith.constant 17 : index
    %c0_11 = arith.constant 0 : index
    %34 = vector.load %arg3[%c17, %c0_11] : memref<34x128xf32, #tpu.memory_space<vmem>>, vector<1x64xf32>
    %cst_12 = arith.constant dense<0.000000e+00> : vector<16xf32>
    %35 = vector.multi_reduction <add>, %32, %cst_12 [1] : vector<16x64xf32> to vector<16xf32>
    %36 = vector.shape_cast %35 : vector<16xf32> to vector<16x1xf32>
    %cst_13 = arith.constant 6.400000e+01 : f32
    %37 = vector.broadcast %cst_13 : f32 to vector<16x1xf32>
    %38 = arith.divf %36, %37 : vector<16x1xf32>
    %39 = vector.broadcast %38 : vector<16x1xf32> to vector<16x64xf32>
    %40 = arith.subf %32, %39 : vector<16x64xf32>
    %41 = arith.mulf %40, %40 : vector<16x64xf32>
    %cst_14 = arith.constant dense<0.000000e+00> : vector<16xf32>
    %42 = vector.multi_reduction <add>, %41, %cst_14 [1] : vector<16x64xf32> to vector<16xf32>
    %43 = vector.shape_cast %42 : vector<16xf32> to vector<16x1xf32>
    %cst_15 = arith.constant 0.0158730168 : f32
    %44 = vector.broadcast %cst_15 : f32 to vector<16x1xf32>
    %45 = arith.mulf %43, %44 : vector<16x1xf32>
    %46 = math.sqrt %45 : vector<16x1xf32>
    %cst_16 = arith.constant 9.99999997E-7 : f32
    %47 = vector.broadcast %cst_16 : f32 to vector<16x1xf32>
    %48 = arith.addf %46, %47 : vector<16x1xf32>
    %49 = tpu.reciprocal %48 {approx = true} : vector<16x1xf32> -> vector<16x1xf32>
    %50 = vector.broadcast %49 : vector<16x1xf32> to vector<16x64xf32>
    %51 = arith.mulf %40, %50 : vector<16x64xf32>
    %52 = vector.broadcast %33 : vector<1x64xf32> to vector<16x64xf32>
    %53 = arith.mulf %52, %51 : vector<16x64xf32>
    %54 = vector.broadcast %34 : vector<1x64xf32> to vector<16x64xf32>
    %55 = arith.addf %53, %54 : vector<16x64xf32>
    %56 = arith.truncf %55 : vector<16x64xf32> to vector<16x64xbf16>
    %c0_17 = arith.constant 0 : index
    %c0_18 = arith.constant 0 : index
    %c0_19 = arith.constant 0 : index
    %57 = vector.load %arg5[%c0_17, %c0_18, %c0_19] : memref<2x64x192xbf16, #tpu.memory_space<vmem>>, vector<1x64x192xbf16>
    %58 = vector.shape_cast %57 : vector<1x64x192xbf16> to vector<64x192xbf16>
    %cst_20 = arith.constant dense<0.000000e+00> : vector<16x192xf32>
    %59 = tpu.matmul %56, %58, %cst_20 {dimension_numbers = #tpu.dot_dimension_numbers<[1], [0], [0], [1], [0, 0, 1, 1], [], []>} : vector<16x64xbf16>, vector<64x192xbf16>, vector<16x192xf32> -> vector<16x192xf32>
    %60 = vector.extract_strided_slice %59 {offsets = [0, 0], sizes = [16, 64], strides = [1, 1]} : vector<16x192xf32> to vector<16x64xf32>
    %cst_21 = arith.constant 2.500000e-01 : f32
    %61 = vector.broadcast %cst_21 : f32 to vector<16x64xf32>
    %62 = arith.mulf %60, %61 : vector<16x64xf32>
    %63 = vector.extract_strided_slice %59 {offsets = [0, 64], sizes = [16, 64], strides = [1, 1]} : vector<16x192xf32> to vector<16x64xf32>
    %64 = arith.truncf %63 : vector<16x64xf32> to vector<16x64xbf16>
    %65 = vector.extract_strided_slice %59 {offsets = [0, 128], sizes = [16, 64], strides = [1, 1]} : vector<16x192xf32> to vector<16x64xf32>
    %66 = arith.truncf %65 : vector<16x64xf32> to vector<16x64xbf16>
    %c0_22 = arith.constant 0 : index
    %c0_23 = arith.constant 0 : index
    %c0_24 = arith.constant 0 : index
    %67 = vector.load %arg6[%c0_22, %c0_23, %c0_24] : memref<2x64x64xbf16, #tpu.memory_space<vmem>>, vector<1x64x64xbf16>
    %68 = vector.shape_cast %67 : vector<1x64x64xbf16> to vector<64x64xbf16>
    %69 = tpu.concatenate %62, %62, %62, %62 in 0 : vector<16x64xf32>, vector<16x64xf32>, vector<16x64xf32>, vector<16x64xf32> -> vector<64x64xf32>
    %70 = arith.mulf %69, %19 : vector<64x64xf32>
    %71 = arith.truncf %70 : vector<64x64xf32> to vector<64x64xbf16>
    %cst_25 = arith.constant dense<0.000000e+00> : vector<64x16xf32>
    %72 = tpu.matmul %71, %64, %cst_25 {dimension_numbers = #tpu.dot_dimension_numbers<[1], [1], [0], [0], [0, 0, 1, 0], [], []>} : vector<64x64xbf16>, vector<16x64xbf16>, vector<64x16xf32> -> vector<64x16xf32>
    %73 = arith.addf %72, %22 : vector<64x16xf32>
    %cst_26 = arith.constant dense<0xFF800000> : vector<64xf32>
    %74 = vector.multi_reduction <maximumf>, %73, %cst_26 [1] : vector<64x16xf32> to vector<64xf32>
    %75 = vector.shape_cast %74 : vector<64xf32> to vector<64x1xf32>
    %76 = vector.broadcast %75 : vector<64x1xf32> to vector<64x16xf32>
    %77 = arith.subf %73, %76 : vector<64x16xf32>
    %78 = math.exp %77 : vector<64x16xf32>
    %cst_27 = arith.constant dense<0.000000e+00> : vector<64xf32>
    %79 = vector.multi_reduction <add>, %78, %cst_27 [1] : vector<64x16xf32> to vector<64xf32>
    %80 = vector.shape_cast %79 : vector<64xf32> to vector<64x1xf32>
    %81 = tpu.reciprocal %80 {approx = true} : vector<64x1xf32> -> vector<64x1xf32>
    %82 = vector.broadcast %81 : vector<64x1xf32> to vector<64x16xf32>
    %83 = arith.mulf %78, %82 : vector<64x16xf32>
    %84 = arith.truncf %83 : vector<64x16xf32> to vector<64x16xbf16>
    %cst_28 = arith.constant dense<0.000000e+00> : vector<64x64xf32>
    %85 = tpu.matmul %84, %66, %cst_28 {dimension_numbers = #tpu.dot_dimension_numbers<[1], [0], [0], [1], [0, 0, 1, 1], [], []>} : vector<64x16xbf16>, vector<16x64xbf16>, vector<64x64xf32> -> vector<64x64xf32>
    %86 = arith.mulf %85, %19 : vector<64x64xf32>
    %87 = vector.extract_strided_slice %86 {offsets = [0, 0], sizes = [16, 64], strides = [1, 1]} : vector<64x64xf32> to vector<16x64xf32>
    %88 = vector.extract_strided_slice %86 {offsets = [16, 0], sizes = [16, 64], strides = [1, 1]} : vector<64x64xf32> to vector<16x64xf32>
    %89 = arith.addf %87, %88 : vector<16x64xf32>
    %90 = vector.extract_strided_slice %86 {offsets = [32, 0], sizes = [16, 64], strides = [1, 1]} : vector<64x64xf32> to vector<16x64xf32>
    %91 = arith.addf %89, %90 : vector<16x64xf32>
    %92 = vector.extract_strided_slice %86 {offsets = [48, 0], sizes = [16, 64], strides = [1, 1]} : vector<64x64xf32> to vector<16x64xf32>
    %93 = arith.addf %91, %92 : vector<16x64xf32>
    %94 = arith.truncf %93 : vector<16x64xf32> to vector<16x64xbf16>
    %cst_29 = arith.constant dense<0.000000e+00> : vector<16x64xf32>
    %95 = tpu.matmul %94, %68, %cst_29 {dimension_numbers = #tpu.dot_dimension_numbers<[1], [0], [0], [1], [0, 0, 1, 1], [], []>} : vector<16x64xbf16>, vector<64x64xbf16>, vector<16x64xf32> -> vector<16x64xf32>
    %96 = arith.addf %32, %95 : vector<16x64xf32>
    %c18 = arith.constant 18 : index
    %c0_30 = arith.constant 0 : index
    %97 = vector.load %arg3[%c18, %c0_30] : memref<34x128xf32, #tpu.memory_space<vmem>>, vector<1x64xf32>
    %c19 = arith.constant 19 : index
    %c0_31 = arith.constant 0 : index
    %98 = vector.load %arg3[%c19, %c0_31] : memref<34x128xf32, #tpu.memory_space<vmem>>, vector<1x64xf32>
    %cst_32 = arith.constant dense<0.000000e+00> : vector<16xf32>
    %99 = vector.multi_reduction <add>, %96, %cst_32 [1] : vector<16x64xf32> to vector<16xf32>
    %100 = vector.shape_cast %99 : vector<16xf32> to vector<16x1xf32>
    %cst_33 = arith.constant 6.400000e+01 : f32
    %101 = vector.broadcast %cst_33 : f32 to vector<16x1xf32>
    %102 = arith.divf %100, %101 : vector<16x1xf32>
    %103 = vector.broadcast %102 : vector<16x1xf32> to vector<16x64xf32>
    %104 = arith.subf %96, %103 : vector<16x64xf32>
    %105 = arith.mulf %104, %104 : vector<16x64xf32>
    %cst_34 = arith.constant dense<0.000000e+00> : vector<16xf32>
    %106 = vector.multi_reduction <add>, %105, %cst_34 [1] : vector<16x64xf32> to vector<16xf32>
    %107 = vector.shape_cast %106 : vector<16xf32> to vector<16x1xf32>
    %cst_35 = arith.constant 0.0158730168 : f32
    %108 = vector.broadcast %cst_35 : f32 to vector<16x1xf32>
    %109 = arith.mulf %107, %108 : vector<16x1xf32>
    %110 = math.sqrt %109 : vector<16x1xf32>
    %cst_36 = arith.constant 9.99999997E-7 : f32
    %111 = vector.broadcast %cst_36 : f32 to vector<16x1xf32>
    %112 = arith.addf %110, %111 : vector<16x1xf32>
    %113 = tpu.reciprocal %112 {approx = true} : vector<16x1xf32> -> vector<16x1xf32>
    %114 = vector.broadcast %113 : vector<16x1xf32> to vector<16x64xf32>
    %115 = arith.mulf %104, %114 : vector<16x64xf32>
    %116 = vector.broadcast %97 : vector<1x64xf32> to vector<16x64xf32>
    %117 = arith.mulf %116, %115 : vector<16x64xf32>
    %118 = vector.broadcast %98 : vector<1x64xf32> to vector<16x64xf32>
    %119 = arith.addf %117, %118 : vector<16x64xf32>
    %120 = arith.truncf %119 : vector<16x64xf32> to vector<16x64xbf16>
    %c0_37 = arith.constant 0 : index
    %c0_38 = arith.constant 0 : index
    %c0_39 = arith.constant 0 : index
    %121 = vector.load %arg7[%c0_37, %c0_38, %c0_39] : memref<2x64x64xbf16, #tpu.memory_space<vmem>>, vector<1x64x64xbf16>
    %122 = vector.shape_cast %121 : vector<1x64x64xbf16> to vector<64x64xbf16>
    %cst_40 = arith.constant dense<0.000000e+00> : vector<16x64xf32>
    %123 = tpu.matmul %120, %122, %cst_40 {dimension_numbers = #tpu.dot_dimension_numbers<[1], [0], [0], [1], [0, 0, 1, 1], [], []>} : vector<16x64xbf16>, vector<64x64xbf16>, vector<16x64xf32> -> vector<16x64xf32>
    %cst_41 = arith.constant 2.500000e-01 : f32
    %124 = vector.broadcast %cst_41 : f32 to vector<16x64xf32>
    %125 = arith.mulf %123, %124 : vector<16x64xf32>
    %c0_42 = arith.constant 0 : index
    %c0_43 = arith.constant 0 : index
    %c0_44 = arith.constant 0 : index
    %126 = vector.load %arg8[%c0_42, %c0_43, %c0_44] : memref<2x64x128xbf16, #tpu.memory_space<vmem>>, vector<1x64x128xbf16>
    %127 = vector.shape_cast %126 : vector<1x64x128xbf16> to vector<64x128xbf16>
    %cst_45 = arith.constant dense<0.000000e+00> : vector<20x128xf32>
    %128 = tpu.matmul %26, %127, %cst_45 {dimension_numbers = #tpu.dot_dimension_numbers<[1], [0], [0], [1], [0, 0, 1, 1], [], []>} : vector<20x64xbf16>, vector<64x128xbf16>, vector<20x128xf32> -> vector<20x128xf32>
    %129 = vector.extract_strided_slice %128 {offsets = [0, 0], sizes = [20, 64], strides = [1, 1]} : vector<20x128xf32> to vector<20x64xf32>
    %130 = arith.truncf %129 : vector<20x64xf32> to vector<20x64xbf16>
    %131 = vector.extract_strided_slice %128 {offsets = [0, 64], sizes = [20, 64], strides = [1, 1]} : vector<20x128xf32> to vector<20x64xf32>
    %132 = arith.truncf %131 : vector<20x64xf32> to vector<20x64xbf16>
    %c0_46 = arith.constant 0 : index
    %c0_47 = arith.constant 0 : index
    %c0_48 = arith.constant 0 : index
    %133 = vector.load %arg9[%c0_46, %c0_47, %c0_48] : memref<2x64x64xbf16, #tpu.memory_space<vmem>>, vector<1x64x64xbf16>
    %134 = vector.shape_cast %133 : vector<1x64x64xbf16> to vector<64x64xbf16>
    %135 = tpu.concatenate %125, %125, %125, %125 in 0 : vector<16x64xf32>, vector<16x64xf32>, vector<16x64xf32>, vector<16x64xf32> -> vector<64x64xf32>
    %136 = arith.mulf %135, %19 : vector<64x64xf32>
    %137 = arith.truncf %136 : vector<64x64xf32> to vector<64x64xbf16>
    %cst_49 = arith.constant dense<0.000000e+00> : vector<64x20xf32>
    %138 = tpu.matmul %137, %130, %cst_49 {dimension_numbers = #tpu.dot_dimension_numbers<[1], [1], [0], [0], [0, 0, 1, 0], [], []>} : vector<64x64xbf16>, vector<20x64xbf16>, vector<64x20xf32> -> vector<64x20xf32>
    %139 = arith.addf %138, %24 : vector<64x20xf32>
    %cst_50 = arith.constant dense<0xFF800000> : vector<64xf32>
    %140 = vector.multi_reduction <maximumf>, %139, %cst_50 [1] : vector<64x20xf32> to vector<64xf32>
    %141 = vector.shape_cast %140 : vector<64xf32> to vector<64x1xf32>
    %142 = vector.broadcast %141 : vector<64x1xf32> to vector<64x20xf32>
    %143 = arith.subf %139, %142 : vector<64x20xf32>
    %144 = math.exp %143 : vector<64x20xf32>
    %cst_51 = arith.constant dense<0.000000e+00> : vector<64xf32>
    %145 = vector.multi_reduction <add>, %144, %cst_51 [1] : vector<64x20xf32> to vector<64xf32>
    %146 = vector.shape_cast %145 : vector<64xf32> to vector<64x1xf32>
    %147 = tpu.reciprocal %146 {approx = true} : vector<64x1xf32> -> vector<64x1xf32>
    %148 = vector.broadcast %147 : vector<64x1xf32> to vector<64x20xf32>
    %149 = arith.mulf %144, %148 : vector<64x20xf32>
    %150 = arith.truncf %149 : vector<64x20xf32> to vector<64x20xbf16>
    %cst_52 = arith.constant dense<0.000000e+00> : vector<64x64xf32>
    %151 = tpu.matmul %150, %132, %cst_52 {dimension_numbers = #tpu.dot_dimension_numbers<[1], [0], [0], [1], [0, 0, 1, 1], [], []>} : vector<64x20xbf16>, vector<20x64xbf16>, vector<64x64xf32> -> vector<64x64xf32>
    %152 = arith.mulf %151, %19 : vector<64x64xf32>
    %153 = vector.extract_strided_slice %152 {offsets = [0, 0], sizes = [16, 64], strides = [1, 1]} : vector<64x64xf32> to vector<16x64xf32>
    %154 = vector.extract_strided_slice %152 {offsets = [16, 0], sizes = [16, 64], strides = [1, 1]} : vector<64x64xf32> to vector<16x64xf32>
    %155 = arith.addf %153, %154 : vector<16x64xf32>
    %156 = vector.extract_strided_slice %152 {offsets = [32, 0], sizes = [16, 64], strides = [1, 1]} : vector<64x64xf32> to vector<16x64xf32>
    %157 = arith.addf %155, %156 : vector<16x64xf32>
    %158 = vector.extract_strided_slice %152 {offsets = [48, 0], sizes = [16, 64], strides = [1, 1]} : vector<64x64xf32> to vector<16x64xf32>
    %159 = arith.addf %157, %158 : vector<16x64xf32>
    %160 = arith.truncf %159 : vector<16x64xf32> to vector<16x64xbf16>
    %cst_53 = arith.constant dense<0.000000e+00> : vector<16x64xf32>
    %161 = tpu.matmul %160, %134, %cst_53 {dimension_numbers = #tpu.dot_dimension_numbers<[1], [0], [0], [1], [0, 0, 1, 1], [], []>} : vector<16x64xbf16>, vector<64x64xbf16>, vector<16x64xf32> -> vector<16x64xf32>
    %162 = arith.addf %96, %161 : vector<16x64xf32>
    %c20 = arith.constant 20 : index
    %c0_54 = arith.constant 0 : index
    %163 = vector.load %arg3[%c20, %c0_54] : memref<34x128xf32, #tpu.memory_space<vmem>>, vector<1x64xf32>
    %c21 = arith.constant 21 : index
    %c0_55 = arith.constant 0 : index
    %164 = vector.load %arg3[%c21, %c0_55] : memref<34x128xf32, #tpu.memory_space<vmem>>, vector<1x64xf32>
    %cst_56 = arith.constant dense<0.000000e+00> : vector<16xf32>
    %165 = vector.multi_reduction <add>, %162, %cst_56 [1] : vector<16x64xf32> to vector<16xf32>
    %166 = vector.shape_cast %165 : vector<16xf32> to vector<16x1xf32>
    %cst_57 = arith.constant 6.400000e+01 : f32
    %167 = vector.broadcast %cst_57 : f32 to vector<16x1xf32>
    %168 = arith.divf %166, %167 : vector<16x1xf32>
    %169 = vector.broadcast %168 : vector<16x1xf32> to vector<16x64xf32>
    %170 = arith.subf %162, %169 : vector<16x64xf32>
    %171 = arith.mulf %170, %170 : vector<16x64xf32>
    %cst_58 = arith.constant dense<0.000000e+00> : vector<16xf32>
    %172 = vector.multi_reduction <add>, %171, %cst_58 [1] : vector<16x64xf32> to vector<16xf32>
    %173 = vector.shape_cast %172 : vector<16xf32> to vector<16x1xf32>
    %cst_59 = arith.constant 0.0158730168 : f32
    %174 = vector.broadcast %cst_59 : f32 to vector<16x1xf32>
    %175 = arith.mulf %173, %174 : vector<16x1xf32>
    %176 = math.sqrt %175 : vector<16x1xf32>
    %cst_60 = arith.constant 9.99999997E-7 : f32
    %177 = vector.broadcast %cst_60 : f32 to vector<16x1xf32>
    %178 = arith.addf %176, %177 : vector<16x1xf32>
    %179 = tpu.reciprocal %178 {approx = true} : vector<16x1xf32> -> vector<16x1xf32>
    %180 = vector.broadcast %179 : vector<16x1xf32> to vector<16x64xf32>
    %181 = arith.mulf %170, %180 : vector<16x64xf32>
    %182 = vector.broadcast %163 : vector<1x64xf32> to vector<16x64xf32>
    %183 = arith.mulf %182, %181 : vector<16x64xf32>
    %184 = vector.broadcast %164 : vector<1x64xf32> to vector<16x64xf32>
    %185 = arith.addf %183, %184 : vector<16x64xf32>
    %c1_i32_61 = arith.constant 1 : i32
    %186 = tpu.dynamic_rotate %185 by %c1_i32_61 dim 0 : vector<16x64xf32>, i32 -> vector<16x64xf32>
    %187 = vector.broadcast %6 : vector<16x1xf32> to vector<16x64xf32>
    %188 = arith.mulf %186, %187 : vector<16x64xf32>
    %c2_i32_62 = arith.constant 2 : i32
    %189 = tpu.dynamic_rotate %185 by %c2_i32_62 dim 0 : vector<16x64xf32>, i32 -> vector<16x64xf32>
    %190 = vector.broadcast %10 : vector<16x1xf32> to vector<16x64xf32>
    %191 = arith.mulf %189, %190 : vector<16x64xf32>
    %192 = arith.truncf %191 : vector<16x64xf32> to vector<16x64xbf16>
    %c0_63 = arith.constant 0 : index
    %c0_64 = arith.constant 0 : index
    %c0_65 = arith.constant 0 : index
    %c0_66 = arith.constant 0 : index
    %193 = vector.load %arg10[%c0_63, %c0_64, %c0_65, %c0_66] : memref<2x3x64x128xbf16, #tpu.memory_space<vmem>>, vector<1x1x64x128xbf16>
    %194 = vector.shape_cast %193 : vector<1x1x64x128xbf16> to vector<64x128xbf16>
    %cst_67 = arith.constant dense<0.000000e+00> : vector<16x128xf32>
    %195 = tpu.matmul %192, %194, %cst_67 {dimension_numbers = #tpu.dot_dimension_numbers<[1], [0], [0], [1], [0, 0, 1, 1], [], []>} : vector<16x64xbf16>, vector<64x128xbf16>, vector<16x128xf32> -> vector<16x128xf32>
    %196 = arith.truncf %188 : vector<16x64xf32> to vector<16x64xbf16>
    %c0_68 = arith.constant 0 : index
    %c1 = arith.constant 1 : index
    %c0_69 = arith.constant 0 : index
    %c0_70 = arith.constant 0 : index
    %197 = vector.load %arg10[%c0_68, %c1, %c0_69, %c0_70] : memref<2x3x64x128xbf16, #tpu.memory_space<vmem>>, vector<1x1x64x128xbf16>
    %198 = vector.shape_cast %197 : vector<1x1x64x128xbf16> to vector<64x128xbf16>
    %cst_71 = arith.constant dense<0.000000e+00> : vector<16x128xf32>
    %199 = tpu.matmul %196, %198, %cst_71 {dimension_numbers = #tpu.dot_dimension_numbers<[1], [0], [0], [1], [0, 0, 1, 1], [], []>} : vector<16x64xbf16>, vector<64x128xbf16>, vector<16x128xf32> -> vector<16x128xf32>
    %200 = arith.addf %195, %199 : vector<16x128xf32>
    %201 = arith.truncf %185 : vector<16x64xf32> to vector<16x64xbf16>
    %c0_72 = arith.constant 0 : index
    %c2 = arith.constant 2 : index
    %c0_73 = arith.constant 0 : index
    %c0_74 = arith.constant 0 : index
    %202 = vector.load %arg10[%c0_72, %c2, %c0_73, %c0_74] : memref<2x3x64x128xbf16, #tpu.memory_space<vmem>>, vector<1x1x64x128xbf16>
    %203 = vector.shape_cast %202 : vector<1x1x64x128xbf16> to vector<64x128xbf16>
    %cst_75 = arith.constant dense<0.000000e+00> : vector<16x128xf32>
    %204 = tpu.matmul %201, %203, %cst_75 {dimension_numbers = #tpu.dot_dimension_numbers<[1], [0], [0], [1], [0, 0, 1, 1], [], []>} : vector<16x64xbf16>, vector<64x128xbf16>, vector<16x128xf32> -> vector<16x128xf32>
    %205 = arith.addf %200, %204 : vector<16x128xf32>
    %c22 = arith.constant 22 : index
    %c0_76 = arith.constant 0 : index
    %206 = vector.load %arg3[%c22, %c0_76] : memref<34x128xf32, #tpu.memory_space<vmem>>, vector<1x128xf32>
    %207 = vector.broadcast %206 : vector<1x128xf32> to vector<16x128xf32>
    %208 = arith.addf %205, %207 : vector<16x128xf32>
    %cst_77 = arith.constant 0.000000e+00 : f32
    %209 = vector.broadcast %cst_77 : f32 to vector<16x128xf32>
    %210 = arith.maximumf %208, %209 : vector<16x128xf32>
    %c1_i32_78 = arith.constant 1 : i32
    %211 = tpu.dynamic_rotate %210 by %c1_i32_78 dim 0 : vector<16x128xf32>, i32 -> vector<16x128xf32>
    %212 = vector.broadcast %6 : vector<16x1xf32> to vector<16x128xf32>
    %213 = arith.mulf %211, %212 : vector<16x128xf32>
    %c2_i32_79 = arith.constant 2 : i32
    %214 = tpu.dynamic_rotate %210 by %c2_i32_79 dim 0 : vector<16x128xf32>, i32 -> vector<16x128xf32>
    %215 = vector.broadcast %10 : vector<16x1xf32> to vector<16x128xf32>
    %216 = arith.mulf %214, %215 : vector<16x128xf32>
    %217 = arith.truncf %216 : vector<16x128xf32> to vector<16x128xbf16>
    %c0_80 = arith.constant 0 : index
    %c0_81 = arith.constant 0 : index
    %c0_82 = arith.constant 0 : index
    %c0_83 = arith.constant 0 : index
    %218 = vector.load %arg11[%c0_80, %c0_81, %c0_82, %c0_83] : memref<2x3x128x64xbf16, #tpu.memory_space<vmem>>, vector<1x1x128x64xbf16>
    %219 = vector.shape_cast %218 : vector<1x1x128x64xbf16> to vector<128x64xbf16>
    %cst_84 = arith.constant dense<0.000000e+00> : vector<16x64xf32>
    %220 = tpu.matmul %217, %219, %cst_84 {dimension_numbers = #tpu.dot_dimension_numbers<[1], [0], [0], [1], [0, 0, 1, 1], [], []>} : vector<16x128xbf16>, vector<128x64xbf16>, vector<16x64xf32> -> vector<16x64xf32>
    %221 = arith.truncf %213 : vector<16x128xf32> to vector<16x128xbf16>
    %c0_85 = arith.constant 0 : index
    %c1_86 = arith.constant 1 : index
    %c0_87 = arith.constant 0 : index
    %c0_88 = arith.constant 0 : index
    %222 = vector.load %arg11[%c0_85, %c1_86, %c0_87, %c0_88] : memref<2x3x128x64xbf16, #tpu.memory_space<vmem>>, vector<1x1x128x64xbf16>
    %223 = vector.shape_cast %222 : vector<1x1x128x64xbf16> to vector<128x64xbf16>
    %cst_89 = arith.constant dense<0.000000e+00> : vector<16x64xf32>
    %224 = tpu.matmul %221, %223, %cst_89 {dimension_numbers = #tpu.dot_dimension_numbers<[1], [0], [0], [1], [0, 0, 1, 1], [], []>} : vector<16x128xbf16>, vector<128x64xbf16>, vector<16x64xf32> -> vector<16x64xf32>
    %225 = arith.addf %220, %224 : vector<16x64xf32>
    %226 = arith.truncf %210 : vector<16x128xf32> to vector<16x128xbf16>
    %c0_90 = arith.constant 0 : index
    %c2_91 = arith.constant 2 : index
    %c0_92 = arith.constant 0 : index
    %c0_93 = arith.constant 0 : index
    %227 = vector.load %arg11[%c0_90, %c2_91, %c0_92, %c0_93] : memref<2x3x128x64xbf16, #tpu.memory_space<vmem>>, vector<1x1x128x64xbf16>
    %228 = vector.shape_cast %227 : vector<1x1x128x64xbf16> to vector<128x64xbf16>
    %cst_94 = arith.constant dense<0.000000e+00> : vector<16x64xf32>
    %229 = tpu.matmul %226, %228, %cst_94 {dimension_numbers = #tpu.dot_dimension_numbers<[1], [0], [0], [1], [0, 0, 1, 1], [], []>} : vector<16x128xbf16>, vector<128x64xbf16>, vector<16x64xf32> -> vector<16x64xf32>
    %230 = arith.addf %225, %229 : vector<16x64xf32>
    %c23 = arith.constant 23 : index
    %c0_95 = arith.constant 0 : index
    %231 = vector.load %arg3[%c23, %c0_95] : memref<34x128xf32, #tpu.memory_space<vmem>>, vector<1x64xf32>
    %232 = vector.broadcast %231 : vector<1x64xf32> to vector<16x64xf32>
    %233 = arith.addf %230, %232 : vector<16x64xf32>
    %234 = arith.addf %162, %233 : vector<16x64xf32>
    %c24 = arith.constant 24 : index
    %c0_96 = arith.constant 0 : index
    %235 = vector.load %arg3[%c24, %c0_96] : memref<34x128xf32, #tpu.memory_space<vmem>>, vector<1x64xf32>
    %c25 = arith.constant 25 : index
    %c0_97 = arith.constant 0 : index
    %236 = vector.load %arg3[%c25, %c0_97] : memref<34x128xf32, #tpu.memory_space<vmem>>, vector<1x64xf32>
    %cst_98 = arith.constant dense<0.000000e+00> : vector<16xf32>
    %237 = vector.multi_reduction <add>, %234, %cst_98 [1] : vector<16x64xf32> to vector<16xf32>
    %238 = vector.shape_cast %237 : vector<16xf32> to vector<16x1xf32>
    %cst_99 = arith.constant 6.400000e+01 : f32
    %239 = vector.broadcast %cst_99 : f32 to vector<16x1xf32>
    %240 = arith.divf %238, %239 : vector<16x1xf32>
    %241 = vector.broadcast %240 : vector<16x1xf32> to vector<16x64xf32>
    %242 = arith.subf %234, %241 : vector<16x64xf32>
    %243 = arith.mulf %242, %242 : vector<16x64xf32>
    %cst_100 = arith.constant dense<0.000000e+00> : vector<16xf32>
    %244 = vector.multi_reduction <add>, %243, %cst_100 [1] : vector<16x64xf32> to vector<16xf32>
    %245 = vector.shape_cast %244 : vector<16xf32> to vector<16x1xf32>
    %cst_101 = arith.constant 0.0158730168 : f32
    %246 = vector.broadcast %cst_101 : f32 to vector<16x1xf32>
    %247 = arith.mulf %245, %246 : vector<16x1xf32>
    %248 = math.sqrt %247 : vector<16x1xf32>
    %cst_102 = arith.constant 9.99999997E-7 : f32
    %249 = vector.broadcast %cst_102 : f32 to vector<16x1xf32>
    %250 = arith.addf %248, %249 : vector<16x1xf32>
    %251 = tpu.reciprocal %250 {approx = true} : vector<16x1xf32> -> vector<16x1xf32>
    %252 = vector.broadcast %251 : vector<16x1xf32> to vector<16x64xf32>
    %253 = arith.mulf %242, %252 : vector<16x64xf32>
    %254 = vector.broadcast %235 : vector<1x64xf32> to vector<16x64xf32>
    %255 = arith.mulf %254, %253 : vector<16x64xf32>
    %256 = vector.broadcast %236 : vector<1x64xf32> to vector<16x64xf32>
    %257 = arith.addf %255, %256 : vector<16x64xf32>
    %258 = arith.truncf %257 : vector<16x64xf32> to vector<16x64xbf16>
    %c1_103 = arith.constant 1 : index
    %c0_104 = arith.constant 0 : index
    %c0_105 = arith.constant 0 : index
    %259 = vector.load %arg5[%c1_103, %c0_104, %c0_105] : memref<2x64x192xbf16, #tpu.memory_space<vmem>>, vector<1x64x192xbf16>
    %260 = vector.shape_cast %259 : vector<1x64x192xbf16> to vector<64x192xbf16>
    %cst_106 = arith.constant dense<0.000000e+00> : vector<16x192xf32>
    %261 = tpu.matmul %258, %260, %cst_106 {dimension_numbers = #tpu.dot_dimension_numbers<[1], [0], [0], [1], [0, 0, 1, 1], [], []>} : vector<16x64xbf16>, vector<64x192xbf16>, vector<16x192xf32> -> vector<16x192xf32>
    %262 = vector.extract_strided_slice %261 {offsets = [0, 0], sizes = [16, 64], strides = [1, 1]} : vector<16x192xf32> to vector<16x64xf32>
    %cst_107 = arith.constant 2.500000e-01 : f32
    %263 = vector.broadcast %cst_107 : f32 to vector<16x64xf32>
    %264 = arith.mulf %262, %263 : vector<16x64xf32>
    %265 = vector.extract_strided_slice %261 {offsets = [0, 64], sizes = [16, 64], strides = [1, 1]} : vector<16x192xf32> to vector<16x64xf32>
    %266 = arith.truncf %265 : vector<16x64xf32> to vector<16x64xbf16>
    %267 = vector.extract_strided_slice %261 {offsets = [0, 128], sizes = [16, 64], strides = [1, 1]} : vector<16x192xf32> to vector<16x64xf32>
    %268 = arith.truncf %267 : vector<16x64xf32> to vector<16x64xbf16>
    %c1_108 = arith.constant 1 : index
    %c0_109 = arith.constant 0 : index
    %c0_110 = arith.constant 0 : index
    %269 = vector.load %arg6[%c1_108, %c0_109, %c0_110] : memref<2x64x64xbf16, #tpu.memory_space<vmem>>, vector<1x64x64xbf16>
    %270 = vector.shape_cast %269 : vector<1x64x64xbf16> to vector<64x64xbf16>
    %271 = tpu.concatenate %264, %264, %264, %264 in 0 : vector<16x64xf32>, vector<16x64xf32>, vector<16x64xf32>, vector<16x64xf32> -> vector<64x64xf32>
    %272 = arith.mulf %271, %19 : vector<64x64xf32>
    %273 = arith.truncf %272 : vector<64x64xf32> to vector<64x64xbf16>
    %cst_111 = arith.constant dense<0.000000e+00> : vector<64x16xf32>
    %274 = tpu.matmul %273, %266, %cst_111 {dimension_numbers = #tpu.dot_dimension_numbers<[1], [1], [0], [0], [0, 0, 1, 0], [], []>} : vector<64x64xbf16>, vector<16x64xbf16>, vector<64x16xf32> -> vector<64x16xf32>
    %275 = arith.addf %274, %22 : vector<64x16xf32>
    %cst_112 = arith.constant dense<0xFF800000> : vector<64xf32>
    %276 = vector.multi_reduction <maximumf>, %275, %cst_112 [1] : vector<64x16xf32> to vector<64xf32>
    %277 = vector.shape_cast %276 : vector<64xf32> to vector<64x1xf32>
    %278 = vector.broadcast %277 : vector<64x1xf32> to vector<64x16xf32>
    %279 = arith.subf %275, %278 : vector<64x16xf32>
    %280 = math.exp %279 : vector<64x16xf32>
    %cst_113 = arith.constant dense<0.000000e+00> : vector<64xf32>
    %281 = vector.multi_reduction <add>, %280, %cst_113 [1] : vector<64x16xf32> to vector<64xf32>
    %282 = vector.shape_cast %281 : vector<64xf32> to vector<64x1xf32>
    %283 = tpu.reciprocal %282 {approx = true} : vector<64x1xf32> -> vector<64x1xf32>
    %284 = vector.broadcast %283 : vector<64x1xf32> to vector<64x16xf32>
    %285 = arith.mulf %280, %284 : vector<64x16xf32>
    %286 = arith.truncf %285 : vector<64x16xf32> to vector<64x16xbf16>
    %cst_114 = arith.constant dense<0.000000e+00> : vector<64x64xf32>
    %287 = tpu.matmul %286, %268, %cst_114 {dimension_numbers = #tpu.dot_dimension_numbers<[1], [0], [0], [1], [0, 0, 1, 1], [], []>} : vector<64x16xbf16>, vector<16x64xbf16>, vector<64x64xf32> -> vector<64x64xf32>
    %288 = arith.mulf %287, %19 : vector<64x64xf32>
    %289 = vector.extract_strided_slice %288 {offsets = [0, 0], sizes = [16, 64], strides = [1, 1]} : vector<64x64xf32> to vector<16x64xf32>
    %290 = vector.extract_strided_slice %288 {offsets = [16, 0], sizes = [16, 64], strides = [1, 1]} : vector<64x64xf32> to vector<16x64xf32>
    %291 = arith.addf %289, %290 : vector<16x64xf32>
    %292 = vector.extract_strided_slice %288 {offsets = [32, 0], sizes = [16, 64], strides = [1, 1]} : vector<64x64xf32> to vector<16x64xf32>
    %293 = arith.addf %291, %292 : vector<16x64xf32>
    %294 = vector.extract_strided_slice %288 {offsets = [48, 0], sizes = [16, 64], strides = [1, 1]} : vector<64x64xf32> to vector<16x64xf32>
    %295 = arith.addf %293, %294 : vector<16x64xf32>
    %296 = arith.truncf %295 : vector<16x64xf32> to vector<16x64xbf16>
    %cst_115 = arith.constant dense<0.000000e+00> : vector<16x64xf32>
    %297 = tpu.matmul %296, %270, %cst_115 {dimension_numbers = #tpu.dot_dimension_numbers<[1], [0], [0], [1], [0, 0, 1, 1], [], []>} : vector<16x64xbf16>, vector<64x64xbf16>, vector<16x64xf32> -> vector<16x64xf32>
    %298 = arith.addf %234, %297 : vector<16x64xf32>
    %c26 = arith.constant 26 : index
    %c0_116 = arith.constant 0 : index
    %299 = vector.load %arg3[%c26, %c0_116] : memref<34x128xf32, #tpu.memory_space<vmem>>, vector<1x64xf32>
    %c27 = arith.constant 27 : index
    %c0_117 = arith.constant 0 : index
    %300 = vector.load %arg3[%c27, %c0_117] : memref<34x128xf32, #tpu.memory_space<vmem>>, vector<1x64xf32>
    %cst_118 = arith.constant dense<0.000000e+00> : vector<16xf32>
    %301 = vector.multi_reduction <add>, %298, %cst_118 [1] : vector<16x64xf32> to vector<16xf32>
    %302 = vector.shape_cast %301 : vector<16xf32> to vector<16x1xf32>
    %cst_119 = arith.constant 6.400000e+01 : f32
    %303 = vector.broadcast %cst_119 : f32 to vector<16x1xf32>
    %304 = arith.divf %302, %303 : vector<16x1xf32>
    %305 = vector.broadcast %304 : vector<16x1xf32> to vector<16x64xf32>
    %306 = arith.subf %298, %305 : vector<16x64xf32>
    %307 = arith.mulf %306, %306 : vector<16x64xf32>
    %cst_120 = arith.constant dense<0.000000e+00> : vector<16xf32>
    %308 = vector.multi_reduction <add>, %307, %cst_120 [1] : vector<16x64xf32> to vector<16xf32>
    %309 = vector.shape_cast %308 : vector<16xf32> to vector<16x1xf32>
    %cst_121 = arith.constant 0.0158730168 : f32
    %310 = vector.broadcast %cst_121 : f32 to vector<16x1xf32>
    %311 = arith.mulf %309, %310 : vector<16x1xf32>
    %312 = math.sqrt %311 : vector<16x1xf32>
    %cst_122 = arith.constant 9.99999997E-7 : f32
    %313 = vector.broadcast %cst_122 : f32 to vector<16x1xf32>
    %314 = arith.addf %312, %313 : vector<16x1xf32>
    %315 = tpu.reciprocal %314 {approx = true} : vector<16x1xf32> -> vector<16x1xf32>
    %316 = vector.broadcast %315 : vector<16x1xf32> to vector<16x64xf32>
    %317 = arith.mulf %306, %316 : vector<16x64xf32>
    %318 = vector.broadcast %299 : vector<1x64xf32> to vector<16x64xf32>
    %319 = arith.mulf %318, %317 : vector<16x64xf32>
    %320 = vector.broadcast %300 : vector<1x64xf32> to vector<16x64xf32>
    %321 = arith.addf %319, %320 : vector<16x64xf32>
    %322 = arith.truncf %321 : vector<16x64xf32> to vector<16x64xbf16>
    %c1_123 = arith.constant 1 : index
    %c0_124 = arith.constant 0 : index
    %c0_125 = arith.constant 0 : index
    %323 = vector.load %arg7[%c1_123, %c0_124, %c0_125] : memref<2x64x64xbf16, #tpu.memory_space<vmem>>, vector<1x64x64xbf16>
    %324 = vector.shape_cast %323 : vector<1x64x64xbf16> to vector<64x64xbf16>
    %cst_126 = arith.constant dense<0.000000e+00> : vector<16x64xf32>
    %325 = tpu.matmul %322, %324, %cst_126 {dimension_numbers = #tpu.dot_dimension_numbers<[1], [0], [0], [1], [0, 0, 1, 1], [], []>} : vector<16x64xbf16>, vector<64x64xbf16>, vector<16x64xf32> -> vector<16x64xf32>
    %cst_127 = arith.constant 2.500000e-01 : f32
    %326 = vector.broadcast %cst_127 : f32 to vector<16x64xf32>
    %327 = arith.mulf %325, %326 : vector<16x64xf32>
    %c1_128 = arith.constant 1 : index
    %c0_129 = arith.constant 0 : index
    %c0_130 = arith.constant 0 : index
    %328 = vector.load %arg8[%c1_128, %c0_129, %c0_130] : memref<2x64x128xbf16, #tpu.memory_space<vmem>>, vector<1x64x128xbf16>
    %329 = vector.shape_cast %328 : vector<1x64x128xbf16> to vector<64x128xbf16>
    %cst_131 = arith.constant dense<0.000000e+00> : vector<20x128xf32>
    %330 = tpu.matmul %26, %329, %cst_131 {dimension_numbers = #tpu.dot_dimension_numbers<[1], [0], [0], [1], [0, 0, 1, 1], [], []>} : vector<20x64xbf16>, vector<64x128xbf16>, vector<20x128xf32> -> vector<20x128xf32>
    %331 = vector.extract_strided_slice %330 {offsets = [0, 0], sizes = [20, 64], strides = [1, 1]} : vector<20x128xf32> to vector<20x64xf32>
    %332 = arith.truncf %331 : vector<20x64xf32> to vector<20x64xbf16>
    %333 = vector.extract_strided_slice %330 {offsets = [0, 64], sizes = [20, 64], strides = [1, 1]} : vector<20x128xf32> to vector<20x64xf32>
    %334 = arith.truncf %333 : vector<20x64xf32> to vector<20x64xbf16>
    %c1_132 = arith.constant 1 : index
    %c0_133 = arith.constant 0 : index
    %c0_134 = arith.constant 0 : index
    %335 = vector.load %arg9[%c1_132, %c0_133, %c0_134] : memref<2x64x64xbf16, #tpu.memory_space<vmem>>, vector<1x64x64xbf16>
    %336 = vector.shape_cast %335 : vector<1x64x64xbf16> to vector<64x64xbf16>
    %337 = tpu.concatenate %327, %327, %327, %327 in 0 : vector<16x64xf32>, vector<16x64xf32>, vector<16x64xf32>, vector<16x64xf32> -> vector<64x64xf32>
    %338 = arith.mulf %337, %19 : vector<64x64xf32>
    %339 = arith.truncf %338 : vector<64x64xf32> to vector<64x64xbf16>
    %cst_135 = arith.constant dense<0.000000e+00> : vector<64x20xf32>
    %340 = tpu.matmul %339, %332, %cst_135 {dimension_numbers = #tpu.dot_dimension_numbers<[1], [1], [0], [0], [0, 0, 1, 0], [], []>} : vector<64x64xbf16>, vector<20x64xbf16>, vector<64x20xf32> -> vector<64x20xf32>
    %341 = arith.addf %340, %24 : vector<64x20xf32>
    %cst_136 = arith.constant dense<0xFF800000> : vector<64xf32>
    %342 = vector.multi_reduction <maximumf>, %341, %cst_136 [1] : vector<64x20xf32> to vector<64xf32>
    %343 = vector.shape_cast %342 : vector<64xf32> to vector<64x1xf32>
    %344 = vector.broadcast %343 : vector<64x1xf32> to vector<64x20xf32>
    %345 = arith.subf %341, %344 : vector<64x20xf32>
    %346 = math.exp %345 : vector<64x20xf32>
    %cst_137 = arith.constant dense<0.000000e+00> : vector<64xf32>
    %347 = vector.multi_reduction <add>, %346, %cst_137 [1] : vector<64x20xf32> to vector<64xf32>
    %348 = vector.shape_cast %347 : vector<64xf32> to vector<64x1xf32>
    %349 = tpu.reciprocal %348 {approx = true} : vector<64x1xf32> -> vector<64x1xf32>
    %350 = vector.broadcast %349 : vector<64x1xf32> to vector<64x20xf32>
    %351 = arith.mulf %346, %350 : vector<64x20xf32>
    %352 = arith.truncf %351 : vector<64x20xf32> to vector<64x20xbf16>
    %cst_138 = arith.constant dense<0.000000e+00> : vector<64x64xf32>
    %353 = tpu.matmul %352, %334, %cst_138 {dimension_numbers = #tpu.dot_dimension_numbers<[1], [0], [0], [1], [0, 0, 1, 1], [], []>} : vector<64x20xbf16>, vector<20x64xbf16>, vector<64x64xf32> -> vector<64x64xf32>
    %354 = arith.mulf %353, %19 : vector<64x64xf32>
    %355 = vector.extract_strided_slice %354 {offsets = [0, 0], sizes = [16, 64], strides = [1, 1]} : vector<64x64xf32> to vector<16x64xf32>
    %356 = vector.extract_strided_slice %354 {offsets = [16, 0], sizes = [16, 64], strides = [1, 1]} : vector<64x64xf32> to vector<16x64xf32>
    %357 = arith.addf %355, %356 : vector<16x64xf32>
    %358 = vector.extract_strided_slice %354 {offsets = [32, 0], sizes = [16, 64], strides = [1, 1]} : vector<64x64xf32> to vector<16x64xf32>
    %359 = arith.addf %357, %358 : vector<16x64xf32>
    %360 = vector.extract_strided_slice %354 {offsets = [48, 0], sizes = [16, 64], strides = [1, 1]} : vector<64x64xf32> to vector<16x64xf32>
    %361 = arith.addf %359, %360 : vector<16x64xf32>
    %362 = arith.truncf %361 : vector<16x64xf32> to vector<16x64xbf16>
    %cst_139 = arith.constant dense<0.000000e+00> : vector<16x64xf32>
    %363 = tpu.matmul %362, %336, %cst_139 {dimension_numbers = #tpu.dot_dimension_numbers<[1], [0], [0], [1], [0, 0, 1, 1], [], []>} : vector<16x64xbf16>, vector<64x64xbf16>, vector<16x64xf32> -> vector<16x64xf32>
    %364 = vector.extract_strided_slice %341 {offsets = [0, 0], sizes = [16, 20], strides = [1, 1]} : vector<64x20xf32> to vector<16x20xf32>
    %365 = vector.extract_strided_slice %341 {offsets = [16, 0], sizes = [16, 20], strides = [1, 1]} : vector<64x20xf32> to vector<16x20xf32>
    %366 = arith.addf %364, %365 : vector<16x20xf32>
    %367 = vector.extract_strided_slice %341 {offsets = [32, 0], sizes = [16, 20], strides = [1, 1]} : vector<64x20xf32> to vector<16x20xf32>
    %368 = arith.addf %366, %367 : vector<16x20xf32>
    %369 = vector.extract_strided_slice %341 {offsets = [48, 0], sizes = [16, 20], strides = [1, 1]} : vector<64x20xf32> to vector<16x20xf32>
    %370 = arith.addf %368, %369 : vector<16x20xf32>
    %cst_140 = arith.constant 2.500000e-01 : f32
    %371 = vector.broadcast %cst_140 : f32 to vector<16x20xf32>
    %372 = arith.mulf %370, %371 : vector<16x20xf32>
    %373 = arith.addf %298, %363 : vector<16x64xf32>
    %c28 = arith.constant 28 : index
    %c0_141 = arith.constant 0 : index
    %374 = vector.load %arg3[%c28, %c0_141] : memref<34x128xf32, #tpu.memory_space<vmem>>, vector<1x64xf32>
    %c29 = arith.constant 29 : index
    %c0_142 = arith.constant 0 : index
    %375 = vector.load %arg3[%c29, %c0_142] : memref<34x128xf32, #tpu.memory_space<vmem>>, vector<1x64xf32>
    %cst_143 = arith.constant dense<0.000000e+00> : vector<16xf32>
    %376 = vector.multi_reduction <add>, %373, %cst_143 [1] : vector<16x64xf32> to vector<16xf32>
    %377 = vector.shape_cast %376 : vector<16xf32> to vector<16x1xf32>
    %cst_144 = arith.constant 6.400000e+01 : f32
    %378 = vector.broadcast %cst_144 : f32 to vector<16x1xf32>
    %379 = arith.divf %377, %378 : vector<16x1xf32>
    %380 = vector.broadcast %379 : vector<16x1xf32> to vector<16x64xf32>
    %381 = arith.subf %373, %380 : vector<16x64xf32>
    %382 = arith.mulf %381, %381 : vector<16x64xf32>
    %cst_145 = arith.constant dense<0.000000e+00> : vector<16xf32>
    %383 = vector.multi_reduction <add>, %382, %cst_145 [1] : vector<16x64xf32> to vector<16xf32>
    %384 = vector.shape_cast %383 : vector<16xf32> to vector<16x1xf32>
    %cst_146 = arith.constant 0.0158730168 : f32
    %385 = vector.broadcast %cst_146 : f32 to vector<16x1xf32>
    %386 = arith.mulf %384, %385 : vector<16x1xf32>
    %387 = math.sqrt %386 : vector<16x1xf32>
    %cst_147 = arith.constant 9.99999997E-7 : f32
    %388 = vector.broadcast %cst_147 : f32 to vector<16x1xf32>
    %389 = arith.addf %387, %388 : vector<16x1xf32>
    %390 = tpu.reciprocal %389 {approx = true} : vector<16x1xf32> -> vector<16x1xf32>
    %391 = vector.broadcast %390 : vector<16x1xf32> to vector<16x64xf32>
    %392 = arith.mulf %381, %391 : vector<16x64xf32>
    %393 = vector.broadcast %374 : vector<1x64xf32> to vector<16x64xf32>
    %394 = arith.mulf %393, %392 : vector<16x64xf32>
    %395 = vector.broadcast %375 : vector<1x64xf32> to vector<16x64xf32>
    %396 = arith.addf %394, %395 : vector<16x64xf32>
    %c1_i32_148 = arith.constant 1 : i32
    %397 = tpu.dynamic_rotate %396 by %c1_i32_148 dim 0 : vector<16x64xf32>, i32 -> vector<16x64xf32>
    %398 = vector.broadcast %6 : vector<16x1xf32> to vector<16x64xf32>
    %399 = arith.mulf %397, %398 : vector<16x64xf32>
    %c2_i32_149 = arith.constant 2 : i32
    %400 = tpu.dynamic_rotate %396 by %c2_i32_149 dim 0 : vector<16x64xf32>, i32 -> vector<16x64xf32>
    %401 = vector.broadcast %10 : vector<16x1xf32> to vector<16x64xf32>
    %402 = arith.mulf %400, %401 : vector<16x64xf32>
    %403 = arith.truncf %402 : vector<16x64xf32> to vector<16x64xbf16>
    %c1_150 = arith.constant 1 : index
    %c0_151 = arith.constant 0 : index
    %c0_152 = arith.constant 0 : index
    %c0_153 = arith.constant 0 : index
    %404 = vector.load %arg10[%c1_150, %c0_151, %c0_152, %c0_153] : memref<2x3x64x128xbf16, #tpu.memory_space<vmem>>, vector<1x1x64x128xbf16>
    %405 = vector.shape_cast %404 : vector<1x1x64x128xbf16> to vector<64x128xbf16>
    %cst_154 = arith.constant dense<0.000000e+00> : vector<16x128xf32>
    %406 = tpu.matmul %403, %405, %cst_154 {dimension_numbers = #tpu.dot_dimension_numbers<[1], [0], [0], [1], [0, 0, 1, 1], [], []>} : vector<16x64xbf16>, vector<64x128xbf16>, vector<16x128xf32> -> vector<16x128xf32>
    %407 = arith.truncf %399 : vector<16x64xf32> to vector<16x64xbf16>
    %c1_155 = arith.constant 1 : index
    %c1_156 = arith.constant 1 : index
    %c0_157 = arith.constant 0 : index
    %c0_158 = arith.constant 0 : index
    %408 = vector.load %arg10[%c1_155, %c1_156, %c0_157, %c0_158] : memref<2x3x64x128xbf16, #tpu.memory_space<vmem>>, vector<1x1x64x128xbf16>
    %409 = vector.shape_cast %408 : vector<1x1x64x128xbf16> to vector<64x128xbf16>
    %cst_159 = arith.constant dense<0.000000e+00> : vector<16x128xf32>
    %410 = tpu.matmul %407, %409, %cst_159 {dimension_numbers = #tpu.dot_dimension_numbers<[1], [0], [0], [1], [0, 0, 1, 1], [], []>} : vector<16x64xbf16>, vector<64x128xbf16>, vector<16x128xf32> -> vector<16x128xf32>
    %411 = arith.addf %406, %410 : vector<16x128xf32>
    %412 = arith.truncf %396 : vector<16x64xf32> to vector<16x64xbf16>
    %c1_160 = arith.constant 1 : index
    %c2_161 = arith.constant 2 : index
    %c0_162 = arith.constant 0 : index
    %c0_163 = arith.constant 0 : index
    %413 = vector.load %arg10[%c1_160, %c2_161, %c0_162, %c0_163] : memref<2x3x64x128xbf16, #tpu.memory_space<vmem>>, vector<1x1x64x128xbf16>
    %414 = vector.shape_cast %413 : vector<1x1x64x128xbf16> to vector<64x128xbf16>
    %cst_164 = arith.constant dense<0.000000e+00> : vector<16x128xf32>
    %415 = tpu.matmul %412, %414, %cst_164 {dimension_numbers = #tpu.dot_dimension_numbers<[1], [0], [0], [1], [0, 0, 1, 1], [], []>} : vector<16x64xbf16>, vector<64x128xbf16>, vector<16x128xf32> -> vector<16x128xf32>
    %416 = arith.addf %411, %415 : vector<16x128xf32>
    %c30 = arith.constant 30 : index
    %c0_165 = arith.constant 0 : index
    %417 = vector.load %arg3[%c30, %c0_165] : memref<34x128xf32, #tpu.memory_space<vmem>>, vector<1x128xf32>
    %418 = vector.broadcast %417 : vector<1x128xf32> to vector<16x128xf32>
    %419 = arith.addf %416, %418 : vector<16x128xf32>
    %cst_166 = arith.constant 0.000000e+00 : f32
    %420 = vector.broadcast %cst_166 : f32 to vector<16x128xf32>
    %421 = arith.maximumf %419, %420 : vector<16x128xf32>
    %c1_i32_167 = arith.constant 1 : i32
    %422 = tpu.dynamic_rotate %421 by %c1_i32_167 dim 0 : vector<16x128xf32>, i32 -> vector<16x128xf32>
    %423 = vector.broadcast %6 : vector<16x1xf32> to vector<16x128xf32>
    %424 = arith.mulf %422, %423 : vector<16x128xf32>
    %c2_i32_168 = arith.constant 2 : i32
    %425 = tpu.dynamic_rotate %421 by %c2_i32_168 dim 0 : vector<16x128xf32>, i32 -> vector<16x128xf32>
    %426 = vector.broadcast %10 : vector<16x1xf32> to vector<16x128xf32>
    %427 = arith.mulf %425, %426 : vector<16x128xf32>
    %428 = arith.truncf %427 : vector<16x128xf32> to vector<16x128xbf16>
    %c1_169 = arith.constant 1 : index
    %c0_170 = arith.constant 0 : index
    %c0_171 = arith.constant 0 : index
    %c0_172 = arith.constant 0 : index
    %429 = vector.load %arg11[%c1_169, %c0_170, %c0_171, %c0_172] : memref<2x3x128x64xbf16, #tpu.memory_space<vmem>>, vector<1x1x128x64xbf16>
    %430 = vector.shape_cast %429 : vector<1x1x128x64xbf16> to vector<128x64xbf16>
    %cst_173 = arith.constant dense<0.000000e+00> : vector<16x64xf32>
    %431 = tpu.matmul %428, %430, %cst_173 {dimension_numbers = #tpu.dot_dimension_numbers<[1], [0], [0], [1], [0, 0, 1, 1], [], []>} : vector<16x128xbf16>, vector<128x64xbf16>, vector<16x64xf32> -> vector<16x64xf32>
    %432 = arith.truncf %424 : vector<16x128xf32> to vector<16x128xbf16>
    %c1_174 = arith.constant 1 : index
    %c1_175 = arith.constant 1 : index
    %c0_176 = arith.constant 0 : index
    %c0_177 = arith.constant 0 : index
    %433 = vector.load %arg11[%c1_174, %c1_175, %c0_176, %c0_177] : memref<2x3x128x64xbf16, #tpu.memory_space<vmem>>, vector<1x1x128x64xbf16>
    %434 = vector.shape_cast %433 : vector<1x1x128x64xbf16> to vector<128x64xbf16>
    %cst_178 = arith.constant dense<0.000000e+00> : vector<16x64xf32>
    %435 = tpu.matmul %432, %434, %cst_178 {dimension_numbers = #tpu.dot_dimension_numbers<[1], [0], [0], [1], [0, 0, 1, 1], [], []>} : vector<16x128xbf16>, vector<128x64xbf16>, vector<16x64xf32> -> vector<16x64xf32>
    %436 = arith.addf %431, %435 : vector<16x64xf32>
    %437 = arith.truncf %421 : vector<16x128xf32> to vector<16x128xbf16>
    %c1_179 = arith.constant 1 : index
    %c2_180 = arith.constant 2 : index
    %c0_181 = arith.constant 0 : index
    %c0_182 = arith.constant 0 : index
    %438 = vector.load %arg11[%c1_179, %c2_180, %c0_181, %c0_182] : memref<2x3x128x64xbf16, #tpu.memory_space<vmem>>, vector<1x1x128x64xbf16>
    %439 = vector.shape_cast %438 : vector<1x1x128x64xbf16> to vector<128x64xbf16>
    %cst_183 = arith.constant dense<0.000000e+00> : vector<16x64xf32>
    %440 = tpu.matmul %437, %439, %cst_183 {dimension_numbers = #tpu.dot_dimension_numbers<[1], [0], [0], [1], [0, 0, 1, 1], [], []>} : vector<16x128xbf16>, vector<128x64xbf16>, vector<16x64xf32> -> vector<16x64xf32>
    %441 = arith.addf %436, %440 : vector<16x64xf32>
    %c31 = arith.constant 31 : index
    %c0_184 = arith.constant 0 : index
    %442 = vector.load %arg3[%c31, %c0_184] : memref<34x128xf32, #tpu.memory_space<vmem>>, vector<1x64xf32>
    %443 = vector.broadcast %442 : vector<1x64xf32> to vector<16x64xf32>
    %444 = arith.addf %441, %443 : vector<16x64xf32>
    %445 = arith.addf %373, %444 : vector<16x64xf32>
    %c32 = arith.constant 32 : index
    %c0_185 = arith.constant 0 : index
    %446 = vector.load %arg3[%c32, %c0_185] : memref<34x128xf32, #tpu.memory_space<vmem>>, vector<1x64xf32>
    %c33 = arith.constant 33 : index
    %c0_186 = arith.constant 0 : index
    %447 = vector.load %arg3[%c33, %c0_186] : memref<34x128xf32, #tpu.memory_space<vmem>>, vector<1x64xf32>
    %cst_187 = arith.constant dense<0.000000e+00> : vector<16xf32>
    %448 = vector.multi_reduction <add>, %445, %cst_187 [1] : vector<16x64xf32> to vector<16xf32>
    %449 = vector.shape_cast %448 : vector<16xf32> to vector<16x1xf32>
    %cst_188 = arith.constant 6.400000e+01 : f32
    %450 = vector.broadcast %cst_188 : f32 to vector<16x1xf32>
    %451 = arith.divf %449, %450 : vector<16x1xf32>
    %452 = vector.broadcast %451 : vector<16x1xf32> to vector<16x64xf32>
    %453 = arith.subf %445, %452 : vector<16x64xf32>
    %454 = arith.mulf %453, %453 : vector<16x64xf32>
    %cst_189 = arith.constant dense<0.000000e+00> : vector<16xf32>
    %455 = vector.multi_reduction <add>, %454, %cst_189 [1] : vector<16x64xf32> to vector<16xf32>
    %456 = vector.shape_cast %455 : vector<16xf32> to vector<16x1xf32>
    %cst_190 = arith.constant 0.0158730168 : f32
    %457 = vector.broadcast %cst_190 : f32 to vector<16x1xf32>
    %458 = arith.mulf %456, %457 : vector<16x1xf32>
    %459 = math.sqrt %458 : vector<16x1xf32>
    %cst_191 = arith.constant 9.99999997E-7 : f32
    %460 = vector.broadcast %cst_191 : f32 to vector<16x1xf32>
    %461 = arith.addf %459, %460 : vector<16x1xf32>
    %462 = tpu.reciprocal %461 {approx = true} : vector<16x1xf32> -> vector<16x1xf32>
    %463 = vector.broadcast %462 : vector<16x1xf32> to vector<16x64xf32>
    %464 = arith.mulf %453, %463 : vector<16x64xf32>
    %465 = vector.broadcast %446 : vector<1x64xf32> to vector<16x64xf32>
    %466 = arith.mulf %465, %464 : vector<16x64xf32>
    %467 = vector.broadcast %447 : vector<1x64xf32> to vector<16x64xf32>
    %468 = arith.addf %466, %467 : vector<16x64xf32>
    %cst_192 = arith.constant 0.000000e+00 : f32
    %469 = vector.broadcast %cst_192 : f32 to vector<16x64xf32>
    %470 = tpu.concatenate %468, %469 in 1 : vector<16x64xf32>, vector<16x64xf32> -> vector<16x128xf32>
    %c0_193 = arith.constant 0 : index
    %c0_194 = arith.constant 0 : index
    %471 = vector.load %arg12[%c0_193, %c0_194] : memref<16x128xf32, #tpu.memory_space<vmem>>, vector<16x128xf32>
    tpu.vector_store %arg12[%c0_193, %c0_194], %470 {strides = array<i32>} : memref<16x128xf32, #tpu.memory_space<vmem>>, vector<16x128xf32>,
    %cst_195 = arith.constant 0.000000e+00 : f32
    %472 = vector.broadcast %cst_195 : f32 to vector<16x108xf32>
    %473 = tpu.concatenate %372, %472 in 1 : vector<16x20xf32>, vector<16x108xf32> -> vector<16x128xf32>
    %c0_196 = arith.constant 0 : index
    %c0_197 = arith.constant 0 : index
    %474 = vector.load %arg13[%c0_196, %c0_197] : memref<16x128xf32, #tpu.memory_space<vmem>>, vector<16x128xf32>
    tpu.vector_store %arg13[%c0_196, %c0_197], %473 {strides = array<i32>} : memref<16x128xf32, #tpu.memory_space<vmem>>, vector<16x128xf32>,
    return
  }
}

</mosaic_0001>

<llo_original>
// kernel: tpu_custom_call.1
$region0: #{tpu_custom_call.1}
  #allocation0 [shape = 'u32[]', space=smem, size = 0x4, offset = 0x4, fixed_abs, tag = 'smem constant byte address 0x4 - core index']
  #allocation1 [shape = 'u32[72,128]{1,0:T(1,128)}', space=vmem, size = 0x9000, scoped, tag = 'internal scratch']
  %s0 = inlined_call_operand.hbm [shape: f32[16,48], index: 0, kind: input, shape index: {}]
  %s1 = inlined_call_operand.hbm [shape: f32[20,64], index: 1, kind: input, shape index: {}]
  %s2 = inlined_call_operand.hbm [shape: f32[16,36], index: 2, kind: input, shape index: {}]
  %s3 = inlined_call_operand.hbm [shape: f32[34,128], index: 3, kind: input, shape index: {}]
  %s4 = inlined_call_operand.hbm [shape: bf16[48,64], index: 4, kind: input, shape index: {}]
  %s5 = inlined_call_operand.vmem [shape: bf16[2,64,192], index: 5, kind: input, shape index: {}]
  %s6 = inlined_call_operand.vmem [shape: bf16[2,64,64], index: 6, kind: input, shape index: {}]
  %s7 = inlined_call_operand.vmem [shape: bf16[2,64,64], index: 7, kind: input, shape index: {}]
  %s8 = inlined_call_operand.vmem [shape: bf16[2,64,128], index: 8, kind: input, shape index: {}]
  %s9 = inlined_call_operand.vmem [shape: bf16[2,64,64], index: 9, kind: input, shape index: {}]
  %s10 = inlined_call_operand.vmem [shape: bf16[2,3,64,128], index: 10, kind: input, shape index: {}]
  %s11 = inlined_call_operand.vmem [shape: bf16[2,3,128,64], index: 11, kind: input, shape index: {}]
  %s12 = inlined_call_operand.hbm [shape: f32[16,128], index: 12, kind: output, shape index: {0}]
  %s13 = inlined_call_operand.hbm [shape: f32[16,128], index: 13, kind: output, shape index: {1}]
  %14 = xla_tuple %s12, %s13
  %s15 = sld [smem:[#allocation0]]
  $region86: #{tpu_custom_call.1} parent=0
    _
  %s17 = ssub.s32 1, %s15
  %s18 = scalar_select 0, %s17, %s15
  $region1: #{tpu_custom_call.1} parent=0
    #allocation2 [shape = 'u8[8192]{0}', space=vmem, size = 0x2000, scoped, tag = 'input window, operand 0, single buffered']
    #allocation3 [shape = 's32[1]{0}', space=sflag, size = 0x4, scoped, tag = 'scoped memory for tpu_custom_call.1']
    #allocation4 [shape = 's32[1]{0}', space=sflag, size = 0x4, scoped, tag = 'scoped memory for tpu_custom_call.1']
    #allocation5 [shape = 'u8[12288]{0}', space=vmem, size = 0x3000, scoped, tag = 'input window, operand 1, single buffered']
    #allocation6 [shape = 's32[1]{0}', space=sflag, size = 0x4, scoped, tag = 'scoped memory for tpu_custom_call.1']
    #allocation7 [shape = 'u8[8192]{0}', space=vmem, size = 0x2000, scoped, tag = 'input window, operand 2, single buffered']
    #allocation8 [shape = 'u8[20480]{0}', space=vmem, size = 0x5000, scoped, tag = 'input window, operand 3, single buffered']
    #allocation9 [shape = 's32[1]{0}', space=sflag, size = 0x4, scoped, tag = 'scoped memory for tpu_custom_call.1']
    #allocation10 [shape = 'u8[12288]{0}', space=vmem, size = 0x3000, scoped, tag = 'input window, operand 4, single buffered']
    #allocation11 [shape = 'u8[8192]{0}', space=vmem, size = 0x2000, scoped, tag = 'output window, operand 0, single buffered']
    #allocation12 [shape = 'u8[8192]{0}', space=vmem, size = 0x2000, scoped, tag = 'output window, operand 1, single buffered']
    #allocation13 [shape = 's32[1]{0}', space=sflag, size = 0x4, scoped, tag = 'scoped memory for tpu_custom_call.1']
    %19 = vsyncpa [#allocation3], 0
    %20 = vsyncpa [#allocation6], 0
    %21 = vsyncpa [#allocation9], 0
    %22 = vsyncpa [#allocation4], 0
    %23 = vsyncpa [#allocation13], 0
    // Predicated region
    $region2: #{tpu_custom_call.1} parent=1 // pred_check
      _
    $region3: #{tpu_custom_call.1} parent=1 // pred_check_branch
      %25 = sbr.rel (0) target = $region5
    $region4: #{tpu_custom_call.1} parent=1 // pred_region
      %27 = vsyncadd [#allocation3], 0
      %s28 = sshll.u32 %s0, 4
      %s29 = int_to_ptr.hbm [resolvable:$true] %s28
      %s30 = sshll.u32 [#allocation2], 4
      %s31 = int_to_ptr.vmem [resolvable:$true] %s30
      %36 = dma.hbm_to_vmem [thread:$0]  %s29, 256, %s31, [#allocation3], 128, 128, 8
    $region5: #{tpu_custom_call.1} parent=1 // pred_fallthru
      _
    // Predicated region
    $region6: #{tpu_custom_call.1} parent=1 // pred_check
      _
    $region7: #{tpu_custom_call.1} parent=1 // pred_check_branch
      %38 = sbr.rel (0) target = $region9
    $region8: #{tpu_custom_call.1} parent=1 // pred_region
      %40 = vsyncadd [#allocation6], 0
      %s41 = sshll.u32 %s1, 4
      %s42 = int_to_ptr.hbm [resolvable:$true] %s41
      %s43 = sshll.u32 [#allocation5], 4
      %s44 = int_to_ptr.vmem [resolvable:$true] %s43
      %49 = dma.hbm_to_vmem [thread:$0]  %s42, 384, %s44, [#allocation6], 128, 128, 8
    $region9: #{tpu_custom_call.1} parent=1 // pred_fallthru
      _
    // Predicated region
    $region10: #{tpu_custom_call.1} parent=1 // pred_check
      _
    $region11: #{tpu_custom_call.1} parent=1 // pred_check_branch
      %51 = sbr.rel (0) target = $region13
    $region12: #{tpu_custom_call.1} parent=1 // pred_region
      %53 = vsyncadd [#allocation6], 0
      %s54 = sshll.u32 %s2, 4
      %s55 = int_to_ptr.hbm [resolvable:$true] %s54
      %s56 = sshll.u32 [#allocation7], 4
      %s57 = int_to_ptr.vmem [resolvable:$true] %s56
      %62 = dma.hbm_to_vmem [thread:$0]  %s55, 256, %s57, [#allocation6], 128, 128, 8
    $region13: #{tpu_custom_call.1} parent=1 // pred_fallthru
      _
    // Predicated region
    $region14: #{tpu_custom_call.1} parent=1 // pred_check
      _
    $region15: #{tpu_custom_call.1} parent=1 // pred_check_branch
      %64 = sbr.rel (0) target = $region17
    $region16: #{tpu_custom_call.1} parent=1 // pred_region
      %66 = vsyncadd [#allocation9], 0
      %s67 = sshll.u32 %s3, 4
      %s68 = int_to_ptr.hbm [resolvable:$true] %s67
      %s69 = sshll.u32 [#allocation8], 4
      %s70 = int_to_ptr.vmem [resolvable:$true] %s69
      %75 = dma.hbm_to_vmem [thread:$0]  %s68, 640, %s70, [#allocation9], 128, 128, 8
    $region17: #{tpu_custom_call.1} parent=1 // pred_fallthru
      _
    // Predicated region
    $region18: #{tpu_custom_call.1} parent=1 // pred_check
      _
    $region19: #{tpu_custom_call.1} parent=1 // pred_check_branch
      %77 = sbr.rel (0) target = $region21
    $region20: #{tpu_custom_call.1} parent=1 // pred_region
      %79 = vsyncadd [#allocation9], 0
      %s80 = sshll.u32 %s4, 4
      %s81 = int_to_ptr.hbm [resolvable:$true] %s80
      %s82 = sshll.u32 [#allocation10], 4
      %s83 = int_to_ptr.vmem [resolvable:$true] %s82
      %88 = dma.hbm_to_vmem [thread:$0]  %s81, 384, %s83, [#allocation9], 64, 64, 4
    $region21: #{tpu_custom_call.1} parent=1 // pred_fallthru
      _
    // Predicated region
    $region22: #{tpu_custom_call.1} parent=1 // pred_check
      _
    $region23: #{tpu_custom_call.1} parent=1 // pred_check_branch
      %90 = sbr.rel (0) target = $region25
    $region24: #{tpu_custom_call.1} parent=1 // pred_region
      _
    $region25: #{tpu_custom_call.1} parent=1 // pred_fallthru
      _
    // Predicated region
    $region26: #{tpu_custom_call.1} parent=1 // pred_check
      _
    $region27: #{tpu_custom_call.1} parent=1 // pred_check_branch
      %92 = sbr.rel (0) target = $region29
    $region28: #{tpu_custom_call.1} parent=1 // pred_region
      _
    $region29: #{tpu_custom_call.1} parent=1 // pred_fallthru
      _
    // Predicated region
    $region30: #{tpu_custom_call.1} parent=1 // pred_check
      _
    $region31: #{tpu_custom_call.1} parent=1 // pred_check_branch
      %94 = sbr.rel (0) target = $region33
    $region32: #{tpu_custom_call.1} parent=1 // pred_region
      _
    $region33: #{tpu_custom_call.1} parent=1 // pred_fallthru
      _
    // Predicated region
    $region34: #{tpu_custom_call.1} parent=1 // pred_check
      _
    $region35: #{tpu_custom_call.1} parent=1 // pred_check_branch
      %96 = sbr.rel (0) target = $region37
    $region36: #{tpu_custom_call.1} parent=1 // pred_region
      _
    $region37: #{tpu_custom_call.1} parent=1 // pred_fallthru
      _
    // Predicated region
    $region38: #{tpu_custom_call.1} parent=1 // pred_check
      _
    $region39: #{tpu_custom_call.1} parent=1 // pred_check_branch
      %98 = sbr.rel (0) target = $region41
    $region40: #{tpu_custom_call.1} parent=1 // pred_region
      _
    $region41: #{tpu_custom_call.1} parent=1 // pred_fallthru
      _
    // Predicated region
    $region42: #{tpu_custom_call.1} parent=1 // pred_check
      _
    $region43: #{tpu_custom_call.1} parent=1 // pred_check_branch
      %100 = sbr.rel (0) target = $region45
    $region44: #{tpu_custom_call.1} parent=1 // pred_region
      _
    $region45: #{tpu_custom_call.1} parent=1 // pred_fallthru
      _
    // Predicated region
    $region46: #{tpu_custom_call.1} parent=1 // pred_check
      _
    $region47: #{tpu_custom_call.1} parent=1 // pred_check_branch
      %102 = sbr.rel (0) target = $region49
    $region48: #{tpu_custom_call.1} parent=1 // pred_region
      _
    $region49: #{tpu_custom_call.1} parent=1 // pred_fallthru
      _
    // Predicated region
    $region50: #{tpu_custom_call.1} parent=1 // pred_check
      _
    $region51: #{tpu_custom_call.1} parent=1 // pred_check_branch
      %104 = sbr.rel (0) target = $region53
    $region52: #{tpu_custom_call.1} parent=1 // pred_region
      %106 = dma.done [#allocation3], 256
    $region53: #{tpu_custom_call.1} parent=1 // pred_fallthru
      _
    // Predicated region
    $region54: #{tpu_custom_call.1} parent=1 // pred_check
      _
    $region55: #{tpu_custom_call.1} parent=1 // pred_check_branch
      %108 = sbr.rel (0) target = $region57
    $region56: #{tpu_custom_call.1} parent=1 // pred_region
      %110 = dma.done [#allocation6], 384
    $region57: #{tpu_custom_call.1} parent=1 // pred_fallthru
      _
    // Predicated region
    $region58: #{tpu_custom_call.1} parent=1 // pred_check
      _
    $region59: #{tpu_custom_call.1} parent=1 // pred_check_branch
      %112 = sbr.rel (0) target = $region61
    $region60: #{tpu_custom_call.1} parent=1 // pred_region
      %114 = dma.done [#allocation6], 256
    $region61: #{tpu_custom_call.1} parent=1 // pred_fallthru
      _
    // Predicated region
    $region62: #{tpu_custom_call.1} parent=1 // pred_check
      _
    $region63: #{tpu_custom_call.1} parent=1 // pred_check_branch
      %116 = sbr.rel (0) target = $region65
    $region64: #{tpu_custom_call.1} parent=1 // pred_region
      %118 = dma.done [#allocation9], 640
    $region65: #{tpu_custom_call.1} parent=1 // pred_fallthru
      _
    // Predicated region
    $region66: #{tpu_custom_call.1} parent=1 // pred_check
      _
    $region67: #{tpu_custom_call.1} parent=1 // pred_check_branch
      %120 = sbr.rel (0) target = $region69
    $region68: #{tpu_custom_call.1} parent=1 // pred_region
      %122 = dma.done [#allocation9], 384
    $region69: #{tpu_custom_call.1} parent=1 // pred_fallthru
      _
    %v124 = vlaneseq
    %v125 = vshrl.u32 %v124, 7
    %v126 = vadd.s32 %v125, 8
    %v127 = vand.u32 %v125, 7
    %v128 = vand.u32 %v126, 7
    %vm129 = vcmp.ge.s32.totalorder %v127, 1
    %vm130 = vcmp.ge.s32.totalorder %v128, 1
    %v131 = vsel %vm129, 1, 0
    %v132 = vsel %vm130, 1, 0
    %v133 = vcvt.s32.f32 %v131
    %v134 = vcvt.s32.f32 %v132
    %vm135 = vcmp.ge.s32.totalorder %v127, 2
    %vm136 = vcmp.ge.s32.totalorder %v128, 2
    %v137 = vsel %vm135, 1, 0
    %v138 = vsel %vm136, 1, 0
    %v139 = vcvt.s32.f32 %v137
    %v140 = vcvt.s32.f32 %v138
    %v141 = vadd.s32 %v125, 16
    %v142 = vadd.s32 %v125, 24
    %v143 = vadd.s32 %v125, 32
    %v144 = vadd.s32 %v125, 40
    %v145 = vadd.s32 %v125, 48
    %v146 = vadd.s32 %v125, 56
    %v147 = vlaneseq
    %v148 = vand.u32 %v147, 127
    %v149 = vshra.s32 %v125, 4
    %v150 = vshra.s32 %v126, 4
    %v151 = vshra.s32 %v141, 4
    %v152 = vshra.s32 %v142, 4
    %v153 = vshra.s32 %v143, 4
    %v154 = vshra.s32 %v144, 4
    %v155 = vshra.s32 %v145, 4
    %v156 = vshra.s32 %v146, 4
    %v157 = vshra.s32 %v148, 4
    %vm158 = vcmp.eq.s32.totalorder %v149, %v157
    %vm159 = vcmp.eq.s32.totalorder %v150, %v157
    %vm160 = vcmp.eq.s32.totalorder %v151, %v157
    %vm161 = vcmp.eq.s32.totalorder %v152, %v157
    %vm162 = vcmp.eq.s32.totalorder %v153, %v157
    %vm163 = vcmp.eq.s32.totalorder %v154, %v157
    %vm164 = vcmp.eq.s32.totalorder %v155, %v157
    %vm165 = vcmp.eq.s32.totalorder %v156, %v157
    %v166 = vsel %vm158, 1, 0
    %v167 = vsel %vm159, 1, 0
    %v168 = vsel %vm160, 1, 0
    %v169 = vsel %vm161, 1, 0
    %v170 = vsel %vm162, 1, 0
    %v171 = vsel %vm163, 1, 0
    %v172 = vsel %vm164, 1, 0
    %v173 = vsel %vm165, 1, 0
    %v174 = vcvt.s32.f32 %v166
    %v175 = vcvt.s32.f32 %v167
    %v176 = vcvt.s32.f32 %v168
    %v177 = vcvt.s32.f32 %v169
    %v178 = vcvt.s32.f32 %v170
    %v179 = vcvt.s32.f32 %v171
    %v180 = vcvt.s32.f32 %v172
    %v181 = vcvt.s32.f32 %v173
    %v182 = vld [vmem:[#allocation7] sm:$0xff]
    %v183 = vld [vmem:[#allocation7 + $0x8] sm:$0xff]
    %v184 = vld [vmem:[#allocation5] sm:$0xff]
    %v185 = vld [vmem:[#allocation5 + $0x8] sm:$0xff]
    %v186 = vld [vmem:[#allocation5 + $0x10] sm:$0xf]
    %v187 = vpack.c.bf16 %v185, %v184
    %v188 = vpack.c.bf16 %v186, %v186
    %v189 = vld [vmem:[#allocation2] sm:$0xff]
    %v190 = vld [vmem:[#allocation2 + $0x8] sm:$0xff]
    %v191 = vpack.c.bf16 %v190, %v189
    %v192 = vld [vmem:[#allocation10] sm:$0xf]
    %v193 = vld [vmem:[#allocation10 + $0x4] sm:$0xf]
    %v194 = vld [vmem:[#allocation10 + $0x8] sm:$0xf]
    %v195 = vld [vmem:[#allocation10 + $0xc] sm:$0xf]
    %v196 = vld [vmem:[#allocation10 + $0x10] sm:$0xf]
    %v197 = vld [vmem:[#allocation10 + $0x14] sm:$0xf]
    %v198 = vld [vmem:[#allocation8] sm:$0xff]
    %v199 = vld [vmem:[#allocation8 + $0x8] sm:$0xff]
    %v206 = vunpack.c.l.b16 %v192
    %v207 = vunpack.c.l.b16 %v193
    %v208 = vunpack.c.l.b16 %v194
    %v209 = vunpack.c.l.b16 %v195
    %v210 = vunpack.c.l.b16 %v196
    %v211 = vunpack.c.l.b16 %v197
    %v212 = vpack.c.b16 %v207, %v206
    %v213 = vpack.c.b16 %v209, %v208
    %v214 = vpack.c.b16 %v211, %v210
    %vm218 = vcmask 392192
    %v220 = vsel %vm218, %v191, 0
    %222 = vmatpush.bf16.msra.mxu0 0
    %223 = vmatpush.bf16.msra.mxu0 0
    %224 = vmatpush.bf16.msra.mxu0 0
    %225 = vmatpush.bf16.msra.mxu0 0
    %226 = vmatpush.bf16.msra.mxu0 0
    %227 = vmatpush.bf16.msra.mxu0 %v214
    %228 = vmatpush.bf16.msra.mxu0 %v213
    %229 = vmatpush.bf16.msra.mxu0 %v212
    %230 = vmatmul.bf16.gmra.mxu0 %v220
    %v231 = vpop.f32.mrf.mxu0
    %v232 = vadd.f32 %v198, %v231
    %v233 = vpop.f32.mrf.mxu0
    %v234 = vadd.f32 %v199, %v233
    %235 = vdwg.mxu0
    %v236 = vld [vmem:[#allocation8 + $0x10] sm:$0x1]
    %v237 = vld [vmem:[#allocation8 + $0x11] sm:$0x1]
    %vm238 = vcmask 523264
    %v239 = vsel %vm238, %v232, 0.0
    %240 = vadd.xlane.f32.xlu0 %v239
    %v241 = vpop.xlane.xlu0 %240
    %v242 = vsel %vm238, %v234, 0.0
    %243 = vadd.xlane.f32.xlu0 %v242
    %v244 = vpop.xlane.xlu0 %243
    %v245 = vrcp.pop 64.0
    %v246 = vmul.f32 64.0, %v245
    %v247 = vsub.f32 1.0, %v246
    %v248 = vmul.f32 %v245, %v247
    %v249 = vadd.f32 %v245, %v248
    %vm250 = vweird.f32 %v245
    %v251 = vsel %vm250, %v245, %v249
    %v252 = vmul.f32 %v241, %v251
    %v253 = vmul.f32 %v244, %v251
    %v254 = vsub.f32 %v232, %v252
    %v255 = vsub.f32 %v234, %v253
    %v256 = vmul.f32 %v254, %v254
    %v257 = vmul.f32 %v255, %v255
    %v258 = vsel %vm238, %v256, 0.0
    %259 = vadd.xlane.f32.xlu0 %v258
    %v260 = vpop.xlane.xlu0 %259
    %v261 = vsel %vm238, %v257, 0.0
    %262 = vadd.xlane.f32.xlu0 %v261
    %v263 = vpop.xlane.xlu0 %262
    %v264 = vmul.f32 %v260, 0.015873017
    %v265 = vmul.f32 %v263, 0.015873017
    %v266 = vrsqrt.pop %v264
    %v267 = vmul.f32 %v266, %v264
    %v268 = vmul.f32 %v267, %v266
    %v269 = vmul.f32 0.5, %v268
    %v270 = vsub.f32 1.5, %v269
    %v271 = vmul.f32 %v266, %v270
    %v272 = vmul.f32 %v264, %v271
    %vm273 = vcmp.eq.f32.partialorder %v264, inf
    %v274 = vsel %vm273, %v264, %v272
    %vm275 = vcmp.eq.f32.partialorder %v264, 0.0
    %v276 = vand.u32 %v264, 2147483648
    %v277 = vsel %vm275, %v276, %v274
    %v278 = vrsqrt.pop %v265
    %v279 = vmul.f32 %v278, %v265
    %v280 = vmul.f32 %v279, %v278
    %v281 = vmul.f32 0.5, %v280
    %v282 = vsub.f32 1.5, %v281
    %v283 = vmul.f32 %v278, %v282
    %v284 = vmul.f32 %v265, %v283
    %vm285 = vcmp.eq.f32.partialorder %v265, inf
    %v286 = vsel %vm285, %v265, %v284
    %vm287 = vcmp.eq.f32.partialorder %v265, 0.0
    %v288 = vand.u32 %v265, 2147483648
    %v289 = vsel %vm287, %v288, %v286
    %v290 = vadd.f32 %v277, 1e-06
    %v291 = vadd.f32 %v289, 1e-06
    %v292 = vrcp.pop %v290
    %v293 = vrcp.pop %v291
    %v294 = vmul.f32 %v254, %v292
    %v295 = vmul.f32 %v255, %v293
    %v296 = vperm.slane %v236, 0
    %v297 = vmul.f32 %v296, %v294
    %v298 = vmul.f32 %v296, %v295
    %v299 = vperm.slane %v237, 0
    %v300 = vadd.f32 %v297, %v299
    %v301 = vadd.f32 %v298, %v299
    %v302 = vpack.c.bf16 %v301, %v300
    %v303 = vld [vmem:[%s5] sm:$0xff]
    %v304 = vld [vmem:[%s5 + $0x8] sm:$0xff]
    %v305 = vld [vmem:[%s5 + $0x10] sm:$0xff]
    %v306 = vld [vmem:[%s5 + $0x18] sm:$0xff]
    %v307 = vld [vmem:[%s5 + $0x20] sm:$0xff]
    %v308 = vld [vmem:[%s5 + $0x28] sm:$0xff]
    %v309 = vld [vmem:[%s5 + $0x30] sm:$0xff]
    %v310 = vld [vmem:[%s5 + $0x38] sm:$0xff]
    %v319 = vunpack.c.l.b16 %v303
    %v320 = vunpack.c.h.b16 %v303
    %v321 = vunpack.c.l.b16 %v304
    %v322 = vunpack.c.h.b16 %v304
    %v323 = vunpack.c.l.b16 %v305
    %v324 = vunpack.c.h.b16 %v305
    %v325 = vunpack.c.l.b16 %v306
    %v326 = vunpack.c.h.b16 %v306
    %v327 = vunpack.c.l.b16 %v307
    %v328 = vunpack.c.h.b16 %v307
    %v329 = vunpack.c.l.b16 %v308
    %v330 = vunpack.c.h.b16 %v308
    %v331 = vunpack.c.l.b16 %v309
    %v332 = vunpack.c.h.b16 %v309
    %v333 = vunpack.c.l.b16 %v310
    %v334 = vunpack.c.h.b16 %v310
    %v335 = vpack.c.b16 %v321, %v319
    %v336 = vpack.c.b16 %v322, %v320
    %v337 = vpack.c.b16 %v325, %v323
    %v338 = vpack.c.b16 %v326, %v324
    %v339 = vpack.c.b16 %v329, %v327
    %v340 = vpack.c.b16 %v330, %v328
    %v341 = vpack.c.b16 %v333, %v331
    %v342 = vpack.c.b16 %v334, %v332
    %v352 = vsel %vm238, %v302, 0
    %354 = vmatpush.bf16.msra.mxu0 0
    %355 = vmatpush.bf16.msra.mxu0 0
    %356 = vmatpush.bf16.msra.mxu0 0
    %357 = vmatpush.bf16.msra.mxu0 0
    %358 = vmatpush.bf16.msra.mxu0 %v341
    %359 = vmatpush.bf16.msra.mxu0 %v339
    %360 = vmatpush.bf16.msra.mxu0 %v337
    %361 = vmatpush.bf16.msra.mxu0 %v335
    %362 = vmatmul.bf16.gmra.mxu0 %v352
    %v363 = vpop.f32.mrf.mxu0
    %v364 = vadd.f32 0.0, %v363
    %v365 = vpop.f32.mrf.mxu0
    %v366 = vadd.f32 0.0, %v365
    %367 = vdwg.mxu0
    %368 = vmatpush.bf16.msra.mxu0 0
    %369 = vmatpush.bf16.msra.mxu0 0
    %370 = vmatpush.bf16.msra.mxu0 0
    %371 = vmatpush.bf16.msra.mxu0 0
    %372 = vmatpush.bf16.msra.mxu0 %v342
    %373 = vmatpush.bf16.msra.mxu0 %v340
    %374 = vmatpush.bf16.msra.mxu0 %v338
    %375 = vmatpush.bf16.msra.mxu0 %v336
    %376 = vmatmul.bf16.gmra.mxu0 %v352
    %v377 = vpop.f32.mrf.mxu0
    %v378 = vadd.f32 0.0, %v377
    %v379 = vpop.f32.mrf.mxu0
    %v380 = vadd.f32 0.0, %v379
    %381 = vdwg.mxu0
    %v382 = vmul.f32 %v364, 0.25
    %v383 = vmul.f32 %v366, 0.25
    %v384 = vpack.c.bf16 %v366, %v364
    %v385 = vpack.c.bf16 %v380, %v378
    %v386 = vld [vmem:[%s6] sm:$0xf]
    %v387 = vld [vmem:[%s6 + $0x4] sm:$0xf]
    %v388 = vld [vmem:[%s6 + $0x8] sm:$0xf]
    %v389 = vld [vmem:[%s6 + $0xc] sm:$0xf]
    %v390 = vld [vmem:[%s6 + $0x10] sm:$0xf]
    %v391 = vld [vmem:[%s6 + $0x14] sm:$0xf]
    %v392 = vld [vmem:[%s6 + $0x18] sm:$0xf]
    %v393 = vld [vmem:[%s6 + $0x1c] sm:$0xf]
    %v394 = vmul.f32 %v382, %v174
    %v395 = vmul.f32 %v383, %v175
    %v396 = vmul.f32 %v382, %v176
    %v397 = vmul.f32 %v383, %v177
    %v398 = vmul.f32 %v382, %v178
    %v399 = vmul.f32 %v383, %v179
    %v400 = vmul.f32 %v382, %v180
    %v401 = vmul.f32 %v383, %v181
    %v402 = vpack.c.bf16 %v395, %v394
    %v403 = vpack.c.bf16 %v397, %v396
    %v404 = vpack.c.bf16 %v399, %v398
    %v405 = vpack.c.bf16 %v401, %v400
    %407 = vrot.lane.b32.xlu0 %v384, 64
    %v408 = vpop.permute.xlu0 %407
    %v410 = vsel %vm238, %v402, 0
    %v413 = vsel %vm238, %v403, 0
    %v416 = vsel %vm238, %v404, 0
    %v419 = vsel %vm238, %v405, 0
    %v422 = vsel %vm238, %v408, 0
    %424 = vmatpush.bf16.xpose.msra.mxu0 0
    %425 = vmatpush.bf16.xpose.msra.mxu0 0
    %426 = vmatpush.bf16.xpose.msra.mxu0 0
    %427 = vmatpush.bf16.xpose.msra.mxu0 0
    %428 = vmatpush.bf16.xpose.msra.mxu0 0
    %429 = vmatpush.bf16.xpose.msra.mxu0 0
    %430 = vmatpush.bf16.xpose.msra.mxu0 0
    %431 = vmatpush.bf16.xpose.msra.mxu0 %v422
    %432 = vmatmul.bf16.gmra.mxu0 %v410
    %v433 = vpop.f32.mrf.mxu0
    %v434 = vadd.f32 %v182, %v433
    %v435 = vpop.f32.mrf.mxu0
    %v436 = vadd.f32 %v183, %v435
    %437 = vmatmul.bf16.gmra.mxu0 %v413
    %v438 = vpop.f32.mrf.mxu0
    %v439 = vadd.f32 %v182, %v438
    %v440 = vpop.f32.mrf.mxu0
    %v441 = vadd.f32 %v183, %v440
    %442 = vmatmul.bf16.gmra.mxu0 %v416
    %v443 = vpop.f32.mrf.mxu0
    %v444 = vadd.f32 %v182, %v443
    %v445 = vpop.f32.mrf.mxu0
    %v446 = vadd.f32 %v183, %v445
    %447 = vmatmul.bf16.gmra.mxu0 %v419
    %v448 = vpop.f32.mrf.mxu0
    %v449 = vadd.f32 %v182, %v448
    %v450 = vpop.f32.mrf.mxu0
    %v451 = vadd.f32 %v183, %v450
    %452 = vdwg.mxu0
    %vm453 = vcmask 130048
    %v454 = vsel %vm453, %v434, -inf
    %455 = vmax.xlane.f32.xlu0 %v454
    %v456 = vpop.xlane.xlu0 %455
    %v457 = vsel %vm453, %v436, -inf
    %458 = vmax.xlane.f32.xlu0 %v457
    %v459 = vpop.xlane.xlu0 %458
    %v460 = vsel %vm453, %v439, -inf
    %461 = vmax.xlane.f32.xlu0 %v460
    %v462 = vpop.xlane.xlu0 %461
    %v463 = vsel %vm453, %v441, -inf
    %464 = vmax.xlane.f32.xlu0 %v463
    %v465 = vpop.xlane.xlu0 %464
    %v466 = vsel %vm453, %v444, -inf
    %467 = vmax.xlane.f32.xlu0 %v466
    %v468 = vpop.xlane.xlu0 %467
    %v469 = vsel %vm453, %v446, -inf
    %470 = vmax.xlane.f32.xlu0 %v469
    %v471 = vpop.xlane.xlu0 %470
    %v472 = vsel %vm453, %v449, -inf
    %473 = vmax.xlane.f32.xlu0 %v472
    %v474 = vpop.xlane.xlu0 %473
    %v475 = vsel %vm453, %v451, -inf
    %476 = vmax.xlane.f32.xlu0 %v475
    %v477 = vpop.xlane.xlu0 %476
    %v478 = vsub.f32 %v434, %v456
    %v479 = vsub.f32 %v436, %v459
    %v480 = vsub.f32 %v439, %v462
    %v481 = vsub.f32 %v441, %v465
    %v482 = vsub.f32 %v444, %v468
    %v483 = vsub.f32 %v446, %v471
    %v484 = vsub.f32 %v449, %v474
    %v485 = vsub.f32 %v451, %v477
    %v486 = vmul.f32 %v478, 1.442695
    %v487 = vpow.pop %v486
    %v488 = vmul.f32 %v479, 1.442695
    %v489 = vpow.pop %v488
    %v490 = vmul.f32 %v480, 1.442695
    %v491 = vpow.pop %v490
    %v492 = vmul.f32 %v481, 1.442695
    %v493 = vpow.pop %v492
    %v494 = vmul.f32 %v482, 1.442695
    %v495 = vpow.pop %v494
    %v496 = vmul.f32 %v483, 1.442695
    %v497 = vpow.pop %v496
    %v498 = vmul.f32 %v484, 1.442695
    %v499 = vpow.pop %v498
    %v500 = vmul.f32 %v485, 1.442695
    %v501 = vpow.pop %v500
    %v502 = vsel %vm453, %v487, 0.0
    %503 = vadd.xlane.f32.xlu0 %v502
    %v504 = vpop.xlane.xlu0 %503
    %v505 = vsel %vm453, %v489, 0.0
    %506 = vadd.xlane.f32.xlu0 %v505
    %v507 = vpop.xlane.xlu0 %506
    %v508 = vsel %vm453, %v491, 0.0
    %509 = vadd.xlane.f32.xlu0 %v508
    %v510 = vpop.xlane.xlu0 %509
    %v511 = vsel %vm453, %v493, 0.0
    %512 = vadd.xlane.f32.xlu0 %v511
    %v513 = vpop.xlane.xlu0 %512
    %v514 = vsel %vm453, %v495, 0.0
    %515 = vadd.xlane.f32.xlu0 %v514
    %v516 = vpop.xlane.xlu0 %515
    %v517 = vsel %vm453, %v497, 0.0
    %518 = vadd.xlane.f32.xlu0 %v517
    %v519 = vpop.xlane.xlu0 %518
    %v520 = vsel %vm453, %v499, 0.0
    %521 = vadd.xlane.f32.xlu0 %v520
    %v522 = vpop.xlane.xlu0 %521
    %v523 = vsel %vm453, %v501, 0.0
    %524 = vadd.xlane.f32.xlu0 %v523
    %v525 = vpop.xlane.xlu0 %524
    %v526 = vrcp.pop %v504
    %v527 = vrcp.pop %v507
    %v528 = vrcp.pop %v510
    %v529 = vrcp.pop %v513
    %v530 = vrcp.pop %v516
    %v531 = vrcp.pop %v519
    %v532 = vrcp.pop %v522
    %v533 = vrcp.pop %v525
    %v534 = vmul.f32 %v487, %v526
    %v535 = vmul.f32 %v489, %v527
    %v536 = vmul.f32 %v491, %v528
    %v537 = vmul.f32 %v493, %v529
    %v538 = vmul.f32 %v495, %v530
    %v539 = vmul.f32 %v497, %v531
    %v540 = vmul.f32 %v499, %v532
    %v541 = vmul.f32 %v501, %v533
    %v542 = vpack.c.bf16 %v535, %v534
    %v543 = vpack.c.bf16 %v537, %v536
    %v544 = vpack.c.bf16 %v539, %v538
    %v545 = vpack.c.bf16 %v541, %v540
    %v547 = vsel %vm453, %v542, 0
    %v550 = vsel %vm453, %v543, 0
    %v553 = vsel %vm453, %v544, 0
    %v556 = vsel %vm453, %v545, 0
    %558 = vmatpush.bf16.msra.mxu0 0
    %559 = vmatpush.bf16.msra.mxu0 0
    %560 = vmatpush.bf16.msra.mxu0 0
    %561 = vmatpush.bf16.msra.mxu0 0
    %562 = vmatpush.bf16.msra.mxu0 0
    %563 = vmatpush.bf16.msra.mxu0 0
    %564 = vmatpush.bf16.msra.mxu0 0
    %565 = vmatpush.bf16.msra.mxu0 %v385
    %566 = vmatmul.bf16.gmra.mxu0 %v547
    %v567 = vpop.f32.mrf.mxu0
    %v568 = vadd.f32 0.0, %v567
    %v569 = vpop.f32.mrf.mxu0
    %v570 = vadd.f32 0.0, %v569
    %571 = vmatmul.bf16.gmra.mxu0 %v550
    %v572 = vpop.f32.mrf.mxu0
    %v573 = vadd.f32 0.0, %v572
    %v574 = vpop.f32.mrf.mxu0
    %v575 = vadd.f32 0.0, %v574
    %576 = vmatmul.bf16.gmra.mxu0 %v553
    %v577 = vpop.f32.mrf.mxu0
    %v578 = vadd.f32 0.0, %v577
    %v579 = vpop.f32.mrf.mxu0
    %v580 = vadd.f32 0.0, %v579
    %581 = vmatmul.bf16.gmra.mxu0 %v556
    %v582 = vpop.f32.mrf.mxu0
    %v583 = vadd.f32 0.0, %v582
    %v584 = vpop.f32.mrf.mxu0
    %v585 = vadd.f32 0.0, %v584
    %586 = vdwg.mxu0
    %v587 = vmul.f32 %v568, %v174
    %v588 = vmul.f32 %v570, %v175
    %v589 = vmul.f32 %v573, %v176
    %v590 = vmul.f32 %v575, %v177
    %v591 = vmul.f32 %v578, %v178
    %v592 = vmul.f32 %v580, %v179
    %v593 = vmul.f32 %v583, %v180
    %v594 = vmul.f32 %v585, %v181
    %v595 = vadd.f32 %v587, %v589
    %v596 = vadd.f32 %v588, %v590
    %v597 = vadd.f32 %v595, %v591
    %v598 = vadd.f32 %v596, %v592
    %v599 = vadd.f32 %v597, %v593
    %v600 = vadd.f32 %v598, %v594
    %v601 = vpack.c.bf16 %v600, %v599
    %v610 = vunpack.c.l.b16 %v386
    %v611 = vunpack.c.l.b16 %v387
    %v612 = vunpack.c.l.b16 %v388
    %v613 = vunpack.c.l.b16 %v389
    %v614 = vunpack.c.l.b16 %v390
    %v615 = vunpack.c.l.b16 %v391
    %v616 = vunpack.c.l.b16 %v392
    %v617 = vunpack.c.l.b16 %v393
    %v618 = vpack.c.b16 %v611, %v610
    %v619 = vpack.c.b16 %v613, %v612
    %v620 = vpack.c.b16 %v615, %v614
    %v621 = vpack.c.b16 %v617, %v616
    %v627 = vsel %vm238, %v601, 0
    %629 = vmatpush.bf16.msra.mxu0 0
    %630 = vmatpush.bf16.msra.mxu0 0
    %631 = vmatpush.bf16.msra.mxu0 0
    %632 = vmatpush.bf16.msra.mxu0 0
    %633 = vmatpush.bf16.msra.mxu0 %v621
    %634 = vmatpush.bf16.msra.mxu0 %v620
    %635 = vmatpush.bf16.msra.mxu0 %v619
    %636 = vmatpush.bf16.msra.mxu0 %v618
    %637 = vmatmul.bf16.gmra.mxu0 %v627
    %v638 = vpop.f32.mrf.mxu0
    %v639 = vadd.f32 0.0, %v638
    %v640 = vpop.f32.mrf.mxu0
    %v641 = vadd.f32 0.0, %v640
    %642 = vdwg.mxu0
    %v643 = vadd.f32 %v232, %v639
    %v644 = vadd.f32 %v234, %v641
    %v645 = vld [vmem:[#allocation8 + $0x12] sm:$0x1]
    %v646 = vld [vmem:[#allocation8 + $0x13] sm:$0x1]
    %v647 = vsel %vm238, %v643, 0.0
    %648 = vadd.xlane.f32.xlu0 %v647
    %v649 = vpop.xlane.xlu0 %648
    %v650 = vsel %vm238, %v644, 0.0
    %651 = vadd.xlane.f32.xlu0 %v650
    %v652 = vpop.xlane.xlu0 %651
    %v653 = vmul.f32 %v649, %v251
    %v654 = vmul.f32 %v652, %v251
    %v655 = vsub.f32 %v643, %v653
    %v656 = vsub.f32 %v644, %v654
    %v657 = vmul.f32 %v655, %v655
    %v658 = vmul.f32 %v656, %v656
    %v659 = vsel %vm238, %v657, 0.0
    %660 = vadd.xlane.f32.xlu0 %v659
    %v661 = vpop.xlane.xlu0 %660
    %v662 = vsel %vm238, %v658, 0.0
    %663 = vadd.xlane.f32.xlu0 %v662
    %v664 = vpop.xlane.xlu0 %663
    %v665 = vmul.f32 %v661, 0.015873017
    %v666 = vmul.f32 %v664, 0.015873017
    %v667 = vrsqrt.pop %v665
    %v668 = vmul.f32 %v667, %v665
    %v669 = vmul.f32 %v668, %v667
    %v670 = vmul.f32 0.5, %v669
    %v671 = vsub.f32 1.5, %v670
    %v672 = vmul.f32 %v667, %v671
    %v673 = vmul.f32 %v665, %v672
    %vm674 = vcmp.eq.f32.partialorder %v665, inf
    %v675 = vsel %vm674, %v665, %v673
    %vm676 = vcmp.eq.f32.partialorder %v665, 0.0
    %v677 = vand.u32 %v665, 2147483648
    %v678 = vsel %vm676, %v677, %v675
    %v679 = vrsqrt.pop %v666
    %v680 = vmul.f32 %v679, %v666
    %v681 = vmul.f32 %v680, %v679
    %v682 = vmul.f32 0.5, %v681
    %v683 = vsub.f32 1.5, %v682
    %v684 = vmul.f32 %v679, %v683
    %v685 = vmul.f32 %v666, %v684
    %vm686 = vcmp.eq.f32.partialorder %v666, inf
    %v687 = vsel %vm686, %v666, %v685
    %vm688 = vcmp.eq.f32.partialorder %v666, 0.0
    %v689 = vand.u32 %v666, 2147483648
    %v690 = vsel %vm688, %v689, %v687
    %v691 = vadd.f32 %v678, 1e-06
    %v692 = vadd.f32 %v690, 1e-06
    %v693 = vrcp.pop %v691
    %v694 = vrcp.pop %v692
    %v695 = vmul.f32 %v655, %v693
    %v696 = vmul.f32 %v656, %v694
    %v697 = vperm.slane %v645, 0
    %v698 = vmul.f32 %v697, %v695
    %v699 = vmul.f32 %v697, %v696
    %v700 = vperm.slane %v646, 0
    %v701 = vadd.f32 %v698, %v700
    %v702 = vadd.f32 %v699, %v700
    %v703 = vpack.c.bf16 %v702, %v701
    %v704 = vld [vmem:[%s7] sm:$0xf]
    %v705 = vld [vmem:[%s7 + $0x4] sm:$0xf]
    %v706 = vld [vmem:[%s7 + $0x8] sm:$0xf]
    %v707 = vld [vmem:[%s7 + $0xc] sm:$0xf]
    %v708 = vld [vmem:[%s7 + $0x10] sm:$0xf]
    %v709 = vld [vmem:[%s7 + $0x14] sm:$0xf]
    %v710 = vld [vmem:[%s7 + $0x18] sm:$0xf]
    %v711 = vld [vmem:[%s7 + $0x1c] sm:$0xf]
    %v720 = vunpack.c.l.b16 %v704
    %v721 = vunpack.c.l.b16 %v705
    %v722 = vunpack.c.l.b16 %v706
    %v723 = vunpack.c.l.b16 %v707
    %v724 = vunpack.c.l.b16 %v708
    %v725 = vunpack.c.l.b16 %v709
    %v726 = vunpack.c.l.b16 %v710
    %v727 = vunpack.c.l.b16 %v711
    %v728 = vpack.c.b16 %v721, %v720
    %v729 = vpack.c.b16 %v723, %v722
    %v730 = vpack.c.b16 %v725, %v724
    %v731 = vpack.c.b16 %v727, %v726
    %v737 = vsel %vm238, %v703, 0
    %739 = vmatpush.bf16.msra.mxu0 0
    %740 = vmatpush.bf16.msra.mxu0 0
    %741 = vmatpush.bf16.msra.mxu0 0
    %742 = vmatpush.bf16.msra.mxu0 0
    %743 = vmatpush.bf16.msra.mxu0 %v731
    %744 = vmatpush.bf16.msra.mxu0 %v730
    %745 = vmatpush.bf16.msra.mxu0 %v729
    %746 = vmatpush.bf16.msra.mxu0 %v728
    %747 = vmatmul.bf16.gmra.mxu0 %v737
    %v748 = vpop.f32.mrf.mxu0
    %v749 = vadd.f32 0.0, %v748
    %v750 = vpop.f32.mrf.mxu0
    %v751 = vadd.f32 0.0, %v750
    %752 = vdwg.mxu0
    %v753 = vmul.f32 %v749, 0.25
    %v754 = vmul.f32 %v751, 0.25
    %v755 = vld [vmem:[%s8] sm:$0xf]
    %v756 = vld [vmem:[%s8 + $0x4] sm:$0xf]
    %v757 = vld [vmem:[%s8 + $0x8] sm:$0xf]
    %v758 = vld [vmem:[%s8 + $0xc] sm:$0xf]
    %v759 = vld [vmem:[%s8 + $0x10] sm:$0xf]
    %v760 = vld [vmem:[%s8 + $0x14] sm:$0xf]
    %v761 = vld [vmem:[%s8 + $0x18] sm:$0xf]
    %v762 = vld [vmem:[%s8 + $0x1c] sm:$0xf]
    %v771 = vunpack.c.l.b16 %v755
    %v772 = vunpack.c.l.b16 %v756
    %v773 = vunpack.c.l.b16 %v757
    %v774 = vunpack.c.l.b16 %v758
    %v775 = vunpack.c.l.b16 %v759
    %v776 = vunpack.c.l.b16 %v760
    %v777 = vunpack.c.l.b16 %v761
    %v778 = vunpack.c.l.b16 %v762
    %v779 = vpack.c.b16 %v772, %v771
    %v780 = vpack.c.b16 %v774, %v773
    %v781 = vpack.c.b16 %v776, %v775
    %v782 = vpack.c.b16 %v778, %v777
    %v788 = vsel %vm238, %v187, 0
    %v791 = vsel %vm238, %v188, 0
    %793 = vmatpush.bf16.msra.mxu0 0
    %794 = vmatpush.bf16.msra.mxu0 0
    %795 = vmatpush.bf16.msra.mxu0 0
    %796 = vmatpush.bf16.msra.mxu0 0
    %797 = vmatpush.bf16.msra.mxu0 %v782
    %798 = vmatpush.bf16.msra.mxu0 %v781
    %799 = vmatpush.bf16.msra.mxu0 %v780
    %800 = vmatpush.bf16.msra.mxu0 %v779
    %801 = vmatmul.bf16.gmra.mxu0 %v788
    %v802 = vpop.f32.mrf.mxu0
    %v803 = vadd.f32 0.0, %v802
    %v804 = vpop.f32.mrf.mxu0
    %v805 = vadd.f32 0.0, %v804
    %806 = vmatmul.bf16.gmra.mxu0 %v791
    %v807 = vpop.f32.mrf.mxu0
    %v808 = vadd.f32 0.0, %v807
    %v809 = vpop.f32.mrf.mxu0
    %810 = vdwg.mxu0
    %v811 = vpack.c.bf16 %v805, %v803
    %v812 = vpack.c.bf16 %v808, %v808
    %v813 = vld [vmem:[%s9] sm:$0xf]
    %v814 = vld [vmem:[%s9 + $0x4] sm:$0xf]
    %v815 = vld [vmem:[%s9 + $0x8] sm:$0xf]
    %v816 = vld [vmem:[%s9 + $0xc] sm:$0xf]
    %v817 = vld [vmem:[%s9 + $0x10] sm:$0xf]
    %v818 = vld [vmem:[%s9 + $0x14] sm:$0xf]
    %v819 = vld [vmem:[%s9 + $0x18] sm:$0xf]
    %v820 = vld [vmem:[%s9 + $0x1c] sm:$0xf]
    %v821 = vmul.f32 %v753, %v174
    %v822 = vmul.f32 %v754, %v175
    %v823 = vmul.f32 %v753, %v176
    %v824 = vmul.f32 %v754, %v177
    %v825 = vmul.f32 %v753, %v178
    %v826 = vmul.f32 %v754, %v179
    %v827 = vmul.f32 %v753, %v180
    %v828 = vmul.f32 %v754, %v181
    %v829 = vpack.c.bf16 %v822, %v821
    %v830 = vpack.c.bf16 %v824, %v823
    %v831 = vpack.c.bf16 %v826, %v825
    %v832 = vpack.c.bf16 %v828, %v827
    %835 = vrot.lane.b32.xlu0 %v182, 112
    %v836 = vpop.permute.xlu0 %835
    %837 = vrot.lane.b32.xlu0 %v183, 112
    %v838 = vpop.permute.xlu0 %837
    %v842 = vsel %vm238, %v829, 0
    %v845 = vsel %vm238, %v830, 0
    %v848 = vsel %vm238, %v831, 0
    %v851 = vsel %vm238, %v832, 0
    %v854 = vsel %vm238, %v811, 0
    %v857 = vsel %vm238, %v812, 0
    %859 = vmatpush.bf16.xpose.msra.mxu0 0
    %860 = vmatpush.bf16.xpose.msra.mxu0 0
    %861 = vmatpush.bf16.xpose.msra.mxu0 0
    %862 = vmatpush.bf16.xpose.msra.mxu0 0
    %863 = vmatpush.bf16.xpose.msra.mxu0 0
    %864 = vmatpush.bf16.xpose.msra.mxu0 0
    %865 = vmatpush.bf16.xpose.msra.mxu0 %v857
    %866 = vmatpush.bf16.xpose.msra.mxu0 %v854
    %867 = vmatmul.bf16.gmra.mxu0 %v842
    %v868 = vpop.f32.mrf.mxu0
    %v869 = vadd.f32 %v836, %v868
    %v870 = vpop.f32.mrf.mxu0
    %v871 = vadd.f32 %v838, %v870
    %872 = vmatmul.bf16.gmra.mxu0 %v845
    %v873 = vpop.f32.mrf.mxu0
    %v874 = vadd.f32 %v836, %v873
    %v875 = vpop.f32.mrf.mxu0
    %v876 = vadd.f32 %v838, %v875
    %877 = vmatmul.bf16.gmra.mxu0 %v848
    %v878 = vpop.f32.mrf.mxu0
    %v879 = vadd.f32 %v836, %v878
    %v880 = vpop.f32.mrf.mxu0
    %v881 = vadd.f32 %v838, %v880
    %882 = vmatmul.bf16.gmra.mxu0 %v851
    %v883 = vpop.f32.mrf.mxu0
    %v884 = vadd.f32 %v836, %v883
    %v885 = vpop.f32.mrf.mxu0
    %v886 = vadd.f32 %v838, %v885
    %887 = vdwg.mxu0
    %vm888 = vcmask 162816
    %v889 = vsel %vm888, %v869, -inf
    %890 = vmax.xlane.f32.xlu0 %v889
    %v891 = vpop.xlane.xlu0 %890
    %v892 = vsel %vm888, %v871, -inf
    %893 = vmax.xlane.f32.xlu0 %v892
    %v894 = vpop.xlane.xlu0 %893
    %v895 = vsel %vm888, %v874, -inf
    %896 = vmax.xlane.f32.xlu0 %v895
    %v897 = vpop.xlane.xlu0 %896
    %v898 = vsel %vm888, %v876, -inf
    %899 = vmax.xlane.f32.xlu0 %v898
    %v900 = vpop.xlane.xlu0 %899
    %v901 = vsel %vm888, %v879, -inf
    %902 = vmax.xlane.f32.xlu0 %v901
    %v903 = vpop.xlane.xlu0 %902
    %v904 = vsel %vm888, %v881, -inf
    %905 = vmax.xlane.f32.xlu0 %v904
    %v906 = vpop.xlane.xlu0 %905
    %v907 = vsel %vm888, %v884, -inf
    %908 = vmax.xlane.f32.xlu0 %v907
    %v909 = vpop.xlane.xlu0 %908
    %v910 = vsel %vm888, %v886, -inf
    %911 = vmax.xlane.f32.xlu0 %v910
    %v912 = vpop.xlane.xlu0 %911
    %v913 = vsub.f32 %v869, %v891
    %v914 = vsub.f32 %v871, %v894
    %v915 = vsub.f32 %v874, %v897
    %v916 = vsub.f32 %v876, %v900
    %v917 = vsub.f32 %v879, %v903
    %v918 = vsub.f32 %v881, %v906
    %v919 = vsub.f32 %v884, %v909
    %v920 = vsub.f32 %v886, %v912
    %v921 = vmul.f32 %v913, 1.442695
    %v922 = vpow.pop %v921
    %v923 = vmul.f32 %v914, 1.442695
    %v924 = vpow.pop %v923
    %v925 = vmul.f32 %v915, 1.442695
    %v926 = vpow.pop %v925
    %v927 = vmul.f32 %v916, 1.442695
    %v928 = vpow.pop %v927
    %v929 = vmul.f32 %v917, 1.442695
    %v930 = vpow.pop %v929
    %v931 = vmul.f32 %v918, 1.442695
    %v932 = vpow.pop %v931
    %v933 = vmul.f32 %v919, 1.442695
    %v934 = vpow.pop %v933
    %v935 = vmul.f32 %v920, 1.442695
    %v936 = vpow.pop %v935
    %v937 = vsel %vm888, %v922, 0.0
    %938 = vadd.xlane.f32.xlu0 %v937
    %v939 = vpop.xlane.xlu0 %938
    %v940 = vsel %vm888, %v924, 0.0
    %941 = vadd.xlane.f32.xlu0 %v940
    %v942 = vpop.xlane.xlu0 %941
    %v943 = vsel %vm888, %v926, 0.0
    %944 = vadd.xlane.f32.xlu0 %v943
    %v945 = vpop.xlane.xlu0 %944
    %v946 = vsel %vm888, %v928, 0.0
    %947 = vadd.xlane.f32.xlu0 %v946
    %v948 = vpop.xlane.xlu0 %947
    %v949 = vsel %vm888, %v930, 0.0
    %950 = vadd.xlane.f32.xlu0 %v949
    %v951 = vpop.xlane.xlu0 %950
    %v952 = vsel %vm888, %v932, 0.0
    %953 = vadd.xlane.f32.xlu0 %v952
    %v954 = vpop.xlane.xlu0 %953
    %v955 = vsel %vm888, %v934, 0.0
    %956 = vadd.xlane.f32.xlu0 %v955
    %v957 = vpop.xlane.xlu0 %956
    %v958 = vsel %vm888, %v936, 0.0
    %959 = vadd.xlane.f32.xlu0 %v958
    %v960 = vpop.xlane.xlu0 %959
    %v961 = vrcp.pop %v939
    %v962 = vrcp.pop %v942
    %v963 = vrcp.pop %v945
    %v964 = vrcp.pop %v948
    %v965 = vrcp.pop %v951
    %v966 = vrcp.pop %v954
    %v967 = vrcp.pop %v957
    %v968 = vrcp.pop %v960
    %v969 = vmul.f32 %v922, %v961
    %v970 = vmul.f32 %v924, %v962
    %v971 = vmul.f32 %v926, %v963
    %v972 = vmul.f32 %v928, %v964
    %v973 = vmul.f32 %v930, %v965
    %v974 = vmul.f32 %v932, %v966
    %v975 = vmul.f32 %v934, %v967
    %v976 = vmul.f32 %v936, %v968
    %v977 = vpack.c.bf16 %v970, %v969
    %v978 = vpack.c.bf16 %v972, %v971
    %v979 = vpack.c.bf16 %v974, %v973
    %v980 = vpack.c.bf16 %v976, %v975
    %983 = vrot.lane.b32.xlu0 %v811, 64
    %v984 = vpop.permute.xlu0 %983
    %985 = vrot.lane.b32.xlu0 %v812, 64
    %v986 = vpop.permute.xlu0 %985
    %v989 = vsel %vm888, %v977, 0
    %v992 = vsel %vm888, %v978, 0
    %v995 = vsel %vm888, %v979, 0
    %v998 = vsel %vm888, %v980, 0
    %vm1000 = vcmask 1041408
    %v1002 = vsel %vm1000, %v986, 0
    %1004 = vmatpush.bf16.msra.mxu0 0
    %1005 = vmatpush.bf16.msra.mxu0 0
    %1006 = vmatpush.bf16.msra.mxu0 0
    %1007 = vmatpush.bf16.msra.mxu0 0
    %1008 = vmatpush.bf16.msra.mxu0 0
    %1009 = vmatpush.bf16.msra.mxu0 0
    %1010 = vmatpush.bf16.msra.mxu0 %v1002
    %1011 = vmatpush.bf16.msra.mxu0 %v984
    %1012 = vmatmul.bf16.gmra.mxu0 %v989
    %v1013 = vpop.f32.mrf.mxu0
    %v1014 = vadd.f32 0.0, %v1013
    %v1015 = vpop.f32.mrf.mxu0
    %v1016 = vadd.f32 0.0, %v1015
    %1017 = vmatmul.bf16.gmra.mxu0 %v992
    %v1018 = vpop.f32.mrf.mxu0
    %v1019 = vadd.f32 0.0, %v1018
    %v1020 = vpop.f32.mrf.mxu0
    %v1021 = vadd.f32 0.0, %v1020
    %1022 = vmatmul.bf16.gmra.mxu0 %v995
    %v1023 = vpop.f32.mrf.mxu0
    %v1024 = vadd.f32 0.0, %v1023
    %v1025 = vpop.f32.mrf.mxu0
    %v1026 = vadd.f32 0.0, %v1025
    %1027 = vmatmul.bf16.gmra.mxu0 %v998
    %v1028 = vpop.f32.mrf.mxu0
    %v1029 = vadd.f32 0.0, %v1028
    %v1030 = vpop.f32.mrf.mxu0
    %v1031 = vadd.f32 0.0, %v1030
    %1032 = vdwg.mxu0
    %v1033 = vmul.f32 %v1014, %v174
    %v1034 = vmul.f32 %v1016, %v175
    %v1035 = vmul.f32 %v1019, %v176
    %v1036 = vmul.f32 %v1021, %v177
    %v1037 = vmul.f32 %v1024, %v178
    %v1038 = vmul.f32 %v1026, %v179
    %v1039 = vmul.f32 %v1029, %v180
    %v1040 = vmul.f32 %v1031, %v181
    %v1041 = vadd.f32 %v1033, %v1035
    %v1042 = vadd.f32 %v1034, %v1036
    %v1043 = vadd.f32 %v1041, %v1037
    %v1044 = vadd.f32 %v1042, %v1038
    %v1045 = vadd.f32 %v1043, %v1039
    %v1046 = vadd.f32 %v1044, %v1040
    %v1047 = vpack.c.bf16 %v1046, %v1045
    %v1056 = vunpack.c.l.b16 %v813
    %v1057 = vunpack.c.l.b16 %v814
    %v1058 = vunpack.c.l.b16 %v815
    %v1059 = vunpack.c.l.b16 %v816
    %v1060 = vunpack.c.l.b16 %v817
    %v1061 = vunpack.c.l.b16 %v818
    %v1062 = vunpack.c.l.b16 %v819
    %v1063 = vunpack.c.l.b16 %v820
    %v1064 = vpack.c.b16 %v1057, %v1056
    %v1065 = vpack.c.b16 %v1059, %v1058
    %v1066 = vpack.c.b16 %v1061, %v1060
    %v1067 = vpack.c.b16 %v1063, %v1062
    %v1073 = vsel %vm238, %v1047, 0
    %1075 = vmatpush.bf16.msra.mxu0 0
    %1076 = vmatpush.bf16.msra.mxu0 0
    %1077 = vmatpush.bf16.msra.mxu0 0
    %1078 = vmatpush.bf16.msra.mxu0 0
    %1079 = vmatpush.bf16.msra.mxu0 %v1067
    %1080 = vmatpush.bf16.msra.mxu0 %v1066
    %1081 = vmatpush.bf16.msra.mxu0 %v1065
    %1082 = vmatpush.bf16.msra.mxu0 %v1064
    %1083 = vmatmul.bf16.gmra.mxu0 %v1073
    %v1084 = vpop.f32.mrf.mxu0
    %v1085 = vadd.f32 0.0, %v1084
    %v1086 = vpop.f32.mrf.mxu0
    %v1087 = vadd.f32 0.0, %v1086
    %1088 = vdwg.mxu0
    %v1089 = vadd.f32 %v643, %v1085
    %v1090 = vadd.f32 %v644, %v1087
    %v1091 = vld [vmem:[#allocation8 + $0x14] sm:$0x1]
    %v1092 = vld [vmem:[#allocation8 + $0x15] sm:$0x1]
    %v1093 = vsel %vm238, %v1089, 0.0
    %1094 = vadd.xlane.f32.xlu0 %v1093
    %v1095 = vpop.xlane.xlu0 %1094
    %v1096 = vsel %vm238, %v1090, 0.0
    %1097 = vadd.xlane.f32.xlu0 %v1096
    %v1098 = vpop.xlane.xlu0 %1097
    %v1099 = vmul.f32 %v1095, %v251
    %v1100 = vmul.f32 %v1098, %v251
    %v1101 = vsub.f32 %v1089, %v1099
    %v1102 = vsub.f32 %v1090, %v1100
    %v1103 = vmul.f32 %v1101, %v1101
    %v1104 = vmul.f32 %v1102, %v1102
    %v1105 = vsel %vm238, %v1103, 0.0
    %1106 = vadd.xlane.f32.xlu0 %v1105
    %v1107 = vpop.xlane.xlu0 %1106
    %v1108 = vsel %vm238, %v1104, 0.0
    %1109 = vadd.xlane.f32.xlu0 %v1108
    %v1110 = vpop.xlane.xlu0 %1109
    %v1111 = vmul.f32 %v1107, 0.015873017
    %v1112 = vmul.f32 %v1110, 0.015873017
    %v1113 = vrsqrt.pop %v1111
    %v1114 = vmul.f32 %v1113, %v1111
    %v1115 = vmul.f32 %v1114, %v1113
    %v1116 = vmul.f32 0.5, %v1115
    %v1117 = vsub.f32 1.5, %v1116
    %v1118 = vmul.f32 %v1113, %v1117
    %v1119 = vmul.f32 %v1111, %v1118
    %vm1120 = vcmp.eq.f32.partialorder %v1111, inf
    %v1121 = vsel %vm1120, %v1111, %v1119
    %vm1122 = vcmp.eq.f32.partialorder %v1111, 0.0
    %v1123 = vand.u32 %v1111, 2147483648
    %v1124 = vsel %vm1122, %v1123, %v1121
    %v1125 = vrsqrt.pop %v1112
    %v1126 = vmul.f32 %v1125, %v1112
    %v1127 = vmul.f32 %v1126, %v1125
    %v1128 = vmul.f32 0.5, %v1127
    %v1129 = vsub.f32 1.5, %v1128
    %v1130 = vmul.f32 %v1125, %v1129
    %v1131 = vmul.f32 %v1112, %v1130
    %vm1132 = vcmp.eq.f32.partialorder %v1112, inf
    %v1133 = vsel %vm1132, %v1112, %v1131
    %vm1134 = vcmp.eq.f32.partialorder %v1112, 0.0
    %v1135 = vand.u32 %v1112, 2147483648
    %v1136 = vsel %vm1134, %v1135, %v1133
    %v1137 = vadd.f32 %v1124, 1e-06
    %v1138 = vadd.f32 %v1136, 1e-06
    %v1139 = vrcp.pop %v1137
    %v1140 = vrcp.pop %v1138
    %v1141 = vmul.f32 %v1101, %v1139
    %v1142 = vmul.f32 %v1102, %v1140
    %v1143 = vperm.slane %v1091, 0
    %v1144 = vmul.f32 %v1143, %v1141
    %v1145 = vmul.f32 %v1143, %v1142
    %v1146 = vperm.slane %v1092, 0
    %v1147 = vadd.f32 %v1144, %v1146
    %v1148 = vadd.f32 %v1145, %v1146
    %v1149 = vrot.slane %v1147, 7
    %v1150 = vrot.slane %v1148, 7
    %vm1151 = vcmp.lt.s32.totalorder %v125, 1
    %v1152 = vsel %vm1151, %v1149, %v1150
    %v1153 = vsel %vm1151, %v1150, %v1149
    %v1154 = vmul.f32 %v1153, %v133
    %v1155 = vmul.f32 %v1152, %v134
    %v1156 = vrot.slane %v1147, 6
    %v1157 = vrot.slane %v1148, 6
    %vm1158 = vcmp.lt.s32.totalorder %v125, 2
    %v1159 = vsel %vm1158, %v1156, %v1157
    %v1160 = vsel %vm1158, %v1157, %v1156
    %v1161 = vmul.f32 %v1160, %v139
    %v1162 = vmul.f32 %v1159, %v140
    %v1163 = vpack.c.bf16 %v1162, %v1161
    %v1164 = vld [vmem:[%s10] sm:$0xf]
    %v1165 = vld [vmem:[%s10 + $0x4] sm:$0xf]
    %v1166 = vld [vmem:[%s10 + $0x8] sm:$0xf]
    %v1167 = vld [vmem:[%s10 + $0xc] sm:$0xf]
    %v1168 = vld [vmem:[%s10 + $0x10] sm:$0xf]
    %v1169 = vld [vmem:[%s10 + $0x14] sm:$0xf]
    %v1170 = vld [vmem:[%s10 + $0x18] sm:$0xf]
    %v1171 = vld [vmem:[%s10 + $0x1c] sm:$0xf]
    %v1172 = vpack.c.bf16 %v1155, %v1154
    %s1173 = scalar_lea.vmem %s10, 32
    %v1174 = vld [vmem:[%s1173] sm:$0xf]
    %v1175 = vld [vmem:[%s1173 + $0x4] sm:$0xf]
    %v1176 = vld [vmem:[%s1173 + $0x8] sm:$0xf]
    %v1177 = vld [vmem:[%s1173 + $0xc] sm:$0xf]
    %v1178 = vld [vmem:[%s1173 + $0x10] sm:$0xf]
    %v1179 = vld [vmem:[%s1173 + $0x14] sm:$0xf]
    %v1180 = vld [vmem:[%s1173 + $0x18] sm:$0xf]
    %v1181 = vld [vmem:[%s1173 + $0x1c] sm:$0xf]
    %v1190 = vunpack.c.l.b16 %v1174
    %v1191 = vunpack.c.l.b16 %v1175
    %v1192 = vunpack.c.l.b16 %v1176
    %v1193 = vunpack.c.l.b16 %v1177
    %v1194 = vunpack.c.l.b16 %v1178
    %v1195 = vunpack.c.l.b16 %v1179
    %v1196 = vunpack.c.l.b16 %v1180
    %v1197 = vunpack.c.l.b16 %v1181
    %v1198 = vpack.c.b16 %v1191, %v1190
    %v1199 = vpack.c.b16 %v1193, %v1192
    %v1200 = vpack.c.b16 %v1195, %v1194
    %v1201 = vpack.c.b16 %v1197, %v1196
    %v1207 = vsel %vm238, %v1172, 0
    %1209 = vmatpush.bf16.msra.mxu0 0
    %1210 = vmatpush.bf16.msra.mxu0 0
    %1211 = vmatpush.bf16.msra.mxu0 0
    %1212 = vmatpush.bf16.msra.mxu0 0
    %1213 = vmatpush.bf16.msra.mxu0 %v1201
    %1214 = vmatpush.bf16.msra.mxu0 %v1200
    %1215 = vmatpush.bf16.msra.mxu0 %v1199
    %1216 = vmatpush.bf16.msra.mxu0 %v1198
    %1217 = vmatmul.bf16.gmra.mxu0 %v1207
    %v1218 = vpop.f32.mrf.mxu0
    %v1219 = vadd.f32 0.0, %v1218
    %v1220 = vpop.f32.mrf.mxu0
    %v1221 = vadd.f32 0.0, %v1220
    %1222 = vdwg.mxu0
    %v1231 = vunpack.c.l.b16 %v1164
    %v1232 = vunpack.c.l.b16 %v1165
    %v1233 = vunpack.c.l.b16 %v1166
    %v1234 = vunpack.c.l.b16 %v1167
    %v1235 = vunpack.c.l.b16 %v1168
    %v1236 = vunpack.c.l.b16 %v1169
    %v1237 = vunpack.c.l.b16 %v1170
    %v1238 = vunpack.c.l.b16 %v1171
    %v1239 = vpack.c.b16 %v1232, %v1231
    %v1240 = vpack.c.b16 %v1234, %v1233
    %v1241 = vpack.c.b16 %v1236, %v1235
    %v1242 = vpack.c.b16 %v1238, %v1237
    %v1248 = vsel %vm238, %v1163, 0
    %1250 = vmatpush.bf16.msra.mxu0 0
    %1251 = vmatpush.bf16.msra.mxu0 0
    %1252 = vmatpush.bf16.msra.mxu0 0
    %1253 = vmatpush.bf16.msra.mxu0 0
    %1254 = vmatpush.bf16.msra.mxu0 %v1242
    %1255 = vmatpush.bf16.msra.mxu0 %v1241
    %1256 = vmatpush.bf16.msra.mxu0 %v1240
    %1257 = vmatpush.bf16.msra.mxu0 %v1239
    %1258 = vmatmul.bf16.gmra.mxu0 %v1248
    %v1259 = vpop.f32.mrf.mxu0
    %v1260 = vadd.f32 %v1219, %v1259
    %v1261 = vpop.f32.mrf.mxu0
    %v1262 = vadd.f32 %v1221, %v1261
    %1263 = vdwg.mxu0
    %v1264 = vpack.c.bf16 %v1148, %v1147
    %s1265 = scalar_lea.vmem %s10, 64
    %v1266 = vld [vmem:[%s1265] sm:$0xf]
    %v1267 = vld [vmem:[%s1265 + $0x4] sm:$0xf]
    %v1268 = vld [vmem:[%s1265 + $0x8] sm:$0xf]
    %v1269 = vld [vmem:[%s1265 + $0xc] sm:$0xf]
    %v1270 = vld [vmem:[%s1265 + $0x10] sm:$0xf]
    %v1271 = vld [vmem:[%s1265 + $0x14] sm:$0xf]
    %v1272 = vld [vmem:[%s1265 + $0x18] sm:$0xf]
    %v1273 = vld [vmem:[%s1265 + $0x1c] sm:$0xf]
    %v1282 = vunpack.c.l.b16 %v1266
    %v1283 = vunpack.c.l.b16 %v1267
    %v1284 = vunpack.c.l.b16 %v1268
    %v1285 = vunpack.c.l.b16 %v1269
    %v1286 = vunpack.c.l.b16 %v1270
    %v1287 = vunpack.c.l.b16 %v1271
    %v1288 = vunpack.c.l.b16 %v1272
    %v1289 = vunpack.c.l.b16 %v1273
    %v1290 = vpack.c.b16 %v1283, %v1282
    %v1291 = vpack.c.b16 %v1285, %v1284
    %v1292 = vpack.c.b16 %v1287, %v1286
    %v1293 = vpack.c.b16 %v1289, %v1288
    %v1299 = vsel %vm238, %v1264, 0
    %1301 = vmatpush.bf16.msra.mxu0 0
    %1302 = vmatpush.bf16.msra.mxu0 0
    %1303 = vmatpush.bf16.msra.mxu0 0
    %1304 = vmatpush.bf16.msra.mxu0 0
    %1305 = vmatpush.bf16.msra.mxu0 %v1293
    %1306 = vmatpush.bf16.msra.mxu0 %v1292
    %1307 = vmatpush.bf16.msra.mxu0 %v1291
    %1308 = vmatpush.bf16.msra.mxu0 %v1290
    %1309 = vmatmul.bf16.gmra.mxu0 %v1299
    %v1310 = vpop.f32.mrf.mxu0
    %v1311 = vadd.f32 0.0, %v1310
    %v1312 = vpop.f32.mrf.mxu0
    %v1313 = vadd.f32 0.0, %v1312
    %1314 = vdwg.mxu0
    %v1315 = vadd.f32 %v1260, %v1311
    %v1316 = vadd.f32 %v1262, %v1313
    %v1317 = vld [vmem:[#allocation8 + $0x16] sm:$0x1]
    %v1318 = vperm.slane %v1317, 0
    %v1319 = vadd.f32 %v1315, %v1318
    %v1320 = vadd.f32 %v1316, %v1318
    %v1321 = vmax.f32 %v1319, 0.0
    %v1322 = vmax.f32 %v1320, 0.0
    %v1323 = vrot.slane %v1321, 7
    %v1324 = vrot.slane %v1322, 7
    %v1325 = vsel %vm1151, %v1323, %v1324
    %v1326 = vsel %vm1151, %v1324, %v1323
    %v1327 = vmul.f32 %v1326, %v133
    %v1328 = vmul.f32 %v1325, %v134
    %v1329 = vrot.slane %v1321, 6
    %v1330 = vrot.slane %v1322, 6
    %v1331 = vsel %vm1158, %v1329, %v1330
    %v1332 = vsel %vm1158, %v1330, %v1329
    %v1333 = vmul.f32 %v1332, %v139
    %v1334 = vmul.f32 %v1331, %v140
    %v1335 = vpack.c.bf16 %v1334, %v1333
    %v1336 = vld [vmem:[%s11] sm:$0xf]
    %v1337 = vld [vmem:[%s11 + $0x4] sm:$0xf]
    %v1338 = vld [vmem:[%s11 + $0x8] sm:$0xf]
    %v1339 = vld [vmem:[%s11 + $0xc] sm:$0xf]
    %v1340 = vld [vmem:[%s11 + $0x10] sm:$0xf]
    %v1341 = vld [vmem:[%s11 + $0x14] sm:$0xf]
    %v1342 = vld [vmem:[%s11 + $0x18] sm:$0xf]
    %v1343 = vld [vmem:[%s11 + $0x1c] sm:$0xf]
    %v1344 = vld [vmem:[%s11 + $0x20] sm:$0xf]
    %v1345 = vld [vmem:[%s11 + $0x24] sm:$0xf]
    %v1346 = vld [vmem:[%s11 + $0x28] sm:$0xf]
    %v1347 = vld [vmem:[%s11 + $0x2c] sm:$0xf]
    %v1348 = vld [vmem:[%s11 + $0x30] sm:$0xf]
    %v1349 = vld [vmem:[%s11 + $0x34] sm:$0xf]
    %v1350 = vld [vmem:[%s11 + $0x38] sm:$0xf]
    %v1351 = vld [vmem:[%s11 + $0x3c] sm:$0xf]
    %v1352 = vpack.c.bf16 %v1328, %v1327
    %s1353 = scalar_lea.vmem %s11, 64
    %v1354 = vld [vmem:[%s1353] sm:$0xf]
    %v1355 = vld [vmem:[%s1353 + $0x4] sm:$0xf]
    %v1356 = vld [vmem:[%s1353 + $0x8] sm:$0xf]
    %v1357 = vld [vmem:[%s1353 + $0xc] sm:$0xf]
    %v1358 = vld [vmem:[%s1353 + $0x10] sm:$0xf]
    %v1359 = vld [vmem:[%s1353 + $0x14] sm:$0xf]
    %v1360 = vld [vmem:[%s1353 + $0x18] sm:$0xf]
    %v1361 = vld [vmem:[%s1353 + $0x1c] sm:$0xf]
    %v1362 = vld [vmem:[%s1353 + $0x20] sm:$0xf]
    %v1363 = vld [vmem:[%s1353 + $0x24] sm:$0xf]
    %v1364 = vld [vmem:[%s1353 + $0x28] sm:$0xf]
    %v1365 = vld [vmem:[%s1353 + $0x2c] sm:$0xf]
    %v1366 = vld [vmem:[%s1353 + $0x30] sm:$0xf]
    %v1367 = vld [vmem:[%s1353 + $0x34] sm:$0xf]
    %v1368 = vld [vmem:[%s1353 + $0x38] sm:$0xf]
    %v1369 = vld [vmem:[%s1353 + $0x3c] sm:$0xf]
    %v1386 = vunpack.c.l.b16 %v1354
    %v1387 = vunpack.c.l.b16 %v1355
    %v1388 = vunpack.c.l.b16 %v1356
    %v1389 = vunpack.c.l.b16 %v1357
    %v1390 = vunpack.c.l.b16 %v1358
    %v1391 = vunpack.c.l.b16 %v1359
    %v1392 = vunpack.c.l.b16 %v1360
    %v1393 = vunpack.c.l.b16 %v1361
    %v1394 = vunpack.c.l.b16 %v1362
    %v1395 = vunpack.c.l.b16 %v1363
    %v1396 = vunpack.c.l.b16 %v1364
    %v1397 = vunpack.c.l.b16 %v1365
    %v1398 = vunpack.c.l.b16 %v1366
    %v1399 = vunpack.c.l.b16 %v1367
    %v1400 = vunpack.c.l.b16 %v1368
    %v1401 = vunpack.c.l.b16 %v1369
    %v1402 = vpack.c.b16 %v1387, %v1386
    %v1403 = vpack.c.b16 %v1389, %v1388
    %v1404 = vpack.c.b16 %v1391, %v1390
    %v1405 = vpack.c.b16 %v1393, %v1392
    %v1406 = vpack.c.b16 %v1395, %v1394
    %v1407 = vpack.c.b16 %v1397, %v1396
    %v1408 = vpack.c.b16 %v1399, %v1398
    %v1409 = vpack.c.b16 %v1401, %v1400
    %1418 = vmatpush.bf16.msra.mxu0 %v1409
    %1419 = vmatpush.bf16.msra.mxu0 %v1408
    %1420 = vmatpush.bf16.msra.mxu0 %v1407
    %1421 = vmatpush.bf16.msra.mxu0 %v1406
    %1422 = vmatpush.bf16.msra.mxu0 %v1405
    %1423 = vmatpush.bf16.msra.mxu0 %v1404
    %1424 = vmatpush.bf16.msra.mxu0 %v1403
    %1425 = vmatpush.bf16.msra.mxu0 %v1402
    %1426 = vmatmul.bf16.gmra.mxu0 %v1352
    %v1427 = vpop.f32.mrf.mxu0
    %v1428 = vadd.f32 0.0, %v1427
    %v1429 = vpop.f32.mrf.mxu0
    %v1430 = vadd.f32 0.0, %v1429
    %1431 = vdwg.mxu0
    %v1448 = vunpack.c.l.b16 %v1336
    %v1449 = vunpack.c.l.b16 %v1337
    %v1450 = vunpack.c.l.b16 %v1338
    %v1451 = vunpack.c.l.b16 %v1339
    %v1452 = vunpack.c.l.b16 %v1340
    %v1453 = vunpack.c.l.b16 %v1341
    %v1454 = vunpack.c.l.b16 %v1342
    %v1455 = vunpack.c.l.b16 %v1343
    %v1456 = vunpack.c.l.b16 %v1344
    %v1457 = vunpack.c.l.b16 %v1345
    %v1458 = vunpack.c.l.b16 %v1346
    %v1459 = vunpack.c.l.b16 %v1347
    %v1460 = vunpack.c.l.b16 %v1348
    %v1461 = vunpack.c.l.b16 %v1349
    %v1462 = vunpack.c.l.b16 %v1350
    %v1463 = vunpack.c.l.b16 %v1351
    %v1464 = vpack.c.b16 %v1449, %v1448
    %v1465 = vpack.c.b16 %v1451, %v1450
    %v1466 = vpack.c.b16 %v1453, %v1452
    %v1467 = vpack.c.b16 %v1455, %v1454
    %v1468 = vpack.c.b16 %v1457, %v1456
    %v1469 = vpack.c.b16 %v1459, %v1458
    %v1470 = vpack.c.b16 %v1461, %v1460
    %v1471 = vpack.c.b16 %v1463, %v1462
    %1480 = vmatpush.bf16.msra.mxu0 %v1471
    %1481 = vmatpush.bf16.msra.mxu0 %v1470
    %1482 = vmatpush.bf16.msra.mxu0 %v1469
    %1483 = vmatpush.bf16.msra.mxu0 %v1468
    %1484 = vmatpush.bf16.msra.mxu0 %v1467
    %1485 = vmatpush.bf16.msra.mxu0 %v1466
    %1486 = vmatpush.bf16.msra.mxu0 %v1465
    %1487 = vmatpush.bf16.msra.mxu0 %v1464
    %1488 = vmatmul.bf16.gmra.mxu0 %v1335
    %v1489 = vpop.f32.mrf.mxu0
    %v1490 = vadd.f32 %v1428, %v1489
    %v1491 = vpop.f32.mrf.mxu0
    %v1492 = vadd.f32 %v1430, %v1491
    %1493 = vdwg.mxu0
    %v1494 = vpack.c.bf16 %v1322, %v1321
    %s1495 = scalar_lea.vmem %s11, 128
    %v1496 = vld [vmem:[%s1495] sm:$0xf]
    %v1497 = vld [vmem:[%s1495 + $0x4] sm:$0xf]
    %v1498 = vld [vmem:[%s1495 + $0x8] sm:$0xf]
    %v1499 = vld [vmem:[%s1495 + $0xc] sm:$0xf]
    %v1500 = vld [vmem:[%s1495 + $0x10] sm:$0xf]
    %v1501 = vld [vmem:[%s1495 + $0x14] sm:$0xf]
    %v1502 = vld [vmem:[%s1495 + $0x18] sm:$0xf]
    %v1503 = vld [vmem:[%s1495 + $0x1c] sm:$0xf]
    %v1504 = vld [vmem:[%s1495 + $0x20] sm:$0xf]
    %v1505 = vld [vmem:[%s1495 + $0x24] sm:$0xf]
    %v1506 = vld [vmem:[%s1495 + $0x28] sm:$0xf]
    %v1507 = vld [vmem:[%s1495 + $0x2c] sm:$0xf]
    %v1508 = vld [vmem:[%s1495 + $0x30] sm:$0xf]
    %v1509 = vld [vmem:[%s1495 + $0x34] sm:$0xf]
    %v1510 = vld [vmem:[%s1495 + $0x38] sm:$0xf]
    %v1511 = vld [vmem:[%s1495 + $0x3c] sm:$0xf]
    %v1528 = vunpack.c.l.b16 %v1496
    %v1529 = vunpack.c.l.b16 %v1497
    %v1530 = vunpack.c.l.b16 %v1498
    %v1531 = vunpack.c.l.b16 %v1499
    %v1532 = vunpack.c.l.b16 %v1500
    %v1533 = vunpack.c.l.b16 %v1501
    %v1534 = vunpack.c.l.b16 %v1502
    %v1535 = vunpack.c.l.b16 %v1503
    %v1536 = vunpack.c.l.b16 %v1504
    %v1537 = vunpack.c.l.b16 %v1505
    %v1538 = vunpack.c.l.b16 %v1506
    %v1539 = vunpack.c.l.b16 %v1507
    %v1540 = vunpack.c.l.b16 %v1508
    %v1541 = vunpack.c.l.b16 %v1509
    %v1542 = vunpack.c.l.b16 %v1510
    %v1543 = vunpack.c.l.b16 %v1511
    %v1544 = vpack.c.b16 %v1529, %v1528
    %v1545 = vpack.c.b16 %v1531, %v1530
    %v1546 = vpack.c.b16 %v1533, %v1532
    %v1547 = vpack.c.b16 %v1535, %v1534
    %v1548 = vpack.c.b16 %v1537, %v1536
    %v1549 = vpack.c.b16 %v1539, %v1538
    %v1550 = vpack.c.b16 %v1541, %v1540
    %v1551 = vpack.c.b16 %v1543, %v1542
    %1560 = vmatpush.bf16.msra.mxu0 %v1551
    %1561 = vmatpush.bf16.msra.mxu0 %v1550
    %1562 = vmatpush.bf16.msra.mxu0 %v1549
    %1563 = vmatpush.bf16.msra.mxu0 %v1548
    %1564 = vmatpush.bf16.msra.mxu0 %v1547
    %1565 = vmatpush.bf16.msra.mxu0 %v1546
    %1566 = vmatpush.bf16.msra.mxu0 %v1545
    %1567 = vmatpush.bf16.msra.mxu0 %v1544
    %1568 = vmatmul.bf16.gmra.mxu0 %v1494
    %v1569 = vpop.f32.mrf.mxu0
    %v1570 = vadd.f32 0.0, %v1569
    %v1571 = vpop.f32.mrf.mxu0
    %v1572 = vadd.f32 0.0, %v1571
    %1573 = vdwg.mxu0
    %v1574 = vadd.f32 %v1490, %v1570
    %v1575 = vadd.f32 %v1492, %v1572
    %v1576 = vld [vmem:[#allocation8 + $0x17] sm:$0x1]
    %v1577 = vperm.slane %v1576, 0
    %v1578 = vadd.f32 %v1574, %v1577
    %v1579 = vadd.f32 %v1575, %v1577
    %v1580 = vadd.f32 %v1089, %v1578
    %v1581 = vadd.f32 %v1090, %v1579
    %v1582 = vld [vmem:[#allocation8 + $0x18] sm:$0x1]
    %v1583 = vld [vmem:[#allocation8 + $0x19] sm:$0x1]
    %v1584 = vsel %vm238, %v1580, 0.0
    %1585 = vadd.xlane.f32.xlu0 %v1584
    %v1586 = vpop.xlane.xlu0 %1585
    %v1587 = vsel %vm238, %v1581, 0.0
    %1588 = vadd.xlane.f32.xlu0 %v1587
    %v1589 = vpop.xlane.xlu0 %1588
    %v1590 = vmul.f32 %v1586, %v251
    %v1591 = vmul.f32 %v1589, %v251
    %v1592 = vsub.f32 %v1580, %v1590
    %v1593 = vsub.f32 %v1581, %v1591
    %v1594 = vmul.f32 %v1592, %v1592
    %v1595 = vmul.f32 %v1593, %v1593
    %v1596 = vsel %vm238, %v1594, 0.0
    %1597 = vadd.xlane.f32.xlu0 %v1596
    %v1598 = vpop.xlane.xlu0 %1597
    %v1599 = vsel %vm238, %v1595, 0.0
    %1600 = vadd.xlane.f32.xlu0 %v1599
    %v1601 = vpop.xlane.xlu0 %1600
    %v1602 = vmul.f32 %v1598, 0.015873017
    %v1603 = vmul.f32 %v1601, 0.015873017
    %v1604 = vrsqrt.pop %v1602
    %v1605 = vmul.f32 %v1604, %v1602
    %v1606 = vmul.f32 %v1605, %v1604
    %v1607 = vmul.f32 0.5, %v1606
    %v1608 = vsub.f32 1.5, %v1607
    %v1609 = vmul.f32 %v1604, %v1608
    %v1610 = vmul.f32 %v1602, %v1609
    %vm1611 = vcmp.eq.f32.partialorder %v1602, inf
    %v1612 = vsel %vm1611, %v1602, %v1610
    %vm1613 = vcmp.eq.f32.partialorder %v1602, 0.0
    %v1614 = vand.u32 %v1602, 2147483648
    %v1615 = vsel %vm1613, %v1614, %v1612
    %v1616 = vrsqrt.pop %v1603
    %v1617 = vmul.f32 %v1616, %v1603
    %v1618 = vmul.f32 %v1617, %v1616
    %v1619 = vmul.f32 0.5, %v1618
    %v1620 = vsub.f32 1.5, %v1619
    %v1621 = vmul.f32 %v1616, %v1620
    %v1622 = vmul.f32 %v1603, %v1621
    %vm1623 = vcmp.eq.f32.partialorder %v1603, inf
    %v1624 = vsel %vm1623, %v1603, %v1622
    %vm1625 = vcmp.eq.f32.partialorder %v1603, 0.0
    %v1626 = vand.u32 %v1603, 2147483648
    %v1627 = vsel %vm1625, %v1626, %v1624
    %v1628 = vadd.f32 %v1615, 1e-06
    %v1629 = vadd.f32 %v1627, 1e-06
    %v1630 = vrcp.pop %v1628
    %v1631 = vrcp.pop %v1629
    %v1632 = vmul.f32 %v1592, %v1630
    %v1633 = vmul.f32 %v1593, %v1631
    %v1634 = vperm.slane %v1582, 0
    %v1635 = vmul.f32 %v1634, %v1632
    %v1636 = vmul.f32 %v1634, %v1633
    %v1637 = vperm.slane %v1583, 0
    %v1638 = vadd.f32 %v1635, %v1637
    %v1639 = vadd.f32 %v1636, %v1637
    %v1640 = vpack.c.bf16 %v1639, %v1638
    %s1641 = scalar_lea.vmem %s5, 64
    %v1642 = vld [vmem:[%s1641] sm:$0xff]
    %v1643 = vld [vmem:[%s1641 + $0x8] sm:$0xff]
    %v1644 = vld [vmem:[%s1641 + $0x10] sm:$0xff]
    %v1645 = vld [vmem:[%s1641 + $0x18] sm:$0xff]
    %v1646 = vld [vmem:[%s1641 + $0x20] sm:$0xff]
    %v1647 = vld [vmem:[%s1641 + $0x28] sm:$0xff]
    %v1648 = vld [vmem:[%s1641 + $0x30] sm:$0xff]
    %v1649 = vld [vmem:[%s1641 + $0x38] sm:$0xff]
    %v1658 = vunpack.c.l.b16 %v1642
    %v1659 = vunpack.c.h.b16 %v1642
    %v1660 = vunpack.c.l.b16 %v1643
    %v1661 = vunpack.c.h.b16 %v1643
    %v1662 = vunpack.c.l.b16 %v1644
    %v1663 = vunpack.c.h.b16 %v1644
    %v1664 = vunpack.c.l.b16 %v1645
    %v1665 = vunpack.c.h.b16 %v1645
    %v1666 = vunpack.c.l.b16 %v1646
    %v1667 = vunpack.c.h.b16 %v1646
    %v1668 = vunpack.c.l.b16 %v1647
    %v1669 = vunpack.c.h.b16 %v1647
    %v1670 = vunpack.c.l.b16 %v1648
    %v1671 = vunpack.c.h.b16 %v1648
    %v1672 = vunpack.c.l.b16 %v1649
    %v1673 = vunpack.c.h.b16 %v1649
    %v1674 = vpack.c.b16 %v1660, %v1658
    %v1675 = vpack.c.b16 %v1661, %v1659
    %v1676 = vpack.c.b16 %v1664, %v1662
    %v1677 = vpack.c.b16 %v1665, %v1663
    %v1678 = vpack.c.b16 %v1668, %v1666
    %v1679 = vpack.c.b16 %v1669, %v1667
    %v1680 = vpack.c.b16 %v1672, %v1670
    %v1681 = vpack.c.b16 %v1673, %v1671
    %v1691 = vsel %vm238, %v1640, 0
    %1693 = vmatpush.bf16.msra.mxu0 0
    %1694 = vmatpush.bf16.msra.mxu0 0
    %1695 = vmatpush.bf16.msra.mxu0 0
    %1696 = vmatpush.bf16.msra.mxu0 0
    %1697 = vmatpush.bf16.msra.mxu0 %v1680
    %1698 = vmatpush.bf16.msra.mxu0 %v1678
    %1699 = vmatpush.bf16.msra.mxu0 %v1676
    %1700 = vmatpush.bf16.msra.mxu0 %v1674
    %1701 = vmatmul.bf16.gmra.mxu0 %v1691
    %v1702 = vpop.f32.mrf.mxu0
    %v1703 = vadd.f32 0.0, %v1702
    %v1704 = vpop.f32.mrf.mxu0
    %v1705 = vadd.f32 0.0, %v1704
    %1706 = vdwg.mxu0
    %1707 = vmatpush.bf16.msra.mxu0 0
    %1708 = vmatpush.bf16.msra.mxu0 0
    %1709 = vmatpush.bf16.msra.mxu0 0
    %1710 = vmatpush.bf16.msra.mxu0 0
    %1711 = vmatpush.bf16.msra.mxu0 %v1681
    %1712 = vmatpush.bf16.msra.mxu0 %v1679
    %1713 = vmatpush.bf16.msra.mxu0 %v1677
    %1714 = vmatpush.bf16.msra.mxu0 %v1675
    %1715 = vmatmul.bf16.gmra.mxu0 %v1691
    %v1716 = vpop.f32.mrf.mxu0
    %v1717 = vadd.f32 0.0, %v1716
    %v1718 = vpop.f32.mrf.mxu0
    %v1719 = vadd.f32 0.0, %v1718
    %1720 = vdwg.mxu0
    %v1721 = vmul.f32 %v1703, 0.25
    %v1722 = vmul.f32 %v1705, 0.25
    %v1723 = vpack.c.bf16 %v1705, %v1703
    %v1724 = vpack.c.bf16 %v1719, %v1717
    %s1725 = scalar_lea.vmem %s6, 32
    %v1726 = vld [vmem:[%s1725] sm:$0xf]
    %v1727 = vld [vmem:[%s1725 + $0x4] sm:$0xf]
    %v1728 = vld [vmem:[%s1725 + $0x8] sm:$0xf]
    %v1729 = vld [vmem:[%s1725 + $0xc] sm:$0xf]
    %v1730 = vld [vmem:[%s1725 + $0x10] sm:$0xf]
    %v1731 = vld [vmem:[%s1725 + $0x14] sm:$0xf]
    %v1732 = vld [vmem:[%s1725 + $0x18] sm:$0xf]
    %v1733 = vld [vmem:[%s1725 + $0x1c] sm:$0xf]
    %v1734 = vmul.f32 %v1721, %v174
    %v1735 = vmul.f32 %v1722, %v175
    %v1736 = vmul.f32 %v1721, %v176
    %v1737 = vmul.f32 %v1722, %v177
    %v1738 = vmul.f32 %v1721, %v178
    %v1739 = vmul.f32 %v1722, %v179
    %v1740 = vmul.f32 %v1721, %v180
    %v1741 = vmul.f32 %v1722, %v181
    %v1742 = vpack.c.bf16 %v1735, %v1734
    %v1743 = vpack.c.bf16 %v1737, %v1736
    %v1744 = vpack.c.bf16 %v1739, %v1738
    %v1745 = vpack.c.bf16 %v1741, %v1740
    %1747 = vrot.lane.b32.xlu0 %v1723, 64
    %v1748 = vpop.permute.xlu0 %1747
    %v1750 = vsel %vm238, %v1742, 0
    %v1753 = vsel %vm238, %v1743, 0
    %v1756 = vsel %vm238, %v1744, 0
    %v1759 = vsel %vm238, %v1745, 0
    %v1762 = vsel %vm238, %v1748, 0
    %1764 = vmatpush.bf16.xpose.msra.mxu0 0
    %1765 = vmatpush.bf16.xpose.msra.mxu0 0
    %1766 = vmatpush.bf16.xpose.msra.mxu0 0
    %1767 = vmatpush.bf16.xpose.msra.mxu0 0
    %1768 = vmatpush.bf16.xpose.msra.mxu0 0
    %1769 = vmatpush.bf16.xpose.msra.mxu0 0
    %1770 = vmatpush.bf16.xpose.msra.mxu0 0
    %1771 = vmatpush.bf16.xpose.msra.mxu0 %v1762
    %1772 = vmatmul.bf16.gmra.mxu0 %v1750
    %v1773 = vpop.f32.mrf.mxu0
    %v1774 = vadd.f32 %v182, %v1773
    %v1775 = vpop.f32.mrf.mxu0
    %v1776 = vadd.f32 %v183, %v1775
    %1777 = vmatmul.bf16.gmra.mxu0 %v1753
    %v1778 = vpop.f32.mrf.mxu0
    %v1779 = vadd.f32 %v182, %v1778
    %v1780 = vpop.f32.mrf.mxu0
    %v1781 = vadd.f32 %v183, %v1780
    %1782 = vmatmul.bf16.gmra.mxu0 %v1756
    %v1783 = vpop.f32.mrf.mxu0
    %v1784 = vadd.f32 %v182, %v1783
    %v1785 = vpop.f32.mrf.mxu0
    %v1786 = vadd.f32 %v183, %v1785
    %1787 = vmatmul.bf16.gmra.mxu0 %v1759
    %v1788 = vpop.f32.mrf.mxu0
    %v1789 = vadd.f32 %v182, %v1788
    %v1790 = vpop.f32.mrf.mxu0
    %v1791 = vadd.f32 %v183, %v1790
    %1792 = vdwg.mxu0
    %v1793 = vsel %vm453, %v1774, -inf
    %1794 = vmax.xlane.f32.xlu0 %v1793
    %v1795 = vpop.xlane.xlu0 %1794
    %v1796 = vsel %vm453, %v1776, -inf
    %1797 = vmax.xlane.f32.xlu0 %v1796
    %v1798 = vpop.xlane.xlu0 %1797
    %v1799 = vsel %vm453, %v1779, -inf
    %1800 = vmax.xlane.f32.xlu0 %v1799
    %v1801 = vpop.xlane.xlu0 %1800
    %v1802 = vsel %vm453, %v1781, -inf
    %1803 = vmax.xlane.f32.xlu0 %v1802
    %v1804 = vpop.xlane.xlu0 %1803
    %v1805 = vsel %vm453, %v1784, -inf
    %1806 = vmax.xlane.f32.xlu0 %v1805
    %v1807 = vpop.xlane.xlu0 %1806
    %v1808 = vsel %vm453, %v1786, -inf
    %1809 = vmax.xlane.f32.xlu0 %v1808
    %v1810 = vpop.xlane.xlu0 %1809
    %v1811 = vsel %vm453, %v1789, -inf
    %1812 = vmax.xlane.f32.xlu0 %v1811
    %v1813 = vpop.xlane.xlu0 %1812
    %v1814 = vsel %vm453, %v1791, -inf
    %1815 = vmax.xlane.f32.xlu0 %v1814
    %v1816 = vpop.xlane.xlu0 %1815
    %v1817 = vsub.f32 %v1774, %v1795
    %v1818 = vsub.f32 %v1776, %v1798
    %v1819 = vsub.f32 %v1779, %v1801
    %v1820 = vsub.f32 %v1781, %v1804
    %v1821 = vsub.f32 %v1784, %v1807
    %v1822 = vsub.f32 %v1786, %v1810
    %v1823 = vsub.f32 %v1789, %v1813
    %v1824 = vsub.f32 %v1791, %v1816
    %v1825 = vmul.f32 %v1817, 1.442695
    %v1826 = vpow.pop %v1825
    %v1827 = vmul.f32 %v1818, 1.442695
    %v1828 = vpow.pop %v1827
    %v1829 = vmul.f32 %v1819, 1.442695
    %v1830 = vpow.pop %v1829
    %v1831 = vmul.f32 %v1820, 1.442695
    %v1832 = vpow.pop %v1831
    %v1833 = vmul.f32 %v1821, 1.442695
    %v1834 = vpow.pop %v1833
    %v1835 = vmul.f32 %v1822, 1.442695
    %v1836 = vpow.pop %v1835
    %v1837 = vmul.f32 %v1823, 1.442695
    %v1838 = vpow.pop %v1837
    %v1839 = vmul.f32 %v1824, 1.442695
    %v1840 = vpow.pop %v1839
    %v1841 = vsel %vm453, %v1826, 0.0
    %1842 = vadd.xlane.f32.xlu0 %v1841
    %v1843 = vpop.xlane.xlu0 %1842
    %v1844 = vsel %vm453, %v1828, 0.0
    %1845 = vadd.xlane.f32.xlu0 %v1844
    %v1846 = vpop.xlane.xlu0 %1845
    %v1847 = vsel %vm453, %v1830, 0.0
    %1848 = vadd.xlane.f32.xlu0 %v1847
    %v1849 = vpop.xlane.xlu0 %1848
    %v1850 = vsel %vm453, %v1832, 0.0
    %1851 = vadd.xlane.f32.xlu0 %v1850
    %v1852 = vpop.xlane.xlu0 %1851
    %v1853 = vsel %vm453, %v1834, 0.0
    %1854 = vadd.xlane.f32.xlu0 %v1853
    %v1855 = vpop.xlane.xlu0 %1854
    %v1856 = vsel %vm453, %v1836, 0.0
    %1857 = vadd.xlane.f32.xlu0 %v1856
    %v1858 = vpop.xlane.xlu0 %1857
    %v1859 = vsel %vm453, %v1838, 0.0
    %1860 = vadd.xlane.f32.xlu0 %v1859
    %v1861 = vpop.xlane.xlu0 %1860
    %v1862 = vsel %vm453, %v1840, 0.0
    %1863 = vadd.xlane.f32.xlu0 %v1862
    %v1864 = vpop.xlane.xlu0 %1863
    %v1865 = vrcp.pop %v1843
    %v1866 = vrcp.pop %v1846
    %v1867 = vrcp.pop %v1849
    %v1868 = vrcp.pop %v1852
    %v1869 = vrcp.pop %v1855
    %v1870 = vrcp.pop %v1858
    %v1871 = vrcp.pop %v1861
    %v1872 = vrcp.pop %v1864
    %v1873 = vmul.f32 %v1826, %v1865
    %v1874 = vmul.f32 %v1828, %v1866
    %v1875 = vmul.f32 %v1830, %v1867
    %v1876 = vmul.f32 %v1832, %v1868
    %v1877 = vmul.f32 %v1834, %v1869
    %v1878 = vmul.f32 %v1836, %v1870
    %v1879 = vmul.f32 %v1838, %v1871
    %v1880 = vmul.f32 %v1840, %v1872
    %v1881 = vpack.c.bf16 %v1874, %v1873
    %v1882 = vpack.c.bf16 %v1876, %v1875
    %v1883 = vpack.c.bf16 %v1878, %v1877
    %v1884 = vpack.c.bf16 %v1880, %v1879
    %v1886 = vsel %vm453, %v1881, 0
    %v1889 = vsel %vm453, %v1882, 0
    %v1892 = vsel %vm453, %v1883, 0
    %v1895 = vsel %vm453, %v1884, 0
    %1897 = vmatpush.bf16.msra.mxu0 0
    %1898 = vmatpush.bf16.msra.mxu0 0
    %1899 = vmatpush.bf16.msra.mxu0 0
    %1900 = vmatpush.bf16.msra.mxu0 0
    %1901 = vmatpush.bf16.msra.mxu0 0
    %1902 = vmatpush.bf16.msra.mxu0 0
    %1903 = vmatpush.bf16.msra.mxu0 0
    %1904 = vmatpush.bf16.msra.mxu0 %v1724
    %1905 = vmatmul.bf16.gmra.mxu0 %v1886
    %v1906 = vpop.f32.mrf.mxu0
    %v1907 = vadd.f32 0.0, %v1906
    %v1908 = vpop.f32.mrf.mxu0
    %v1909 = vadd.f32 0.0, %v1908
    %1910 = vmatmul.bf16.gmra.mxu0 %v1889
    %v1911 = vpop.f32.mrf.mxu0
    %v1912 = vadd.f32 0.0, %v1911
    %v1913 = vpop.f32.mrf.mxu0
    %v1914 = vadd.f32 0.0, %v1913
    %1915 = vmatmul.bf16.gmra.mxu0 %v1892
    %v1916 = vpop.f32.mrf.mxu0
    %v1917 = vadd.f32 0.0, %v1916
    %v1918 = vpop.f32.mrf.mxu0
    %v1919 = vadd.f32 0.0, %v1918
    %1920 = vmatmul.bf16.gmra.mxu0 %v1895
    %v1921 = vpop.f32.mrf.mxu0
    %v1922 = vadd.f32 0.0, %v1921
    %v1923 = vpop.f32.mrf.mxu0
    %v1924 = vadd.f32 0.0, %v1923
    %1925 = vdwg.mxu0
    %v1926 = vmul.f32 %v1907, %v174
    %v1927 = vmul.f32 %v1909, %v175
    %v1928 = vmul.f32 %v1912, %v176
    %v1929 = vmul.f32 %v1914, %v177
    %v1930 = vmul.f32 %v1917, %v178
    %v1931 = vmul.f32 %v1919, %v179
    %v1932 = vmul.f32 %v1922, %v180
    %v1933 = vmul.f32 %v1924, %v181
    %v1934 = vadd.f32 %v1926, %v1928
    %v1935 = vadd.f32 %v1927, %v1929
    %v1936 = vadd.f32 %v1934, %v1930
    %v1937 = vadd.f32 %v1935, %v1931
    %v1938 = vadd.f32 %v1936, %v1932
    %v1939 = vadd.f32 %v1937, %v1933
    %v1940 = vpack.c.bf16 %v1939, %v1938
    %v1949 = vunpack.c.l.b16 %v1726
    %v1950 = vunpack.c.l.b16 %v1727
    %v1951 = vunpack.c.l.b16 %v1728
    %v1952 = vunpack.c.l.b16 %v1729
    %v1953 = vunpack.c.l.b16 %v1730
    %v1954 = vunpack.c.l.b16 %v1731
    %v1955 = vunpack.c.l.b16 %v1732
    %v1956 = vunpack.c.l.b16 %v1733
    %v1957 = vpack.c.b16 %v1950, %v1949
    %v1958 = vpack.c.b16 %v1952, %v1951
    %v1959 = vpack.c.b16 %v1954, %v1953
    %v1960 = vpack.c.b16 %v1956, %v1955
    %v1966 = vsel %vm238, %v1940, 0
    %1968 = vmatpush.bf16.msra.mxu0 0
    %1969 = vmatpush.bf16.msra.mxu0 0
    %1970 = vmatpush.bf16.msra.mxu0 0
    %1971 = vmatpush.bf16.msra.mxu0 0
    %1972 = vmatpush.bf16.msra.mxu0 %v1960
    %1973 = vmatpush.bf16.msra.mxu0 %v1959
    %1974 = vmatpush.bf16.msra.mxu0 %v1958
    %1975 = vmatpush.bf16.msra.mxu0 %v1957
    %1976 = vmatmul.bf16.gmra.mxu0 %v1966
    %v1977 = vpop.f32.mrf.mxu0
    %v1978 = vadd.f32 0.0, %v1977
    %v1979 = vpop.f32.mrf.mxu0
    %v1980 = vadd.f32 0.0, %v1979
    %1981 = vdwg.mxu0
    %v1982 = vadd.f32 %v1580, %v1978
    %v1983 = vadd.f32 %v1581, %v1980
    %v1984 = vld [vmem:[#allocation8 + $0x1a] sm:$0x1]
    %v1985 = vld [vmem:[#allocation8 + $0x1b] sm:$0x1]
    %v1986 = vsel %vm238, %v1982, 0.0
    %1987 = vadd.xlane.f32.xlu0 %v1986
    %v1988 = vpop.xlane.xlu0 %1987
    %v1989 = vsel %vm238, %v1983, 0.0
    %1990 = vadd.xlane.f32.xlu0 %v1989
    %v1991 = vpop.xlane.xlu0 %1990
    %v1992 = vmul.f32 %v1988, %v251
    %v1993 = vmul.f32 %v1991, %v251
    %v1994 = vsub.f32 %v1982, %v1992
    %v1995 = vsub.f32 %v1983, %v1993
    %v1996 = vmul.f32 %v1994, %v1994
    %v1997 = vmul.f32 %v1995, %v1995
    %v1998 = vsel %vm238, %v1996, 0.0
    %1999 = vadd.xlane.f32.xlu0 %v1998
    %v2000 = vpop.xlane.xlu0 %1999
    %v2001 = vsel %vm238, %v1997, 0.0
    %2002 = vadd.xlane.f32.xlu0 %v2001
    %v2003 = vpop.xlane.xlu0 %2002
    %v2004 = vmul.f32 %v2000, 0.015873017
    %v2005 = vmul.f32 %v2003, 0.015873017
    %v2006 = vrsqrt.pop %v2004
    %v2007 = vmul.f32 %v2006, %v2004
    %v2008 = vmul.f32 %v2007, %v2006
    %v2009 = vmul.f32 0.5, %v2008
    %v2010 = vsub.f32 1.5, %v2009
    %v2011 = vmul.f32 %v2006, %v2010
    %v2012 = vmul.f32 %v2004, %v2011
    %vm2013 = vcmp.eq.f32.partialorder %v2004, inf
    %v2014 = vsel %vm2013, %v2004, %v2012
    %vm2015 = vcmp.eq.f32.partialorder %v2004, 0.0
    %v2016 = vand.u32 %v2004, 2147483648
    %v2017 = vsel %vm2015, %v2016, %v2014
    %v2018 = vrsqrt.pop %v2005
    %v2019 = vmul.f32 %v2018, %v2005
    %v2020 = vmul.f32 %v2019, %v2018
    %v2021 = vmul.f32 0.5, %v2020
    %v2022 = vsub.f32 1.5, %v2021
    %v2023 = vmul.f32 %v2018, %v2022
    %v2024 = vmul.f32 %v2005, %v2023
    %vm2025 = vcmp.eq.f32.partialorder %v2005, inf
    %v2026 = vsel %vm2025, %v2005, %v2024
    %vm2027 = vcmp.eq.f32.partialorder %v2005, 0.0
    %v2028 = vand.u32 %v2005, 2147483648
    %v2029 = vsel %vm2027, %v2028, %v2026
    %v2030 = vadd.f32 %v2017, 1e-06
    %v2031 = vadd.f32 %v2029, 1e-06
    %v2032 = vrcp.pop %v2030
    %v2033 = vrcp.pop %v2031
    %v2034 = vmul.f32 %v1994, %v2032
    %v2035 = vmul.f32 %v1995, %v2033
    %v2036 = vperm.slane %v1984, 0
    %v2037 = vmul.f32 %v2036, %v2034
    %v2038 = vmul.f32 %v2036, %v2035
    %v2039 = vperm.slane %v1985, 0
    %v2040 = vadd.f32 %v2037, %v2039
    %v2041 = vadd.f32 %v2038, %v2039
    %v2042 = vpack.c.bf16 %v2041, %v2040
    %s2043 = scalar_lea.vmem %s7, 32
    %v2044 = vld [vmem:[%s2043] sm:$0xf]
    %v2045 = vld [vmem:[%s2043 + $0x4] sm:$0xf]
    %v2046 = vld [vmem:[%s2043 + $0x8] sm:$0xf]
    %v2047 = vld [vmem:[%s2043 + $0xc] sm:$0xf]
    %v2048 = vld [vmem:[%s2043 + $0x10] sm:$0xf]
    %v2049 = vld [vmem:[%s2043 + $0x14] sm:$0xf]
    %v2050 = vld [vmem:[%s2043 + $0x18] sm:$0xf]
    %v2051 = vld [vmem:[%s2043 + $0x1c] sm:$0xf]
    %v2060 = vunpack.c.l.b16 %v2044
    %v2061 = vunpack.c.l.b16 %v2045
    %v2062 = vunpack.c.l.b16 %v2046
    %v2063 = vunpack.c.l.b16 %v2047
    %v2064 = vunpack.c.l.b16 %v2048
    %v2065 = vunpack.c.l.b16 %v2049
    %v2066 = vunpack.c.l.b16 %v2050
    %v2067 = vunpack.c.l.b16 %v2051
    %v2068 = vpack.c.b16 %v2061, %v2060
    %v2069 = vpack.c.b16 %v2063, %v2062
    %v2070 = vpack.c.b16 %v2065, %v2064
    %v2071 = vpack.c.b16 %v2067, %v2066
    %v2077 = vsel %vm238, %v2042, 0
    %2079 = vmatpush.bf16.msra.mxu0 0
    %2080 = vmatpush.bf16.msra.mxu0 0
    %2081 = vmatpush.bf16.msra.mxu0 0
    %2082 = vmatpush.bf16.msra.mxu0 0
    %2083 = vmatpush.bf16.msra.mxu0 %v2071
    %2084 = vmatpush.bf16.msra.mxu0 %v2070
    %2085 = vmatpush.bf16.msra.mxu0 %v2069
    %2086 = vmatpush.bf16.msra.mxu0 %v2068
    %2087 = vmatmul.bf16.gmra.mxu0 %v2077
    %v2088 = vpop.f32.mrf.mxu0
    %v2089 = vadd.f32 0.0, %v2088
    %v2090 = vpop.f32.mrf.mxu0
    %v2091 = vadd.f32 0.0, %v2090
    %2092 = vdwg.mxu0
    %v2093 = vmul.f32 %v2089, 0.25
    %v2094 = vmul.f32 %v2091, 0.25
    %s2095 = scalar_lea.vmem %s8, 32
    %v2096 = vld [vmem:[%s2095] sm:$0xf]
    %v2097 = vld [vmem:[%s2095 + $0x4] sm:$0xf]
    %v2098 = vld [vmem:[%s2095 + $0x8] sm:$0xf]
    %v2099 = vld [vmem:[%s2095 + $0xc] sm:$0xf]
    %v2100 = vld [vmem:[%s2095 + $0x10] sm:$0xf]
    %v2101 = vld [vmem:[%s2095 + $0x14] sm:$0xf]
    %v2102 = vld [vmem:[%s2095 + $0x18] sm:$0xf]
    %v2103 = vld [vmem:[%s2095 + $0x1c] sm:$0xf]
    %v2112 = vunpack.c.l.b16 %v2096
    %v2113 = vunpack.c.l.b16 %v2097
    %v2114 = vunpack.c.l.b16 %v2098
    %v2115 = vunpack.c.l.b16 %v2099
    %v2116 = vunpack.c.l.b16 %v2100
    %v2117 = vunpack.c.l.b16 %v2101
    %v2118 = vunpack.c.l.b16 %v2102
    %v2119 = vunpack.c.l.b16 %v2103
    %v2120 = vpack.c.b16 %v2113, %v2112
    %v2121 = vpack.c.b16 %v2115, %v2114
    %v2122 = vpack.c.b16 %v2117, %v2116
    %v2123 = vpack.c.b16 %v2119, %v2118
    %2128 = vmatpush.bf16.msra.mxu0 0
    %2129 = vmatpush.bf16.msra.mxu0 0
    %2130 = vmatpush.bf16.msra.mxu0 0
    %2131 = vmatpush.bf16.msra.mxu0 0
    %2132 = vmatpush.bf16.msra.mxu0 %v2123
    %2133 = vmatpush.bf16.msra.mxu0 %v2122
    %2134 = vmatpush.bf16.msra.mxu0 %v2121
    %2135 = vmatpush.bf16.msra.mxu0 %v2120
    %2136 = vmatmul.bf16.gmra.mxu0 %v788
    %v2137 = vpop.f32.mrf.mxu0
    %v2138 = vadd.f32 0.0, %v2137
    %v2139 = vpop.f32.mrf.mxu0
    %v2140 = vadd.f32 0.0, %v2139
    %2141 = vmatmul.bf16.gmra.mxu0 %v791
    %v2142 = vpop.f32.mrf.mxu0
    %v2143 = vadd.f32 0.0, %v2142
    %v2144 = vpop.f32.mrf.mxu0
    %2145 = vdwg.mxu0
    %v2146 = vpack.c.bf16 %v2140, %v2138
    %v2147 = vpack.c.bf16 %v2143, %v2143
    %s2148 = scalar_lea.vmem %s9, 32
    %v2149 = vld [vmem:[%s2148] sm:$0xf]
    %v2150 = vld [vmem:[%s2148 + $0x4] sm:$0xf]
    %v2151 = vld [vmem:[%s2148 + $0x8] sm:$0xf]
    %v2152 = vld [vmem:[%s2148 + $0xc] sm:$0xf]
    %v2153 = vld [vmem:[%s2148 + $0x10] sm:$0xf]
    %v2154 = vld [vmem:[%s2148 + $0x14] sm:$0xf]
    %v2155 = vld [vmem:[%s2148 + $0x18] sm:$0xf]
    %v2156 = vld [vmem:[%s2148 + $0x1c] sm:$0xf]
    %v2157 = vmul.f32 %v2093, %v174
    %v2158 = vmul.f32 %v2094, %v175
    %v2159 = vmul.f32 %v2093, %v176
    %v2160 = vmul.f32 %v2094, %v177
    %v2161 = vmul.f32 %v2093, %v178
    %v2162 = vmul.f32 %v2094, %v179
    %v2163 = vmul.f32 %v2093, %v180
    %v2164 = vmul.f32 %v2094, %v181
    %v2165 = vpack.c.bf16 %v2158, %v2157
    %v2166 = vpack.c.bf16 %v2160, %v2159
    %v2167 = vpack.c.bf16 %v2162, %v2161
    %v2168 = vpack.c.bf16 %v2164, %v2163
    %v2170 = vsel %vm238, %v2165, 0
    %v2173 = vsel %vm238, %v2166, 0
    %v2176 = vsel %vm238, %v2167, 0
    %v2179 = vsel %vm238, %v2168, 0
    %v2182 = vsel %vm238, %v2146, 0
    %v2185 = vsel %vm238, %v2147, 0
    %2187 = vmatpush.bf16.xpose.msra.mxu0 0
    %2188 = vmatpush.bf16.xpose.msra.mxu0 0
    %2189 = vmatpush.bf16.xpose.msra.mxu0 0
    %2190 = vmatpush.bf16.xpose.msra.mxu0 0
    %2191 = vmatpush.bf16.xpose.msra.mxu0 0
    %2192 = vmatpush.bf16.xpose.msra.mxu0 0
    %2193 = vmatpush.bf16.xpose.msra.mxu0 %v2185
    %2194 = vmatpush.bf16.xpose.msra.mxu0 %v2182
    %2195 = vmatmul.bf16.gmra.mxu0 %v2170
    %v2196 = vpop.f32.mrf.mxu0
    %v2197 = vadd.f32 %v836, %v2196
    %v2198 = vpop.f32.mrf.mxu0
    %v2199 = vadd.f32 %v838, %v2198
    %2200 = vmatmul.bf16.gmra.mxu0 %v2173
    %v2201 = vpop.f32.mrf.mxu0
    %v2202 = vadd.f32 %v836, %v2201
    %v2203 = vpop.f32.mrf.mxu0
    %v2204 = vadd.f32 %v838, %v2203
    %2205 = vmatmul.bf16.gmra.mxu0 %v2176
    %v2206 = vpop.f32.mrf.mxu0
    %v2207 = vadd.f32 %v836, %v2206
    %v2208 = vpop.f32.mrf.mxu0
    %v2209 = vadd.f32 %v838, %v2208
    %2210 = vmatmul.bf16.gmra.mxu0 %v2179
    %v2211 = vpop.f32.mrf.mxu0
    %v2212 = vadd.f32 %v836, %v2211
    %v2213 = vpop.f32.mrf.mxu0
    %v2214 = vadd.f32 %v838, %v2213
    %2215 = vdwg.mxu0
    %v2216 = vsel %vm888, %v2197, -inf
    %2217 = vmax.xlane.f32.xlu0 %v2216
    %v2218 = vpop.xlane.xlu0 %2217
    %v2219 = vsel %vm888, %v2199, -inf
    %2220 = vmax.xlane.f32.xlu0 %v2219
    %v2221 = vpop.xlane.xlu0 %2220
    %v2222 = vsel %vm888, %v2202, -inf
    %2223 = vmax.xlane.f32.xlu0 %v2222
    %v2224 = vpop.xlane.xlu0 %2223
    %v2225 = vsel %vm888, %v2204, -inf
    %2226 = vmax.xlane.f32.xlu0 %v2225
    %v2227 = vpop.xlane.xlu0 %2226
    %v2228 = vsel %vm888, %v2207, -inf
    %2229 = vmax.xlane.f32.xlu0 %v2228
    %v2230 = vpop.xlane.xlu0 %2229
    %v2231 = vsel %vm888, %v2209, -inf
    %2232 = vmax.xlane.f32.xlu0 %v2231
    %v2233 = vpop.xlane.xlu0 %2232
    %v2234 = vsel %vm888, %v2212, -inf
    %2235 = vmax.xlane.f32.xlu0 %v2234
    %v2236 = vpop.xlane.xlu0 %2235
    %v2237 = vsel %vm888, %v2214, -inf
    %2238 = vmax.xlane.f32.xlu0 %v2237
    %v2239 = vpop.xlane.xlu0 %2238
    %v2240 = vsub.f32 %v2197, %v2218
    %v2241 = vsub.f32 %v2199, %v2221
    %v2242 = vsub.f32 %v2202, %v2224
    %v2243 = vsub.f32 %v2204, %v2227
    %v2244 = vsub.f32 %v2207, %v2230
    %v2245 = vsub.f32 %v2209, %v2233
    %v2246 = vsub.f32 %v2212, %v2236
    %v2247 = vsub.f32 %v2214, %v2239
    %v2248 = vmul.f32 %v2240, 1.442695
    %v2249 = vpow.pop %v2248
    %v2250 = vmul.f32 %v2241, 1.442695
    %v2251 = vpow.pop %v2250
    %v2252 = vmul.f32 %v2242, 1.442695
    %v2253 = vpow.pop %v2252
    %v2254 = vmul.f32 %v2243, 1.442695
    %v2255 = vpow.pop %v2254
    %v2256 = vmul.f32 %v2244, 1.442695
    %v2257 = vpow.pop %v2256
    %v2258 = vmul.f32 %v2245, 1.442695
    %v2259 = vpow.pop %v2258
    %v2260 = vmul.f32 %v2246, 1.442695
    %v2261 = vpow.pop %v2260
    %v2262 = vmul.f32 %v2247, 1.442695
    %v2263 = vpow.pop %v2262
    %v2264 = vsel %vm888, %v2249, 0.0
    %2265 = vadd.xlane.f32.xlu0 %v2264
    %v2266 = vpop.xlane.xlu0 %2265
    %v2267 = vsel %vm888, %v2251, 0.0
    %2268 = vadd.xlane.f32.xlu0 %v2267
    %v2269 = vpop.xlane.xlu0 %2268
    %v2270 = vsel %vm888, %v2253, 0.0
    %2271 = vadd.xlane.f32.xlu0 %v2270
    %v2272 = vpop.xlane.xlu0 %2271
    %v2273 = vsel %vm888, %v2255, 0.0
    %2274 = vadd.xlane.f32.xlu0 %v2273
    %v2275 = vpop.xlane.xlu0 %2274
    %v2276 = vsel %vm888, %v2257, 0.0
    %2277 = vadd.xlane.f32.xlu0 %v2276
    %v2278 = vpop.xlane.xlu0 %2277
    %v2279 = vsel %vm888, %v2259, 0.0
    %2280 = vadd.xlane.f32.xlu0 %v2279
    %v2281 = vpop.xlane.xlu0 %2280
    %v2282 = vsel %vm888, %v2261, 0.0
    %2283 = vadd.xlane.f32.xlu0 %v2282
    %v2284 = vpop.xlane.xlu0 %2283
    %v2285 = vsel %vm888, %v2263, 0.0
    %2286 = vadd.xlane.f32.xlu0 %v2285
    %v2287 = vpop.xlane.xlu0 %2286
    %v2288 = vrcp.pop %v2266
    %v2289 = vrcp.pop %v2269
    %v2290 = vrcp.pop %v2272
    %v2291 = vrcp.pop %v2275
    %v2292 = vrcp.pop %v2278
    %v2293 = vrcp.pop %v2281
    %v2294 = vrcp.pop %v2284
    %v2295 = vrcp.pop %v2287
    %v2296 = vmul.f32 %v2249, %v2288
    %v2297 = vmul.f32 %v2251, %v2289
    %v2298 = vmul.f32 %v2253, %v2290
    %v2299 = vmul.f32 %v2255, %v2291
    %v2300 = vmul.f32 %v2257, %v2292
    %v2301 = vmul.f32 %v2259, %v2293
    %v2302 = vmul.f32 %v2261, %v2294
    %v2303 = vmul.f32 %v2263, %v2295
    %v2304 = vpack.c.bf16 %v2297, %v2296
    %v2305 = vpack.c.bf16 %v2299, %v2298
    %v2306 = vpack.c.bf16 %v2301, %v2300
    %v2307 = vpack.c.bf16 %v2303, %v2302
    %2310 = vrot.lane.b32.xlu0 %v2146, 64
    %v2311 = vpop.permute.xlu0 %2310
    %2312 = vrot.lane.b32.xlu0 %v2147, 64
    %v2313 = vpop.permute.xlu0 %2312
    %v2316 = vsel %vm888, %v2304, 0
    %v2319 = vsel %vm888, %v2305, 0
    %v2322 = vsel %vm888, %v2306, 0
    %v2325 = vsel %vm888, %v2307, 0
    %v2328 = vsel %vm1000, %v2313, 0
    %2330 = vmatpush.bf16.msra.mxu0 0
    %2331 = vmatpush.bf16.msra.mxu0 0
    %2332 = vmatpush.bf16.msra.mxu0 0
    %2333 = vmatpush.bf16.msra.mxu0 0
    %2334 = vmatpush.bf16.msra.mxu0 0
    %2335 = vmatpush.bf16.msra.mxu0 0
    %2336 = vmatpush.bf16.msra.mxu0 %v2328
    %2337 = vmatpush.bf16.msra.mxu0 %v2311
    %2338 = vmatmul.bf16.gmra.mxu0 %v2316
    %v2339 = vpop.f32.mrf.mxu0
    %v2340 = vadd.f32 0.0, %v2339
    %v2341 = vpop.f32.mrf.mxu0
    %v2342 = vadd.f32 0.0, %v2341
    %2343 = vmatmul.bf16.gmra.mxu0 %v2319
    %v2344 = vpop.f32.mrf.mxu0
    %v2345 = vadd.f32 0.0, %v2344
    %v2346 = vpop.f32.mrf.mxu0
    %v2347 = vadd.f32 0.0, %v2346
    %2348 = vmatmul.bf16.gmra.mxu0 %v2322
    %v2349 = vpop.f32.mrf.mxu0
    %v2350 = vadd.f32 0.0, %v2349
    %v2351 = vpop.f32.mrf.mxu0
    %v2352 = vadd.f32 0.0, %v2351
    %2353 = vmatmul.bf16.gmra.mxu0 %v2325
    %v2354 = vpop.f32.mrf.mxu0
    %v2355 = vadd.f32 0.0, %v2354
    %v2356 = vpop.f32.mrf.mxu0
    %v2357 = vadd.f32 0.0, %v2356
    %2358 = vdwg.mxu0
    %v2359 = vmul.f32 %v2340, %v174
    %v2360 = vmul.f32 %v2342, %v175
    %v2361 = vmul.f32 %v2345, %v176
    %v2362 = vmul.f32 %v2347, %v177
    %v2363 = vmul.f32 %v2350, %v178
    %v2364 = vmul.f32 %v2352, %v179
    %v2365 = vmul.f32 %v2355, %v180
    %v2366 = vmul.f32 %v2357, %v181
    %v2367 = vadd.f32 %v2359, %v2361
    %v2368 = vadd.f32 %v2360, %v2362
    %v2369 = vadd.f32 %v2367, %v2363
    %v2370 = vadd.f32 %v2368, %v2364
    %v2371 = vadd.f32 %v2369, %v2365
    %v2372 = vadd.f32 %v2370, %v2366
    %v2373 = vpack.c.bf16 %v2372, %v2371
    %v2382 = vunpack.c.l.b16 %v2149
    %v2383 = vunpack.c.l.b16 %v2150
    %v2384 = vunpack.c.l.b16 %v2151
    %v2385 = vunpack.c.l.b16 %v2152
    %v2386 = vunpack.c.l.b16 %v2153
    %v2387 = vunpack.c.l.b16 %v2154
    %v2388 = vunpack.c.l.b16 %v2155
    %v2389 = vunpack.c.l.b16 %v2156
    %v2390 = vpack.c.b16 %v2383, %v2382
    %v2391 = vpack.c.b16 %v2385, %v2384
    %v2392 = vpack.c.b16 %v2387, %v2386
    %v2393 = vpack.c.b16 %v2389, %v2388
    %v2399 = vsel %vm238, %v2373, 0
    %2401 = vmatpush.bf16.msra.mxu0 0
    %2402 = vmatpush.bf16.msra.mxu0 0
    %2403 = vmatpush.bf16.msra.mxu0 0
    %2404 = vmatpush.bf16.msra.mxu0 0
    %2405 = vmatpush.bf16.msra.mxu0 %v2393
    %2406 = vmatpush.bf16.msra.mxu0 %v2392
    %2407 = vmatpush.bf16.msra.mxu0 %v2391
    %2408 = vmatpush.bf16.msra.mxu0 %v2390
    %2409 = vmatmul.bf16.gmra.mxu0 %v2399
    %v2410 = vpop.f32.mrf.mxu0
    %v2411 = vadd.f32 0.0, %v2410
    %v2412 = vpop.f32.mrf.mxu0
    %v2413 = vadd.f32 0.0, %v2412
    %2414 = vdwg.mxu0
    %v2415 = vadd.f32 %v2197, %v2202
    %v2416 = vadd.f32 %v2199, %v2204
    %v2417 = vadd.f32 %v2415, %v2207
    %v2418 = vadd.f32 %v2416, %v2209
    %v2419 = vadd.f32 %v2417, %v2212
    %v2420 = vadd.f32 %v2418, %v2214
    %v2421 = vmul.f32 %v2419, 0.25
    %v2422 = vmul.f32 %v2420, 0.25
    %v2423 = vadd.f32 %v1982, %v2411
    %v2424 = vadd.f32 %v1983, %v2413
    %v2425 = vld [vmem:[#allocation8 + $0x1c] sm:$0x1]
    %v2426 = vld [vmem:[#allocation8 + $0x1d] sm:$0x1]
    %v2427 = vsel %vm238, %v2423, 0.0
    %2428 = vadd.xlane.f32.xlu0 %v2427
    %v2429 = vpop.xlane.xlu0 %2428
    %v2430 = vsel %vm238, %v2424, 0.0
    %2431 = vadd.xlane.f32.xlu0 %v2430
    %v2432 = vpop.xlane.xlu0 %2431
    %v2433 = vmul.f32 %v2429, %v251
    %v2434 = vmul.f32 %v2432, %v251
    %v2435 = vsub.f32 %v2423, %v2433
    %v2436 = vsub.f32 %v2424, %v2434
    %v2437 = vmul.f32 %v2435, %v2435
    %v2438 = vmul.f32 %v2436, %v2436
    %v2439 = vsel %vm238, %v2437, 0.0
    %2440 = vadd.xlane.f32.xlu0 %v2439
    %v2441 = vpop.xlane.xlu0 %2440
    %v2442 = vsel %vm238, %v2438, 0.0
    %2443 = vadd.xlane.f32.xlu0 %v2442
    %v2444 = vpop.xlane.xlu0 %2443
    %v2445 = vmul.f32 %v2441, 0.015873017
    %v2446 = vmul.f32 %v2444, 0.015873017
    %v2447 = vrsqrt.pop %v2445
    %v2448 = vmul.f32 %v2447, %v2445
    %v2449 = vmul.f32 %v2448, %v2447
    %v2450 = vmul.f32 0.5, %v2449
    %v2451 = vsub.f32 1.5, %v2450
    %v2452 = vmul.f32 %v2447, %v2451
    %v2453 = vmul.f32 %v2445, %v2452
    %vm2454 = vcmp.eq.f32.partialorder %v2445, inf
    %v2455 = vsel %vm2454, %v2445, %v2453
    %vm2456 = vcmp.eq.f32.partialorder %v2445, 0.0
    %v2457 = vand.u32 %v2445, 2147483648
    %v2458 = vsel %vm2456, %v2457, %v2455
    %v2459 = vrsqrt.pop %v2446
    %v2460 = vmul.f32 %v2459, %v2446
    %v2461 = vmul.f32 %v2460, %v2459
    %v2462 = vmul.f32 0.5, %v2461
    %v2463 = vsub.f32 1.5, %v2462
    %v2464 = vmul.f32 %v2459, %v2463
    %v2465 = vmul.f32 %v2446, %v2464
    %vm2466 = vcmp.eq.f32.partialorder %v2446, inf
    %v2467 = vsel %vm2466, %v2446, %v2465
    %vm2468 = vcmp.eq.f32.partialorder %v2446, 0.0
    %v2469 = vand.u32 %v2446, 2147483648
    %v2470 = vsel %vm2468, %v2469, %v2467
    %v2471 = vadd.f32 %v2458, 1e-06
    %v2472 = vadd.f32 %v2470, 1e-06
    %v2473 = vrcp.pop %v2471
    %v2474 = vrcp.pop %v2472
    %v2475 = vmul.f32 %v2435, %v2473
    %v2476 = vmul.f32 %v2436, %v2474
    %v2477 = vperm.slane %v2425, 0
    %v2478 = vmul.f32 %v2477, %v2475
    %v2479 = vmul.f32 %v2477, %v2476
    %v2480 = vperm.slane %v2426, 0
    %v2481 = vadd.f32 %v2478, %v2480
    %v2482 = vadd.f32 %v2479, %v2480
    %v2483 = vrot.slane %v2481, 7
    %v2484 = vrot.slane %v2482, 7
    %v2485 = vsel %vm1151, %v2483, %v2484
    %v2486 = vsel %vm1151, %v2484, %v2483
    %v2487 = vmul.f32 %v2486, %v133
    %v2488 = vmul.f32 %v2485, %v134
    %v2489 = vrot.slane %v2481, 6
    %v2490 = vrot.slane %v2482, 6
    %v2491 = vsel %vm1158, %v2489, %v2490
    %v2492 = vsel %vm1158, %v2490, %v2489
    %v2493 = vmul.f32 %v2492, %v139
    %v2494 = vmul.f32 %v2491, %v140
    %v2495 = vpack.c.bf16 %v2494, %v2493
    %s2496 = scalar_lea.vmem %s10, 96
    %v2497 = vld [vmem:[%s2496] sm:$0xf]
    %v2498 = vld [vmem:[%s2496 + $0x4] sm:$0xf]
    %v2499 = vld [vmem:[%s2496 + $0x8] sm:$0xf]
    %v2500 = vld [vmem:[%s2496 + $0xc] sm:$0xf]
    %v2501 = vld [vmem:[%s2496 + $0x10] sm:$0xf]
    %v2502 = vld [vmem:[%s2496 + $0x14] sm:$0xf]
    %v2503 = vld [vmem:[%s2496 + $0x18] sm:$0xf]
    %v2504 = vld [vmem:[%s2496 + $0x1c] sm:$0xf]
    %v2505 = vpack.c.bf16 %v2488, %v2487
    %s2506 = scalar_lea.vmem %s10, 128
    %v2507 = vld [vmem:[%s2506] sm:$0xf]
    %v2508 = vld [vmem:[%s2506 + $0x4] sm:$0xf]
    %v2509 = vld [vmem:[%s2506 + $0x8] sm:$0xf]
    %v2510 = vld [vmem:[%s2506 + $0xc] sm:$0xf]
    %v2511 = vld [vmem:[%s2506 + $0x10] sm:$0xf]
    %v2512 = vld [vmem:[%s2506 + $0x14] sm:$0xf]
    %v2513 = vld [vmem:[%s2506 + $0x18] sm:$0xf]
    %v2514 = vld [vmem:[%s2506 + $0x1c] sm:$0xf]
    %v2523 = vunpack.c.l.b16 %v2507
    %v2524 = vunpack.c.l.b16 %v2508
    %v2525 = vunpack.c.l.b16 %v2509
    %v2526 = vunpack.c.l.b16 %v2510
    %v2527 = vunpack.c.l.b16 %v2511
    %v2528 = vunpack.c.l.b16 %v2512
    %v2529 = vunpack.c.l.b16 %v2513
    %v2530 = vunpack.c.l.b16 %v2514
    %v2531 = vpack.c.b16 %v2524, %v2523
    %v2532 = vpack.c.b16 %v2526, %v2525
    %v2533 = vpack.c.b16 %v2528, %v2527
    %v2534 = vpack.c.b16 %v2530, %v2529
    %v2540 = vsel %vm238, %v2505, 0
    %2542 = vmatpush.bf16.msra.mxu0 0
    %2543 = vmatpush.bf16.msra.mxu0 0
    %2544 = vmatpush.bf16.msra.mxu0 0
    %2545 = vmatpush.bf16.msra.mxu0 0
    %2546 = vmatpush.bf16.msra.mxu0 %v2534
    %2547 = vmatpush.bf16.msra.mxu0 %v2533
    %2548 = vmatpush.bf16.msra.mxu0 %v2532
    %2549 = vmatpush.bf16.msra.mxu0 %v2531
    %2550 = vmatmul.bf16.gmra.mxu0 %v2540
    %v2551 = vpop.f32.mrf.mxu0
    %v2552 = vadd.f32 0.0, %v2551
    %v2553 = vpop.f32.mrf.mxu0
    %v2554 = vadd.f32 0.0, %v2553
    %2555 = vdwg.mxu0
    %v2564 = vunpack.c.l.b16 %v2497
    %v2565 = vunpack.c.l.b16 %v2498
    %v2566 = vunpack.c.l.b16 %v2499
    %v2567 = vunpack.c.l.b16 %v2500
    %v2568 = vunpack.c.l.b16 %v2501
    %v2569 = vunpack.c.l.b16 %v2502
    %v2570 = vunpack.c.l.b16 %v2503
    %v2571 = vunpack.c.l.b16 %v2504
    %v2572 = vpack.c.b16 %v2565, %v2564
    %v2573 = vpack.c.b16 %v2567, %v2566
    %v2574 = vpack.c.b16 %v2569, %v2568
    %v2575 = vpack.c.b16 %v2571, %v2570
    %v2581 = vsel %vm238, %v2495, 0
    %2583 = vmatpush.bf16.msra.mxu0 0
    %2584 = vmatpush.bf16.msra.mxu0 0
    %2585 = vmatpush.bf16.msra.mxu0 0
    %2586 = vmatpush.bf16.msra.mxu0 0
    %2587 = vmatpush.bf16.msra.mxu0 %v2575
    %2588 = vmatpush.bf16.msra.mxu0 %v2574
    %2589 = vmatpush.bf16.msra.mxu0 %v2573
    %2590 = vmatpush.bf16.msra.mxu0 %v2572
    %2591 = vmatmul.bf16.gmra.mxu0 %v2581
    %v2592 = vpop.f32.mrf.mxu0
    %v2593 = vadd.f32 %v2552, %v2592
    %v2594 = vpop.f32.mrf.mxu0
    %v2595 = vadd.f32 %v2554, %v2594
    %2596 = vdwg.mxu0
    %v2597 = vpack.c.bf16 %v2482, %v2481
    %s2598 = scalar_lea.vmem %s10, 160
    %v2599 = vld [vmem:[%s2598] sm:$0xf]
    %v2600 = vld [vmem:[%s2598 + $0x4] sm:$0xf]
    %v2601 = vld [vmem:[%s2598 + $0x8] sm:$0xf]
    %v2602 = vld [vmem:[%s2598 + $0xc] sm:$0xf]
    %v2603 = vld [vmem:[%s2598 + $0x10] sm:$0xf]
    %v2604 = vld [vmem:[%s2598 + $0x14] sm:$0xf]
    %v2605 = vld [vmem:[%s2598 + $0x18] sm:$0xf]
    %v2606 = vld [vmem:[%s2598 + $0x1c] sm:$0xf]
    %v2615 = vunpack.c.l.b16 %v2599
    %v2616 = vunpack.c.l.b16 %v2600
    %v2617 = vunpack.c.l.b16 %v2601
    %v2618 = vunpack.c.l.b16 %v2602
    %v2619 = vunpack.c.l.b16 %v2603
    %v2620 = vunpack.c.l.b16 %v2604
    %v2621 = vunpack.c.l.b16 %v2605
    %v2622 = vunpack.c.l.b16 %v2606
    %v2623 = vpack.c.b16 %v2616, %v2615
    %v2624 = vpack.c.b16 %v2618, %v2617
    %v2625 = vpack.c.b16 %v2620, %v2619
    %v2626 = vpack.c.b16 %v2622, %v2621
    %v2632 = vsel %vm238, %v2597, 0
    %2634 = vmatpush.bf16.msra.mxu0 0
    %2635 = vmatpush.bf16.msra.mxu0 0
    %2636 = vmatpush.bf16.msra.mxu0 0
    %2637 = vmatpush.bf16.msra.mxu0 0
    %2638 = vmatpush.bf16.msra.mxu0 %v2626
    %2639 = vmatpush.bf16.msra.mxu0 %v2625
    %2640 = vmatpush.bf16.msra.mxu0 %v2624
    %2641 = vmatpush.bf16.msra.mxu0 %v2623
    %2642 = vmatmul.bf16.gmra.mxu0 %v2632
    %v2643 = vpop.f32.mrf.mxu0
    %v2644 = vadd.f32 0.0, %v2643
    %v2645 = vpop.f32.mrf.mxu0
    %v2646 = vadd.f32 0.0, %v2645
    %2647 = vdwg.mxu0
    %v2648 = vadd.f32 %v2593, %v2644
    %v2649 = vadd.f32 %v2595, %v2646
    %v2650 = vld [vmem:[#allocation8 + $0x1e] sm:$0x1]
    %v2651 = vperm.slane %v2650, 0
    %v2652 = vadd.f32 %v2648, %v2651
    %v2653 = vadd.f32 %v2649, %v2651
    %v2654 = vmax.f32 %v2652, 0.0
    %v2655 = vmax.f32 %v2653, 0.0
    %v2656 = vrot.slane %v2654, 7
    %v2657 = vrot.slane %v2655, 7
    %v2658 = vsel %vm1151, %v2656, %v2657
    %v2659 = vsel %vm1151, %v2657, %v2656
    %v2660 = vmul.f32 %v2659, %v133
    %v2661 = vmul.f32 %v2658, %v134
    %v2662 = vrot.slane %v2654, 6
    %v2663 = vrot.slane %v2655, 6
    %v2664 = vsel %vm1158, %v2662, %v2663
    %v2665 = vsel %vm1158, %v2663, %v2662
    %v2666 = vmul.f32 %v2665, %v139
    %v2667 = vmul.f32 %v2664, %v140
    %v2668 = vpack.c.bf16 %v2667, %v2666
    %s2669 = scalar_lea.vmem %s11, 192
    %v2670 = vld [vmem:[%s2669] sm:$0xf]
    %v2671 = vld [vmem:[%s2669 + $0x4] sm:$0xf]
    %v2672 = vld [vmem:[%s2669 + $0x8] sm:$0xf]
    %v2673 = vld [vmem:[%s2669 + $0xc] sm:$0xf]
    %v2674 = vld [vmem:[%s2669 + $0x10] sm:$0xf]
    %v2675 = vld [vmem:[%s2669 + $0x14] sm:$0xf]
    %v2676 = vld [vmem:[%s2669 + $0x18] sm:$0xf]
    %v2677 = vld [vmem:[%s2669 + $0x1c] sm:$0xf]
    %v2678 = vld [vmem:[%s2669 + $0x20] sm:$0xf]
    %v2679 = vld [vmem:[%s2669 + $0x24] sm:$0xf]
    %v2680 = vld [vmem:[%s2669 + $0x28] sm:$0xf]
    %v2681 = vld [vmem:[%s2669 + $0x2c] sm:$0xf]
    %v2682 = vld [vmem:[%s2669 + $0x30] sm:$0xf]
    %v2683 = vld [vmem:[%s2669 + $0x34] sm:$0xf]
    %v2684 = vld [vmem:[%s2669 + $0x38] sm:$0xf]
    %v2685 = vld [vmem:[%s2669 + $0x3c] sm:$0xf]
    %v2686 = vpack.c.bf16 %v2661, %v2660
    %s2687 = scalar_lea.vmem %s11, 256
    %v2688 = vld [vmem:[%s2687] sm:$0xf]
    %v2689 = vld [vmem:[%s2687 + $0x4] sm:$0xf]
    %v2690 = vld [vmem:[%s2687 + $0x8] sm:$0xf]
    %v2691 = vld [vmem:[%s2687 + $0xc] sm:$0xf]
    %v2692 = vld [vmem:[%s2687 + $0x10] sm:$0xf]
    %v2693 = vld [vmem:[%s2687 + $0x14] sm:$0xf]
    %v2694 = vld [vmem:[%s2687 + $0x18] sm:$0xf]
    %v2695 = vld [vmem:[%s2687 + $0x1c] sm:$0xf]
    %v2696 = vld [vmem:[%s2687 + $0x20] sm:$0xf]
    %v2697 = vld [vmem:[%s2687 + $0x24] sm:$0xf]
    %v2698 = vld [vmem:[%s2687 + $0x28] sm:$0xf]
    %v2699 = vld [vmem:[%s2687 + $0x2c] sm:$0xf]
    %v2700 = vld [vmem:[%s2687 + $0x30] sm:$0xf]
    %v2701 = vld [vmem:[%s2687 + $0x34] sm:$0xf]
    %v2702 = vld [vmem:[%s2687 + $0x38] sm:$0xf]
    %v2703 = vld [vmem:[%s2687 + $0x3c] sm:$0xf]
    %v2720 = vunpack.c.l.b16 %v2688
    %v2721 = vunpack.c.l.b16 %v2689
    %v2722 = vunpack.c.l.b16 %v2690
    %v2723 = vunpack.c.l.b16 %v2691
    %v2724 = vunpack.c.l.b16 %v2692
    %v2725 = vunpack.c.l.b16 %v2693
    %v2726 = vunpack.c.l.b16 %v2694
    %v2727 = vunpack.c.l.b16 %v2695
    %v2728 = vunpack.c.l.b16 %v2696
    %v2729 = vunpack.c.l.b16 %v2697
    %v2730 = vunpack.c.l.b16 %v2698
    %v2731 = vunpack.c.l.b16 %v2699
    %v2732 = vunpack.c.l.b16 %v2700
    %v2733 = vunpack.c.l.b16 %v2701
    %v2734 = vunpack.c.l.b16 %v2702
    %v2735 = vunpack.c.l.b16 %v2703
    %v2736 = vpack.c.b16 %v2721, %v2720
    %v2737 = vpack.c.b16 %v2723, %v2722
    %v2738 = vpack.c.b16 %v2725, %v2724
    %v2739 = vpack.c.b16 %v2727, %v2726
    %v2740 = vpack.c.b16 %v2729, %v2728
    %v2741 = vpack.c.b16 %v2731, %v2730
    %v2742 = vpack.c.b16 %v2733, %v2732
    %v2743 = vpack.c.b16 %v2735, %v2734
    %2752 = vmatpush.bf16.msra.mxu0 %v2743
    %2753 = vmatpush.bf16.msra.mxu0 %v2742
    %2754 = vmatpush.bf16.msra.mxu0 %v2741
    %2755 = vmatpush.bf16.msra.mxu0 %v2740
    %2756 = vmatpush.bf16.msra.mxu0 %v2739
    %2757 = vmatpush.bf16.msra.mxu0 %v2738
    %2758 = vmatpush.bf16.msra.mxu0 %v2737
    %2759 = vmatpush.bf16.msra.mxu0 %v2736
    %2760 = vmatmul.bf16.gmra.mxu0 %v2686
    %v2761 = vpop.f32.mrf.mxu0
    %v2762 = vadd.f32 0.0, %v2761
    %v2763 = vpop.f32.mrf.mxu0
    %v2764 = vadd.f32 0.0, %v2763
    %2765 = vdwg.mxu0
    %v2782 = vunpack.c.l.b16 %v2670
    %v2783 = vunpack.c.l.b16 %v2671
    %v2784 = vunpack.c.l.b16 %v2672
    %v2785 = vunpack.c.l.b16 %v2673
    %v2786 = vunpack.c.l.b16 %v2674
    %v2787 = vunpack.c.l.b16 %v2675
    %v2788 = vunpack.c.l.b16 %v2676
    %v2789 = vunpack.c.l.b16 %v2677
    %v2790 = vunpack.c.l.b16 %v2678
    %v2791 = vunpack.c.l.b16 %v2679
    %v2792 = vunpack.c.l.b16 %v2680
    %v2793 = vunpack.c.l.b16 %v2681
    %v2794 = vunpack.c.l.b16 %v2682
    %v2795 = vunpack.c.l.b16 %v2683
    %v2796 = vunpack.c.l.b16 %v2684
    %v2797 = vunpack.c.l.b16 %v2685
    %v2798 = vpack.c.b16 %v2783, %v2782
    %v2799 = vpack.c.b16 %v2785, %v2784
    %v2800 = vpack.c.b16 %v2787, %v2786
    %v2801 = vpack.c.b16 %v2789, %v2788
    %v2802 = vpack.c.b16 %v2791, %v2790
    %v2803 = vpack.c.b16 %v2793, %v2792
    %v2804 = vpack.c.b16 %v2795, %v2794
    %v2805 = vpack.c.b16 %v2797, %v2796
    %2814 = vmatpush.bf16.msra.mxu0 %v2805
    %2815 = vmatpush.bf16.msra.mxu0 %v2804
    %2816 = vmatpush.bf16.msra.mxu0 %v2803
    %2817 = vmatpush.bf16.msra.mxu0 %v2802
    %2818 = vmatpush.bf16.msra.mxu0 %v2801
    %2819 = vmatpush.bf16.msra.mxu0 %v2800
    %2820 = vmatpush.bf16.msra.mxu0 %v2799
    %2821 = vmatpush.bf16.msra.mxu0 %v2798
    %2822 = vmatmul.bf16.gmra.mxu0 %v2668
    %v2823 = vpop.f32.mrf.mxu0
    %v2824 = vadd.f32 %v2762, %v2823
    %v2825 = vpop.f32.mrf.mxu0
    %v2826 = vadd.f32 %v2764, %v2825
    %2827 = vdwg.mxu0
    %v2828 = vpack.c.bf16 %v2655, %v2654
    %s2829 = scalar_lea.vmem %s11, 320
    %v2830 = vld [vmem:[%s2829] sm:$0xf]
    %v2831 = vld [vmem:[%s2829 + $0x4] sm:$0xf]
    %v2832 = vld [vmem:[%s2829 + $0x8] sm:$0xf]
    %v2833 = vld [vmem:[%s2829 + $0xc] sm:$0xf]
    %v2834 = vld [vmem:[%s2829 + $0x10] sm:$0xf]
    %v2835 = vld [vmem:[%s2829 + $0x14] sm:$0xf]
    %v2836 = vld [vmem:[%s2829 + $0x18] sm:$0xf]
    %v2837 = vld [vmem:[%s2829 + $0x1c] sm:$0xf]
    %v2838 = vld [vmem:[%s2829 + $0x20] sm:$0xf]
    %v2839 = vld [vmem:[%s2829 + $0x24] sm:$0xf]
    %v2840 = vld [vmem:[%s2829 + $0x28] sm:$0xf]
    %v2841 = vld [vmem:[%s2829 + $0x2c] sm:$0xf]
    %v2842 = vld [vmem:[%s2829 + $0x30] sm:$0xf]
    %v2843 = vld [vmem:[%s2829 + $0x34] sm:$0xf]
    %v2844 = vld [vmem:[%s2829 + $0x38] sm:$0xf]
    %v2845 = vld [vmem:[%s2829 + $0x3c] sm:$0xf]
    %v2862 = vunpack.c.l.b16 %v2830
    %v2863 = vunpack.c.l.b16 %v2831
    %v2864 = vunpack.c.l.b16 %v2832
    %v2865 = vunpack.c.l.b16 %v2833
    %v2866 = vunpack.c.l.b16 %v2834
    %v2867 = vunpack.c.l.b16 %v2835
    %v2868 = vunpack.c.l.b16 %v2836
    %v2869 = vunpack.c.l.b16 %v2837
    %v2870 = vunpack.c.l.b16 %v2838
    %v2871 = vunpack.c.l.b16 %v2839
    %v2872 = vunpack.c.l.b16 %v2840
    %v2873 = vunpack.c.l.b16 %v2841
    %v2874 = vunpack.c.l.b16 %v2842
    %v2875 = vunpack.c.l.b16 %v2843
    %v2876 = vunpack.c.l.b16 %v2844
    %v2877 = vunpack.c.l.b16 %v2845
    %v2878 = vpack.c.b16 %v2863, %v2862
    %v2879 = vpack.c.b16 %v2865, %v2864
    %v2880 = vpack.c.b16 %v2867, %v2866
    %v2881 = vpack.c.b16 %v2869, %v2868
    %v2882 = vpack.c.b16 %v2871, %v2870
    %v2883 = vpack.c.b16 %v2873, %v2872
    %v2884 = vpack.c.b16 %v2875, %v2874
    %v2885 = vpack.c.b16 %v2877, %v2876
    %2894 = vmatpush.bf16.msra.mxu0 %v2885
    %2895 = vmatpush.bf16.msra.mxu0 %v2884
    %2896 = vmatpush.bf16.msra.mxu0 %v2883
    %2897 = vmatpush.bf16.msra.mxu0 %v2882
    %2898 = vmatpush.bf16.msra.mxu0 %v2881
    %2899 = vmatpush.bf16.msra.mxu0 %v2880
    %2900 = vmatpush.bf16.msra.mxu0 %v2879
    %2901 = vmatpush.bf16.msra.mxu0 %v2878
    %2902 = vmatmul.bf16.gmra.mxu0 %v2828
    %v2903 = vpop.f32.mrf.mxu0
    %v2904 = vadd.f32 0.0, %v2903
    %v2905 = vpop.f32.mrf.mxu0
    %v2906 = vadd.f32 0.0, %v2905
    %2907 = vdwg.mxu0
    %v2908 = vadd.f32 %v2824, %v2904
    %v2909 = vadd.f32 %v2826, %v2906
    %v2910 = vld [vmem:[#allocation8 + $0x1f] sm:$0x1]
    %v2911 = vperm.slane %v2910, 0
    %v2912 = vadd.f32 %v2908, %v2911
    %v2913 = vadd.f32 %v2909, %v2911
    %v2914 = vadd.f32 %v2423, %v2912
    %v2915 = vadd.f32 %v2424, %v2913
    %v2916 = vld [vmem:[#allocation8 + $0x20] sm:$0x1]
    %v2917 = vld [vmem:[#allocation8 + $0x21] sm:$0x1]
    %v2918 = vsel %vm238, %v2914, 0.0
    %2919 = vadd.xlane.f32.xlu0 %v2918
    %v2920 = vpop.xlane.xlu0 %2919
    %v2921 = vsel %vm238, %v2915, 0.0
    %2922 = vadd.xlane.f32.xlu0 %v2921
    %v2923 = vpop.xlane.xlu0 %2922
    %v2924 = vmul.f32 %v2920, %v251
    %v2925 = vmul.f32 %v2923, %v251
    %v2926 = vsub.f32 %v2914, %v2924
    %v2927 = vsub.f32 %v2915, %v2925
    %v2928 = vmul.f32 %v2926, %v2926
    %v2929 = vmul.f32 %v2927, %v2927
    %v2930 = vsel %vm238, %v2928, 0.0
    %2931 = vadd.xlane.f32.xlu0 %v2930
    %v2932 = vpop.xlane.xlu0 %2931
    %v2933 = vsel %vm238, %v2929, 0.0
    %2934 = vadd.xlane.f32.xlu0 %v2933
    %v2935 = vpop.xlane.xlu0 %2934
    %v2936 = vmul.f32 %v2932, 0.015873017
    %v2937 = vmul.f32 %v2935, 0.015873017
    %v2938 = vrsqrt.pop %v2936
    %v2939 = vmul.f32 %v2938, %v2936
    %v2940 = vmul.f32 %v2939, %v2938
    %v2941 = vmul.f32 0.5, %v2940
    %v2942 = vsub.f32 1.5, %v2941
    %v2943 = vmul.f32 %v2938, %v2942
    %v2944 = vmul.f32 %v2936, %v2943
    %vm2945 = vcmp.eq.f32.partialorder %v2936, inf
    %v2946 = vsel %vm2945, %v2936, %v2944
    %vm2947 = vcmp.eq.f32.partialorder %v2936, 0.0
    %v2948 = vand.u32 %v2936, 2147483648
    %v2949 = vsel %vm2947, %v2948, %v2946
    %v2950 = vrsqrt.pop %v2937
    %v2951 = vmul.f32 %v2950, %v2937
    %v2952 = vmul.f32 %v2951, %v2950
    %v2953 = vmul.f32 0.5, %v2952
    %v2954 = vsub.f32 1.5, %v2953
    %v2955 = vmul.f32 %v2950, %v2954
    %v2956 = vmul.f32 %v2937, %v2955
    %vm2957 = vcmp.eq.f32.partialorder %v2937, inf
    %v2958 = vsel %vm2957, %v2937, %v2956
    %vm2959 = vcmp.eq.f32.partialorder %v2937, 0.0
    %v2960 = vand.u32 %v2937, 2147483648
    %v2961 = vsel %vm2959, %v2960, %v2958
    %v2962 = vadd.f32 %v2949, 1e-06
    %v2963 = vadd.f32 %v2961, 1e-06
    %v2964 = vrcp.pop %v2962
    %v2965 = vrcp.pop %v2963
    %v2966 = vmul.f32 %v2926, %v2964
    %v2967 = vmul.f32 %v2927, %v2965
    %v2968 = vperm.slane %v2916, 0
    %v2969 = vmul.f32 %v2968, %v2966
    %v2970 = vmul.f32 %v2968, %v2967
    %v2971 = vperm.slane %v2917, 0
    %v2972 = vadd.f32 %v2969, %v2971
    %v2973 = vadd.f32 %v2970, %v2971
    %v2974 = vsel %vm238, %v2972, 0.0
    %v2975 = vsel %vm238, %v2973, 0.0
    %2976 = vst [vmem:[#allocation11] sm:$0xff] %v2974
    %2977 = vst [vmem:[#allocation11 + $0x8] sm:$0xff] %v2975
    %v2978 = vsel %vm888, %v2421, 0.0
    %v2979 = vsel %vm888, %v2422, 0.0
    %2980 = vst [vmem:[#allocation12] sm:$0xff] %v2978
    %2981 = vst [vmem:[#allocation12 + $0x8] sm:$0xff] %v2979
    // Predicated region
    $region70: #{tpu_custom_call.1} parent=1 // pred_check
      _
    $region71: #{tpu_custom_call.1} parent=1 // pred_check_branch
      %2983 = sbr.rel (0) target = $region73
    $region72: #{tpu_custom_call.1} parent=1 // pred_region
      %2985 = vsyncadd [#allocation4], 0
      %s2986 = sshll.u32 [#allocation11], 4
      %s2987 = int_to_ptr.vmem [resolvable:$true] %s2986
      %s2988 = sshll.u32 %s12, 4
      %s2989 = int_to_ptr.hbm [resolvable:$true] %s2988
      %2994 = dma.vmem_to_hbm [thread:$0]  %s2987, 256, %s2989, [#allocation4], 128, 128, 8
    $region73: #{tpu_custom_call.1} parent=1 // pred_fallthru
      _
    // Predicated region
    $region74: #{tpu_custom_call.1} parent=1 // pred_check
      _
    $region75: #{tpu_custom_call.1} parent=1 // pred_check_branch
      %2996 = sbr.rel (0) target = $region77
    $region76: #{tpu_custom_call.1} parent=1 // pred_region
      %2998 = vsyncadd [#allocation13], 0
      %s2999 = sshll.u32 [#allocation12], 4
      %s3000 = int_to_ptr.vmem [resolvable:$true] %s2999
      %s3001 = sshll.u32 %s13, 4
      %s3002 = int_to_ptr.hbm [resolvable:$true] %s3001
      %3007 = dma.vmem_to_hbm [thread:$0]  %s3000, 256, %s3002, [#allocation13], 128, 128, 8
    $region77: #{tpu_custom_call.1} parent=1 // pred_fallthru
      _
    // Predicated region
    $region78: #{tpu_custom_call.1} parent=1 // pred_check
      _
    $region79: #{tpu_custom_call.1} parent=1 // pred_check_branch
      %3009 = sbr.rel (0) target = $region81
    $region80: #{tpu_custom_call.1} parent=1 // pred_region
      %3011 = dma.done [#allocation4], 256
    $region81: #{tpu_custom_call.1} parent=1 // pred_fallthru
      _
    // Predicated region
    $region82: #{tpu_custom_call.1} parent=1 // pred_check
      _
    $region83: #{tpu_custom_call.1} parent=1 // pred_check_branch
      %3013 = sbr.rel (0) target = $region85
    $region84: #{tpu_custom_call.1} parent=1 // pred_region
      %3015 = dma.done [#allocation13], 256
    $region85: #{tpu_custom_call.1} parent=1 // pred_fallthru
      _
    %3016 = vsyncpa [#allocation3], 1
    %3017 = vsyncpa [#allocation6], 1
    %3018 = vsyncpa [#allocation9], 1
    %3019 = vsyncpa [#allocation4], 1
    %3020 = vsyncpa [#allocation13], 1

</llo_original>
